<compile_context>
chip_gen: v6e
topology: v6e:2x2x1
jax: 0.10.0
libtpu: 0.0.40
codegen_flags: <defaults>
</compile_context>

<pallas_src>
import functools

import jax
import jax.numpy as jnp
from jax.experimental import pallas as pl
from jax.experimental.pallas import tpu as pltpu

EPS = 1e-5
LANE = 128
MXU_DTYPE = jnp.bfloat16  # MXU-operand / inter-pass HBM dtype (f32 => exact-parity mode)
# Explicit scoped-VMEM budget: below physical VMEM on every generation
# (v7x = 64 MiB physical); our per-step footprint is far below this.
VMEM_LIMIT = 32 * 1024 * 1024


def _round_up(x, m):
    return (x + m - 1) // m * m


def _pick_tile(m):
    # Lane-dense M tiles for the elementwise pass: prefer large tiles, fall
    # back to a single full-extent block (always legal) for small / odd m.
    for t in (1024, 512, 256, 128):
        if m % t == 0:
            return t
    return m


# ---------------------------------------------------------------------------
# Kernel A/B (shared): 3x3 stride-1 conv
#   [+ optional fused pre-BN+ReLU on the input]   (used for pass 2)
#   [+ optional fused 1x1 projection shortcut]    (used for pass 1, stride 1)
#   + per-tile BN partial statistics (sum, sum-of-squares).
# Spatial zero-padding happens inside the kernel via a VMEM scratch whose
# 1-pixel halo is cheaply re-zeroed every step (interior fully rewritten, so
# no cross-step state -> safe when the grid is split across TensorCores).
# ---------------------------------------------------------------------------
def _conv3x3_s1_kernel(*refs, ho, wo, pre_bn, proj):
    assert not (pre_bn and proj)
    it = iter(refs)
    x_ref = next(it)
    if pre_bn:
        sc_ref, sh_ref = next(it), next(it)
    w_ref = next(it)
    if proj:
        ws_ref = next(it)
    y_ref = next(it)
    if proj:
        ys_ref = next(it)
    st_ref = next(it)
    xpad_ref, acc_ref = next(it), next(it)

    cin = xpad_ref.shape[-1]
    hw = ho * wo

    xv = x_ref[0]                                             # (ho, wo, cin)
    if pre_bn:
        xv = jnp.maximum(
            xv.astype(jnp.float32) * sc_ref[...].reshape(1, 1, cin)
            + sh_ref[...].reshape(1, 1, cin), 0.0)
    xq = xv.astype(xpad_ref.dtype)

    # Zero only the 1-pixel halo (not the whole scratch) each step.
    zrow = jnp.zeros((1, wo + 2, cin), xpad_ref.dtype)
    zcol = jnp.zeros((ho, 1, cin), xpad_ref.dtype)
    xpad_ref[0:1, :, :] = zrow
    xpad_ref[ho + 1:ho + 2, :, :] = zrow
    xpad_ref[1:ho + 1, 0:1, :] = zcol
    xpad_ref[1:ho + 1, wo + 1:wo + 2, :] = zcol
    xpad_ref[1:ho + 1, 1:wo + 1, :] = xq

    # 9 accumulated MXU matmuls over shifted windows of the padded scratch;
    # f32 accumulation lives in a VMEM scratch (bounded live range).
    acc_ref[...] = jnp.zeros_like(acc_ref)
    for kh in range(3):
        for kw in range(3):
            tap = xpad_ref[kh:kh + ho, kw:kw + wo, :].reshape(hw, cin)
            acc_ref[...] += jnp.dot(tap, w_ref[kh * 3 + kw],
                                    preferred_element_type=jnp.float32)
    acc = acc_ref[...]
    y_ref[0] = acc.astype(y_ref.dtype)
    st_ref[0, 0:1, :] = jnp.sum(acc, axis=0, keepdims=True)
    st_ref[0, 1:2, :] = jnp.sum(acc * acc, axis=0, keepdims=True)

    if proj:
        # 1x1 projection shortcut on the raw input tile (stride 1).
        accs = jnp.dot(xq.reshape(hw, cin), ws_ref[...],
                       preferred_element_type=jnp.float32)
        ys_ref[0] = accs.astype(ys_ref.dtype)
        st_ref[0, 2:3, :] = jnp.sum(accs, axis=0, keepdims=True)
        st_ref[0, 3:4, :] = jnp.sum(accs * accs, axis=0, keepdims=True)


# ---------------------------------------------------------------------------
# Kernel A (stride 2): 3x3 stride-2 conv (+ fused 1x1 stride-2 projection
# shortcut) + BN partial statistics.  Input is the spatially padded
# activation decomposed into 2x2 unit-stride phase images, so every tap is a
# contiguous slice of the ref.
# ---------------------------------------------------------------------------
def _conv3x3_s2_kernel(xph_ref, w_ref, *rest, ho, wo, proj):
    if proj:
        ws_ref, y_ref, ys_ref, st_ref, acc_ref = rest
    else:
        y_ref, st_ref, acc_ref = rest

    cin = xph_ref.shape[-1]
    hw = ho * wo

    acc_ref[...] = jnp.zeros_like(acc_ref)
    center = None
    for kh in range(3):
        for kw in range(3):
            p = (kh % 2) * 2 + (kw % 2)
            oh, ow = kh // 2, kw // 2
            tap = xph_ref[p, oh:oh + ho, ow:ow + wo, :].reshape(hw, cin)
            if kh == 1 and kw == 1:
                center = tap          # == x[:, ::2, ::2, :] -> shortcut input
            acc_ref[...] += jnp.dot(tap, w_ref[kh * 3 + kw],
                                    preferred_element_type=jnp.float32)
    acc = acc_ref[...]
    y_ref[0] = acc.astype(y_ref.dtype)
    st_ref[0, 0:1, :] = jnp.sum(acc, axis=0, keepdims=True)
    st_ref[0, 1:2, :] = jnp.sum(acc * acc, axis=0, keepdims=True)

    if proj:
        accs = jnp.dot(center, ws_ref[...], preferred_element_type=jnp.float32)
        ys_ref[0] = accs.astype(ys_ref.dtype)
        st_ref[0, 2:3, :] = jnp.sum(accs, axis=0, keepdims=True)
        st_ref[0, 3:4, :] = jnp.sum(accs * accs, axis=0, keepdims=True)


# ---------------------------------------------------------------------------
# Kernel C: apply BN2 and shortcut-BN scale/shift, add, ReLU (lane-dense).
# ---------------------------------------------------------------------------
def _bn_add_relu_kernel(y2_ref, ys_ref, sc2_ref, sh2_ref, scs_ref, shs_ref,
                        o_ref):
    res = y2_ref[...].astype(jnp.float32) * sc2_ref[...] + sh2_ref[...]
    scut = ys_ref[...].astype(jnp.float32) * scs_ref[...] + shs_ref[...]
    o_ref[...] = jnp.maximum(res + scut, 0.0)


def _bn_scale_shift(ssum, ssq, count, gamma, beta):
    mean = ssum / count
    var = jnp.maximum(ssq / count - mean * mean, 0.0)  # biased (training-mode)
    scale = gamma * jax.lax.rsqrt(var + EPS)
    shift = beta - mean * scale
    return scale.reshape(1, -1), shift.reshape(1, -1)


# ---------------------------------------------------------------------------
# Wrapper: layout prep (NCHW<->NHWC, channel padding, bf16 cast, weight
# reshapes, stride-2 phase split) and the tiny global stats reductions.
# ---------------------------------------------------------------------------
def basic_block_forward(x_nchw, params, *, stride):
    n, cin, h, w = x_nchw.shape
    cout = params["w1"].shape[0]
    cin_p, cout_p = _round_up(cin, LANE), _round_up(cout, LANE)
    s = stride
    ho = (h + 2 - 3) // s + 1
    wo = (w + 2 - 3) // s + 1
    hwo = ho * wo
    count = float(n * hwo)
    has_proj = (s != 1) or (cin != cout)
    stat_rows = 4 if has_proj else 2

    # --- input prep: one transpose + one channel pad + one cast ------------
    xb = jnp.transpose(x_nchw, (0, 2, 3, 1))
    xb = jnp.pad(xb, ((0, 0), (0, 0), (0, 0), (0, cin_p - cin))).astype(MXU_DTYPE)

    # --- weights: (Cout,Cin,3,3) -> (9, Cin_p, Cout_p), MXU dtype ----------
    w1 = jnp.transpose(params["w1"], (2, 3, 1, 0)).reshape(9, cin, cout)
    w1 = jnp.pad(w1, ((0, 0), (0, cin_p - cin), (0, cout_p - cout))).astype(MXU_DTYPE)
    w2 = jnp.transpose(params["w2"], (2, 3, 1, 0)).reshape(9, cout, cout)
    w2 = jnp.pad(w2, ((0, 0), (0, cout_p - cout), (0, cout_p - cout))).astype(MXU_DTYPE)
    g1 = jnp.pad(params["g1"], (0, cout_p - cout))
    b1 = jnp.pad(params["b1"], (0, cout_p - cout))
    g2 = jnp.pad(params["g2"], (0, cout_p - cout))
    b2 = jnp.pad(params["b2"], (0, cout_p - cout))

    # Output-channel tiling: second "parallel" grid axis (no halo needed).
    tc = 256 if cout_p % 256 == 0 else 128
    nct = cout_p // tc
    cparams = pltpu.CompilerParams(
        dimension_semantics=("parallel", "parallel"),
        vmem_limit_bytes=VMEM_LIMIT)

    y_spec = pl.BlockSpec((1, hwo, tc), lambda i, j: (i, 0, j))
    st1_spec = pl.BlockSpec((1, stat_rows, tc), lambda i, j: (i, 0, j))
    st2_spec = pl.BlockSpec((1, 2, tc), lambda i, j: (i, 0, j))
    vec_spec = pl.BlockSpec((1, cout_p), lambda i, j: (0, 0))
    w1_spec = pl.BlockSpec((9, cin_p, tc), lambda i, j: (0, 0, j))
    w2_spec = pl.BlockSpec((9, cout_p, tc), lambda i, j: (0, 0, j))
    ws_spec = pl.BlockSpec((cin_p, tc), lambda i, j: (0, j))

    if has_proj:
        ws = jnp.pad(params["ws"][:, :, 0, 0].T,
                     ((0, cin_p - cin), (0, cout_p - cout))).astype(MXU_DTYPE)

    # ---------------- pass 1: conv1 (+ proj shortcut) + partial stats ------
    y_shape = jax.ShapeDtypeStruct((n, hwo, cout_p), MXU_DTYPE)
    st1_shape = jax.ShapeDtypeStruct((n, stat_rows, cout_p), jnp.float32)
    acc_scratch = pltpu.VMEM((hwo, tc), jnp.float32)

    if s == 1:
        # Spatial halo padding happens inside the kernel (VMEM scratch).
        x_spec = pl.BlockSpec((1, h, w, cin_p), lambda i, j: (i, 0, 0, 0))
        kern = functools.partial(_conv3x3_s1_kernel, ho=ho, wo=wo,
                                 pre_bn=False, proj=has_proj)
        in_specs = [x_spec, w1_spec] + ([ws_spec] if has_proj else [])
        ops = [xb, w1] + ([ws] if has_proj else [])
        scratch = [pltpu.VMEM((h + 2, w + 2, cin_p), MXU_DTYPE), acc_scratch]
    else:
        # Stride 2: phase-decompose the padded input so taps stay contiguous.
        hq, wq = ho + 1, wo + 1
        xp = jnp.pad(xb, ((0, 0), (1, 1), (1, 1), (0, 0)))
        phases = []
        for ph in range(2):
            for pw in range(2):
                v = xp[:, ph::2, pw::2, :][:, :hq, :wq, :]
                v = jnp.pad(v, ((0, 0), (0, hq - v.shape[1]),
                                (0, wq - v.shape[2]), (0, 0)))
                phases.append(v)
        xph = jnp.stack(phases, axis=1).reshape(n * 4, hq, wq, cin_p)
        x_spec = pl.BlockSpec((4, hq, wq, cin_p), lambda i, j: (i, 0, 0, 0))
        kern = functools.partial(_conv3x3_s2_kernel, ho=ho, wo=wo, proj=has_proj)
        in_specs = [x_spec, w1_spec] + ([ws_spec] if has_proj else [])
        ops = [xph, w1] + ([ws] if has_proj else [])
        scratch = [acc_scratch]

    out_specs = [y_spec] + ([y_spec] if has_proj else []) + [st1_spec]
    out_shapes = [y_shape] + ([y_shape] if has_proj else []) + [st1_shape]
    res = pl.pallas_call(
        kern, grid=(n, nct),
        in_specs=in_specs, out_specs=tuple(out_specs),
        out_shape=tuple(out_shapes), scratch_shapes=scratch,
        compiler_params=cparams)(*ops)
    if has_proj:
        y1, ys, st1 = res
    else:
        y1, st1 = res
        ys = None

    st1 = jnp.sum(st1, axis=0)  # tiny global reduction over batch tiles
    sc1, sh1 = _bn_scale_shift(st1[0], st1[1], count, g1, b1)
    if has_proj:
        gs = jnp.pad(params["gs"], (0, cout_p - cout))
        bs = jnp.pad(params["bs"], (0, cout_p - cout))
        scs, shs = _bn_scale_shift(st1[2], st1[3], count, gs, bs)
        ysf = ys.reshape(n * hwo, cout_p)
    else:
        scs = jnp.ones((1, cout_p), jnp.float32)
        shs = jnp.zeros((1, cout_p), jnp.float32)
        ysf = xb.reshape(n * hwo, cout_p)  # identity shortcut (bf16)

    # ---------------- pass 2: BN1 + ReLU fused with conv2 + partial stats --
    kern2 = functools.partial(_conv3x3_s1_kernel, ho=ho, wo=wo,
                              pre_bn=True, proj=False)
    x2_spec = pl.BlockSpec((1, ho, wo, cout_p), lambda i, j: (i, 0, 0, 0))
    y2, st2 = pl.pallas_call(
        kern2, grid=(n, nct),
        in_specs=[x2_spec, vec_spec, vec_spec, w2_spec],
        out_specs=(y_spec, st2_spec),
        out_shape=(jax.ShapeDtypeStruct((n, hwo, cout_p), MXU_DTYPE),
                   jax.ShapeDtypeStruct((n, 2, cout_p), jnp.float32)),
        scratch_shapes=[pltpu.VMEM((ho + 2, wo + 2, cout_p), MXU_DTYPE),
                        pltpu.VMEM((hwo, tc), jnp.float32)],
        compiler_params=cparams,
    )(y1.reshape(n, ho, wo, cout_p), sc1, sh1, w2)
    st2 = jnp.sum(st2, axis=0)
    sc2, sh2 = _bn_scale_shift(st2[0], st2[1], count, g2, b2)

    # ---------------- pass 3: BN2 + shortcut-BN + add + ReLU ----------------
    m = n * hwo
    tm = _pick_tile(m)
    row_spec = pl.BlockSpec((tm, cout_p), lambda i: (i, 0))
    vec3_spec = pl.BlockSpec((1, cout_p), lambda i: (0, 0))
    out = pl.pallas_call(
        _bn_add_relu_kernel,
        grid=(m // tm,),
        in_specs=[row_spec, row_spec, vec3_spec, vec3_spec, vec3_spec, vec3_spec],
        out_specs=row_spec,
        out_shape=jax.ShapeDtypeStruct((m, cout_p), jnp.float32),
        compiler_params=pltpu.CompilerParams(
            dimension_semantics=("parallel",),
            vmem_limit_bytes=VMEM_LIMIT),
    )(y2.reshape(m, cout_p), ysf, sc2, sh2, scs, shs)

    out = out.reshape(n, ho, wo, cout_p)[..., :cout]
    return jnp.transpose(out, (0, 3, 1, 2))  # back to NCHW


# ---------------------------------------------------------------------------
# Pure-JAX reference (mirrors the PyTorch forward) for the correctness check
# ---------------------------------------------------------------------------
def ref_forward(x, params, stride, has_proj, eps=EPS):
    def conv(x, w, s, p):
        return jax.lax.conv_general_dilated(
            x, w, (s, s), [(p, p), (p, p)],
            dimension_numbers=("NCHW", "OIHW", "NCHW"))

    def bn(y, g, b):
        m = jnp.mean(y, axis=(0, 2, 3), keepdims=True)
        v = jnp.mean((y - m) ** 2, axis=(0, 2, 3), keepdims=True)
        return ((y - m) * jax.lax.rsqrt(v + eps) * g.reshape(1, -1, 1, 1)
                + b.reshape(1, -1, 1, 1))

    r = jax.nn.relu(bn(conv(x, params["w1"], stride, 1), params["g1"], params["b1"]))
    r = bn(conv(r, params["w2"], 1, 1), params["g2"], params["b2"])
    if has_proj:
        sc = bn(conv(x, params["ws"], stride, 0), params["gs"], params["bs"])
    else:
        sc = x
    return jax.nn.relu(r + sc)


def _make_params(key, cin, cout, has_proj):
    ks = jax.random.split(key, 3)
    p = {
        "w1": 0.1 * jax.random.normal(ks[0], (cout, cin, 3, 3), jnp.float32),
        "g1": jnp.ones((cout,), jnp.float32),
        "b1": jnp.zeros((cout,), jnp.float32),
        "w2": 0.1 * jax.random.normal(ks[1], (cout, cout, 3, 3), jnp.float32),
        "g2": jnp.ones((cout,), jnp.float32),
        "b2": jnp.zeros((cout,), jnp.float32),
    }
    if has_proj:
        p["ws"] = 0.1 * jax.random.normal(ks[2], (cout, cin, 1, 1), jnp.float32)
        p["gs"] = jnp.ones((cout,), jnp.float32)
        p["bs"] = jnp.zeros((cout,), jnp.float32)
    return p


if __name__ == "__main__":
    key = jax.random.PRNGKey(0)
    configs = [
        # (N, Cin, H, W, Cout, stride)
        (2, 4, 16, 16, 8, 2),   # projection shortcut (stride 2, channel change)
        (2, 8, 16, 16, 8, 1),   # identity shortcut
    ]
    for (n, cin, h, w, cout, stride) in configs:
        kx, kp = jax.random.split(jax.random.fold_in(key, stride))
        x = jax.random.normal(kx, (n, cin, h, w), jnp.float32)
        has_proj = (stride != 1) or (cin != cout)
        params = _make_params(kp, cin, cout, has_proj)

        fwd = jax.jit(functools.partial(basic_block_forward, stride=stride))
        out = fwd(x, params)
        jax.block_until_ready(out)

        ho = (h + 2 - 3) // stride + 1
        wo = (w + 2 - 3) // stride + 1
        assert out.shape == (n, cout, ho, wo), out.shape

        ref = ref_forward(x, params, stride, has_proj)
        err = float(jnp.max(jnp.abs(out - ref)))
        # bf16 MXU operands + bf16 inter-pass storage (f32 accumulation/stats)
        # => ~1e-2-level deviation vs the pure-f32 reference.
        assert jnp.allclose(out, ref, atol=4e-2, rtol=4e-2), err

    print("KERNEL_OK")
</pallas_src>

<mosaic_0001>
module attributes {stable_mosaic.version = 11 : i64} {
  func.func @_conv3x3_s2_kernel(%arg0: i32, %arg1: i32, %arg2: memref<4x9x9x128xbf16, #tpu.memory_space<vmem>>, %arg3: memref<9x128x128xbf16, #tpu.memory_space<vmem>>, %arg4: memref<128x128xbf16, #tpu.memory_space<vmem>>, %arg5: memref<1x64x128xbf16, #tpu.memory_space<vmem>>, %arg6: memref<1x64x128xbf16, #tpu.memory_space<vmem>>, %arg7: memref<1x4x128xf32, #tpu.memory_space<vmem>>, %arg8: memref<64x128xf32, #tpu.memory_space<vmem>>) attributes {dimension_semantics = [#tpu.dimension_semantics<parallel>, #tpu.dimension_semantics<parallel>], iteration_bounds = array<i64: 2, 1>, scalar_prefetch = 0 : i64, scratch_operands = 1 : i64, tpu.core_type = #tpu.core_type<tc>, window_params = [{transform_indices = @transform_0, window_bounds = array<i64: 4, 9, 9, 128>}, {transform_indices = @transform_1, window_bounds = array<i64: 9, 128, 128>}, {transform_indices = @transform_2, window_bounds = array<i64: 128, 128>}, {transform_indices = @transform_3, window_bounds = array<i64: 1, 64, 128>}, {transform_indices = @transform_4, window_bounds = array<i64: 1, 64, 128>}, {transform_indices = @transform_5, window_bounds = array<i64: 1, 4, 128>}]} {
    %cst = arith.constant 0.000000e+00 : f32
    %0 = vector.broadcast %cst : f32 to vector<64x128xf32>
    %c0 = arith.constant 0 : index
    %c0_0 = arith.constant 0 : index
    %1 = vector.load %arg8[%c0, %c0_0] : memref<64x128xf32, #tpu.memory_space<vmem>>, vector<64x128xf32>
    tpu.vector_store %arg8[%c0, %c0_0], %0 {strides = array<i32>} : memref<64x128xf32, #tpu.memory_space<vmem>>, vector<64x128xf32>,
    %c0_1 = arith.constant 0 : index
    %c0_2 = arith.constant 0 : index
    %c0_3 = arith.constant 0 : index
    %c0_4 = arith.constant 0 : index
    %2 = vector.load %arg2[%c0_1, %c0_2, %c0_3, %c0_4] : memref<4x9x9x128xbf16, #tpu.memory_space<vmem>>, vector<1x8x8x128xbf16>
    %3 = vector.shape_cast %2 : vector<1x8x8x128xbf16> to vector<8x8x128xbf16>
    %4 = vector.shape_cast %3 : vector<8x8x128xbf16> to vector<64x128xbf16>
    %c0_5 = arith.constant 0 : index
    %c0_6 = arith.constant 0 : index
    %5 = vector.load %arg8[%c0_5, %c0_6] : memref<64x128xf32, #tpu.memory_space<vmem>>, vector<64x128xf32>
    %c0_7 = arith.constant 0 : index
    %c0_8 = arith.constant 0 : index
    %c0_9 = arith.constant 0 : index
    %6 = vector.load %arg3[%c0_7, %c0_8, %c0_9] : memref<9x128x128xbf16, #tpu.memory_space<vmem>>, vector<1x128x128xbf16>
    %7 = vector.shape_cast %6 : vector<1x128x128xbf16> to vector<128x128xbf16>
    %cst_10 = arith.constant dense<0.000000e+00> : vector<64x128xf32>
    %8 = tpu.matmul %4, %7, %cst_10 {dimension_numbers = #tpu.dot_dimension_numbers<[1], [0], [0], [1], [0, 0, 1, 1], [], []>} : vector<64x128xbf16>, vector<128x128xbf16>, vector<64x128xf32> -> vector<64x128xf32>
    %9 = arith.addf %5, %8 : vector<64x128xf32>
    %c0_11 = arith.constant 0 : index
    %c0_12 = arith.constant 0 : index
    %10 = vector.load %arg8[%c0_11, %c0_12] : memref<64x128xf32, #tpu.memory_space<vmem>>, vector<64x128xf32>
    tpu.vector_store %arg8[%c0_11, %c0_12], %9 {strides = array<i32>} : memref<64x128xf32, #tpu.memory_space<vmem>>, vector<64x128xf32>,
    %c1 = arith.constant 1 : index
    %c0_13 = arith.constant 0 : index
    %c0_14 = arith.constant 0 : index
    %c0_15 = arith.constant 0 : index
    %11 = vector.load %arg2[%c1, %c0_13, %c0_14, %c0_15] : memref<4x9x9x128xbf16, #tpu.memory_space<vmem>>, vector<1x8x8x128xbf16>
    %12 = vector.shape_cast %11 : vector<1x8x8x128xbf16> to vector<8x8x128xbf16>
    %13 = vector.shape_cast %12 : vector<8x8x128xbf16> to vector<64x128xbf16>
    %c0_16 = arith.constant 0 : index
    %c0_17 = arith.constant 0 : index
    %14 = vector.load %arg8[%c0_16, %c0_17] : memref<64x128xf32, #tpu.memory_space<vmem>>, vector<64x128xf32>
    %c1_18 = arith.constant 1 : index
    %c0_19 = arith.constant 0 : index
    %c0_20 = arith.constant 0 : index
    %15 = vector.load %arg3[%c1_18, %c0_19, %c0_20] : memref<9x128x128xbf16, #tpu.memory_space<vmem>>, vector<1x128x128xbf16>
    %16 = vector.shape_cast %15 : vector<1x128x128xbf16> to vector<128x128xbf16>
    %cst_21 = arith.constant dense<0.000000e+00> : vector<64x128xf32>
    %17 = tpu.matmul %13, %16, %cst_21 {dimension_numbers = #tpu.dot_dimension_numbers<[1], [0], [0], [1], [0, 0, 1, 1], [], []>} : vector<64x128xbf16>, vector<128x128xbf16>, vector<64x128xf32> -> vector<64x128xf32>
    %18 = arith.addf %14, %17 : vector<64x128xf32>
    %c0_22 = arith.constant 0 : index
    %c0_23 = arith.constant 0 : index
    %19 = vector.load %arg8[%c0_22, %c0_23] : memref<64x128xf32, #tpu.memory_space<vmem>>, vector<64x128xf32>
    tpu.vector_store %arg8[%c0_22, %c0_23], %18 {strides = array<i32>} : memref<64x128xf32, #tpu.memory_space<vmem>>, vector<64x128xf32>,
    %c0_24 = arith.constant 0 : index
    %c0_25 = arith.constant 0 : index
    %c1_26 = arith.constant 1 : index
    %c0_27 = arith.constant 0 : index
    %20 = vector.load %arg2[%c0_24, %c0_25, %c1_26, %c0_27] : memref<4x9x9x128xbf16, #tpu.memory_space<vmem>>, vector<1x8x8x128xbf16>
    %21 = vector.shape_cast %20 : vector<1x8x8x128xbf16> to vector<8x8x128xbf16>
    %22 = vector.shape_cast %21 : vector<8x8x128xbf16> to vector<64x128xbf16>
    %c0_28 = arith.constant 0 : index
    %c0_29 = arith.constant 0 : index
    %23 = vector.load %arg8[%c0_28, %c0_29] : memref<64x128xf32, #tpu.memory_space<vmem>>, vector<64x128xf32>
    %c2 = arith.constant 2 : index
    %c0_30 = arith.constant 0 : index
    %c0_31 = arith.constant 0 : index
    %24 = vector.load %arg3[%c2, %c0_30, %c0_31] : memref<9x128x128xbf16, #tpu.memory_space<vmem>>, vector<1x128x128xbf16>
    %25 = vector.shape_cast %24 : vector<1x128x128xbf16> to vector<128x128xbf16>
    %cst_32 = arith.constant dense<0.000000e+00> : vector<64x128xf32>
    %26 = tpu.matmul %22, %25, %cst_32 {dimension_numbers = #tpu.dot_dimension_numbers<[1], [0], [0], [1], [0, 0, 1, 1], [], []>} : vector<64x128xbf16>, vector<128x128xbf16>, vector<64x128xf32> -> vector<64x128xf32>
    %27 = arith.addf %23, %26 : vector<64x128xf32>
    %c0_33 = arith.constant 0 : index
    %c0_34 = arith.constant 0 : index
    %28 = vector.load %arg8[%c0_33, %c0_34] : memref<64x128xf32, #tpu.memory_space<vmem>>, vector<64x128xf32>
    tpu.vector_store %arg8[%c0_33, %c0_34], %27 {strides = array<i32>} : memref<64x128xf32, #tpu.memory_space<vmem>>, vector<64x128xf32>,
    %c2_35 = arith.constant 2 : index
    %c0_36 = arith.constant 0 : index
    %c0_37 = arith.constant 0 : index
    %c0_38 = arith.constant 0 : index
    %29 = vector.load %arg2[%c2_35, %c0_36, %c0_37, %c0_38] : memref<4x9x9x128xbf16, #tpu.memory_space<vmem>>, vector<1x8x8x128xbf16>
    %30 = vector.shape_cast %29 : vector<1x8x8x128xbf16> to vector<8x8x128xbf16>
    %31 = vector.shape_cast %30 : vector<8x8x128xbf16> to vector<64x128xbf16>
    %c0_39 = arith.constant 0 : index
    %c0_40 = arith.constant 0 : index
    %32 = vector.load %arg8[%c0_39, %c0_40] : memref<64x128xf32, #tpu.memory_space<vmem>>, vector<64x128xf32>
    %c3 = arith.constant 3 : index
    %c0_41 = arith.constant 0 : index
    %c0_42 = arith.constant 0 : index
    %33 = vector.load %arg3[%c3, %c0_41, %c0_42] : memref<9x128x128xbf16, #tpu.memory_space<vmem>>, vector<1x128x128xbf16>
    %34 = vector.shape_cast %33 : vector<1x128x128xbf16> to vector<128x128xbf16>
    %cst_43 = arith.constant dense<0.000000e+00> : vector<64x128xf32>
    %35 = tpu.matmul %31, %34, %cst_43 {dimension_numbers = #tpu.dot_dimension_numbers<[1], [0], [0], [1], [0, 0, 1, 1], [], []>} : vector<64x128xbf16>, vector<128x128xbf16>, vector<64x128xf32> -> vector<64x128xf32>
    %36 = arith.addf %32, %35 : vector<64x128xf32>
    %c0_44 = arith.constant 0 : index
    %c0_45 = arith.constant 0 : index
    %37 = vector.load %arg8[%c0_44, %c0_45] : memref<64x128xf32, #tpu.memory_space<vmem>>, vector<64x128xf32>
    tpu.vector_store %arg8[%c0_44, %c0_45], %36 {strides = array<i32>} : memref<64x128xf32, #tpu.memory_space<vmem>>, vector<64x128xf32>,
    %c3_46 = arith.constant 3 : index
    %c0_47 = arith.constant 0 : index
    %c0_48 = arith.constant 0 : index
    %c0_49 = arith.constant 0 : index
    %38 = vector.load %arg2[%c3_46, %c0_47, %c0_48, %c0_49] : memref<4x9x9x128xbf16, #tpu.memory_space<vmem>>, vector<1x8x8x128xbf16>
    %39 = vector.shape_cast %38 : vector<1x8x8x128xbf16> to vector<8x8x128xbf16>
    %40 = vector.shape_cast %39 : vector<8x8x128xbf16> to vector<64x128xbf16>
    %c0_50 = arith.constant 0 : index
    %c0_51 = arith.constant 0 : index
    %41 = vector.load %arg8[%c0_50, %c0_51] : memref<64x128xf32, #tpu.memory_space<vmem>>, vector<64x128xf32>
    %c4 = arith.constant 4 : index
    %c0_52 = arith.constant 0 : index
    %c0_53 = arith.constant 0 : index
    %42 = vector.load %arg3[%c4, %c0_52, %c0_53] : memref<9x128x128xbf16, #tpu.memory_space<vmem>>, vector<1x128x128xbf16>
    %43 = vector.shape_cast %42 : vector<1x128x128xbf16> to vector<128x128xbf16>
    %cst_54 = arith.constant dense<0.000000e+00> : vector<64x128xf32>
    %44 = tpu.matmul %40, %43, %cst_54 {dimension_numbers = #tpu.dot_dimension_numbers<[1], [0], [0], [1], [0, 0, 1, 1], [], []>} : vector<64x128xbf16>, vector<128x128xbf16>, vector<64x128xf32> -> vector<64x128xf32>
    %45 = arith.addf %41, %44 : vector<64x128xf32>
    %c0_55 = arith.constant 0 : index
    %c0_56 = arith.constant 0 : index
    %46 = vector.load %arg8[%c0_55, %c0_56] : memref<64x128xf32, #tpu.memory_space<vmem>>, vector<64x128xf32>
    tpu.vector_store %arg8[%c0_55, %c0_56], %45 {strides = array<i32>} : memref<64x128xf32, #tpu.memory_space<vmem>>, vector<64x128xf32>,
    %c2_57 = arith.constant 2 : index
    %c0_58 = arith.constant 0 : index
    %c1_59 = arith.constant 1 : index
    %c0_60 = arith.constant 0 : index
    %47 = vector.load %arg2[%c2_57, %c0_58, %c1_59, %c0_60] : memref<4x9x9x128xbf16, #tpu.memory_space<vmem>>, vector<1x8x8x128xbf16>
    %48 = vector.shape_cast %47 : vector<1x8x8x128xbf16> to vector<8x8x128xbf16>
    %49 = vector.shape_cast %48 : vector<8x8x128xbf16> to vector<64x128xbf16>
    %c0_61 = arith.constant 0 : index
    %c0_62 = arith.constant 0 : index
    %50 = vector.load %arg8[%c0_61, %c0_62] : memref<64x128xf32, #tpu.memory_space<vmem>>, vector<64x128xf32>
    %c5 = arith.constant 5 : index
    %c0_63 = arith.constant 0 : index
    %c0_64 = arith.constant 0 : index
    %51 = vector.load %arg3[%c5, %c0_63, %c0_64] : memref<9x128x128xbf16, #tpu.memory_space<vmem>>, vector<1x128x128xbf16>
    %52 = vector.shape_cast %51 : vector<1x128x128xbf16> to vector<128x128xbf16>
    %cst_65 = arith.constant dense<0.000000e+00> : vector<64x128xf32>
    %53 = tpu.matmul %49, %52, %cst_65 {dimension_numbers = #tpu.dot_dimension_numbers<[1], [0], [0], [1], [0, 0, 1, 1], [], []>} : vector<64x128xbf16>, vector<128x128xbf16>, vector<64x128xf32> -> vector<64x128xf32>
    %54 = arith.addf %50, %53 : vector<64x128xf32>
    %c0_66 = arith.constant 0 : index
    %c0_67 = arith.constant 0 : index
    %55 = vector.load %arg8[%c0_66, %c0_67] : memref<64x128xf32, #tpu.memory_space<vmem>>, vector<64x128xf32>
    tpu.vector_store %arg8[%c0_66, %c0_67], %54 {strides = array<i32>} : memref<64x128xf32, #tpu.memory_space<vmem>>, vector<64x128xf32>,
    %c0_68 = arith.constant 0 : index
    %c1_69 = arith.constant 1 : index
    %c0_70 = arith.constant 0 : index
    %c0_71 = arith.constant 0 : index
    %56 = vector.load %arg2[%c0_68, %c1_69, %c0_70, %c0_71] : memref<4x9x9x128xbf16, #tpu.memory_space<vmem>>, vector<1x8x8x128xbf16>
    %57 = vector.shape_cast %56 : vector<1x8x8x128xbf16> to vector<8x8x128xbf16>
    %58 = vector.shape_cast %57 : vector<8x8x128xbf16> to vector<64x128xbf16>
    %c0_72 = arith.constant 0 : index
    %c0_73 = arith.constant 0 : index
    %59 = vector.load %arg8[%c0_72, %c0_73] : memref<64x128xf32, #tpu.memory_space<vmem>>, vector<64x128xf32>
    %c6 = arith.constant 6 : index
    %c0_74 = arith.constant 0 : index
    %c0_75 = arith.constant 0 : index
    %60 = vector.load %arg3[%c6, %c0_74, %c0_75] : memref<9x128x128xbf16, #tpu.memory_space<vmem>>, vector<1x128x128xbf16>
    %61 = vector.shape_cast %60 : vector<1x128x128xbf16> to vector<128x128xbf16>
    %cst_76 = arith.constant dense<0.000000e+00> : vector<64x128xf32>
    %62 = tpu.matmul %58, %61, %cst_76 {dimension_numbers = #tpu.dot_dimension_numbers<[1], [0], [0], [1], [0, 0, 1, 1], [], []>} : vector<64x128xbf16>, vector<128x128xbf16>, vector<64x128xf32> -> vector<64x128xf32>
    %63 = arith.addf %59, %62 : vector<64x128xf32>
    %c0_77 = arith.constant 0 : index
    %c0_78 = arith.constant 0 : index
    %64 = vector.load %arg8[%c0_77, %c0_78] : memref<64x128xf32, #tpu.memory_space<vmem>>, vector<64x128xf32>
    tpu.vector_store %arg8[%c0_77, %c0_78], %63 {strides = array<i32>} : memref<64x128xf32, #tpu.memory_space<vmem>>, vector<64x128xf32>,
    %c1_79 = arith.constant 1 : index
    %c1_80 = arith.constant 1 : index
    %c0_81 = arith.constant 0 : index
    %c0_82 = arith.constant 0 : index
    %65 = vector.load %arg2[%c1_79, %c1_80, %c0_81, %c0_82] : memref<4x9x9x128xbf16, #tpu.memory_space<vmem>>, vector<1x8x8x128xbf16>
    %66 = vector.shape_cast %65 : vector<1x8x8x128xbf16> to vector<8x8x128xbf16>
    %67 = vector.shape_cast %66 : vector<8x8x128xbf16> to vector<64x128xbf16>
    %c0_83 = arith.constant 0 : index
    %c0_84 = arith.constant 0 : index
    %68 = vector.load %arg8[%c0_83, %c0_84] : memref<64x128xf32, #tpu.memory_space<vmem>>, vector<64x128xf32>
    %c7 = arith.constant 7 : index
    %c0_85 = arith.constant 0 : index
    %c0_86 = arith.constant 0 : index
    %69 = vector.load %arg3[%c7, %c0_85, %c0_86] : memref<9x128x128xbf16, #tpu.memory_space<vmem>>, vector<1x128x128xbf16>
    %70 = vector.shape_cast %69 : vector<1x128x128xbf16> to vector<128x128xbf16>
    %cst_87 = arith.constant dense<0.000000e+00> : vector<64x128xf32>
    %71 = tpu.matmul %67, %70, %cst_87 {dimension_numbers = #tpu.dot_dimension_numbers<[1], [0], [0], [1], [0, 0, 1, 1], [], []>} : vector<64x128xbf16>, vector<128x128xbf16>, vector<64x128xf32> -> vector<64x128xf32>
    %72 = arith.addf %68, %71 : vector<64x128xf32>
    %c0_88 = arith.constant 0 : index
    %c0_89 = arith.constant 0 : index
    %73 = vector.load %arg8[%c0_88, %c0_89] : memref<64x128xf32, #tpu.memory_space<vmem>>, vector<64x128xf32>
    tpu.vector_store %arg8[%c0_88, %c0_89], %72 {strides = array<i32>} : memref<64x128xf32, #tpu.memory_space<vmem>>, vector<64x128xf32>,
    %c0_90 = arith.constant 0 : index
    %c1_91 = arith.constant 1 : index
    %c1_92 = arith.constant 1 : index
    %c0_93 = arith.constant 0 : index
    %74 = vector.load %arg2[%c0_90, %c1_91, %c1_92, %c0_93] : memref<4x9x9x128xbf16, #tpu.memory_space<vmem>>, vector<1x8x8x128xbf16>
    %75 = vector.shape_cast %74 : vector<1x8x8x128xbf16> to vector<8x8x128xbf16>
    %76 = vector.shape_cast %75 : vector<8x8x128xbf16> to vector<64x128xbf16>
    %c0_94 = arith.constant 0 : index
    %c0_95 = arith.constant 0 : index
    %77 = vector.load %arg8[%c0_94, %c0_95] : memref<64x128xf32, #tpu.memory_space<vmem>>, vector<64x128xf32>
    %c8 = arith.constant 8 : index
    %c0_96 = arith.constant 0 : index
    %c0_97 = arith.constant 0 : index
    %78 = vector.load %arg3[%c8, %c0_96, %c0_97] : memref<9x128x128xbf16, #tpu.memory_space<vmem>>, vector<1x128x128xbf16>
    %79 = vector.shape_cast %78 : vector<1x128x128xbf16> to vector<128x128xbf16>
    %cst_98 = arith.constant dense<0.000000e+00> : vector<64x128xf32>
    %80 = tpu.matmul %76, %79, %cst_98 {dimension_numbers = #tpu.dot_dimension_numbers<[1], [0], [0], [1], [0, 0, 1, 1], [], []>} : vector<64x128xbf16>, vector<128x128xbf16>, vector<64x128xf32> -> vector<64x128xf32>
    %81 = arith.addf %77, %80 : vector<64x128xf32>
    %c0_99 = arith.constant 0 : index
    %c0_100 = arith.constant 0 : index
    %82 = vector.load %arg8[%c0_99, %c0_100] : memref<64x128xf32, #tpu.memory_space<vmem>>, vector<64x128xf32>
    tpu.vector_store %arg8[%c0_99, %c0_100], %81 {strides = array<i32>} : memref<64x128xf32, #tpu.memory_space<vmem>>, vector<64x128xf32>,
    %c0_101 = arith.constant 0 : index
    %c0_102 = arith.constant 0 : index
    %83 = vector.load %arg8[%c0_101, %c0_102] : memref<64x128xf32, #tpu.memory_space<vmem>>, vector<64x128xf32>
    %84 = arith.truncf %83 : vector<64x128xf32> to vector<64x128xbf16>
    %c0_103 = arith.constant 0 : index
    %c0_104 = arith.constant 0 : index
    %c0_105 = arith.constant 0 : index
    %85 = vector.load %arg5[%c0_103, %c0_104, %c0_105] : memref<1x64x128xbf16, #tpu.memory_space<vmem>>, vector<1x64x128xbf16>
    %86 = vector.shape_cast %85 : vector<1x64x128xbf16> to vector<64x128xbf16>
    %87 = vector.shape_cast %84 : vector<64x128xbf16> to vector<1x64x128xbf16>
    tpu.vector_store %arg5[%c0_103, %c0_104, %c0_105], %87 {strides = array<i32>} : memref<1x64x128xbf16, #tpu.memory_space<vmem>>, vector<1x64x128xbf16>,
    %cst_106 = arith.constant dense<0.000000e+00> : vector<128xf32>
    %88 = vector.multi_reduction <add>, %83, %cst_106 [0] : vector<64x128xf32> to vector<128xf32>
    %89 = vector.shape_cast %88 : vector<128xf32> to vector<1x128xf32>
    %c0_107 = arith.constant 0 : index
    %c0_108 = arith.constant 0 : index
    %c0_109 = arith.constant 0 : index
    %90 = vector.load %arg7[%c0_107, %c0_108, %c0_109] : memref<1x4x128xf32, #tpu.memory_space<vmem>>, vector<1x1x128xf32>
    %91 = vector.shape_cast %90 : vector<1x1x128xf32> to vector<1x128xf32>
    %92 = vector.shape_cast %89 : vector<1x128xf32> to vector<1x1x128xf32>
    tpu.vector_store %arg7[%c0_107, %c0_108, %c0_109], %92 {strides = array<i32>} : memref<1x4x128xf32, #tpu.memory_space<vmem>>, vector<1x1x128xf32>,
    %93 = arith.mulf %83, %83 : vector<64x128xf32>
    %cst_110 = arith.constant dense<0.000000e+00> : vector<128xf32>
    %94 = vector.multi_reduction <add>, %93, %cst_110 [0] : vector<64x128xf32> to vector<128xf32>
    %95 = vector.shape_cast %94 : vector<128xf32> to vector<1x128xf32>
    %c0_111 = arith.constant 0 : index
    %c1_112 = arith.constant 1 : index
    %c0_113 = arith.constant 0 : index
    %96 = vector.load %arg7[%c0_111, %c1_112, %c0_113] : memref<1x4x128xf32, #tpu.memory_space<vmem>>, vector<1x1x128xf32>
    %97 = vector.shape_cast %96 : vector<1x1x128xf32> to vector<1x128xf32>
    %98 = vector.shape_cast %95 : vector<1x128xf32> to vector<1x1x128xf32>
    tpu.vector_store %arg7[%c0_111, %c1_112, %c0_113], %98 {strides = array<i32>} : memref<1x4x128xf32, #tpu.memory_space<vmem>>, vector<1x1x128xf32>,
    %c0_114 = arith.constant 0 : index
    %c0_115 = arith.constant 0 : index
    %99 = vector.load %arg4[%c0_114, %c0_115] : memref<128x128xbf16, #tpu.memory_space<vmem>>, vector<128x128xbf16>
    %cst_116 = arith.constant dense<0.000000e+00> : vector<64x128xf32>
    %100 = tpu.matmul %40, %99, %cst_116 {dimension_numbers = #tpu.dot_dimension_numbers<[1], [0], [0], [1], [0, 0, 1, 1], [], []>} : vector<64x128xbf16>, vector<128x128xbf16>, vector<64x128xf32> -> vector<64x128xf32>
    %101 = arith.truncf %100 : vector<64x128xf32> to vector<64x128xbf16>
    %c0_117 = arith.constant 0 : index
    %c0_118 = arith.constant 0 : index
    %c0_119 = arith.constant 0 : index
    %102 = vector.load %arg6[%c0_117, %c0_118, %c0_119] : memref<1x64x128xbf16, #tpu.memory_space<vmem>>, vector<1x64x128xbf16>
    %103 = vector.shape_cast %102 : vector<1x64x128xbf16> to vector<64x128xbf16>
    %104 = vector.shape_cast %101 : vector<64x128xbf16> to vector<1x64x128xbf16>
    tpu.vector_store %arg6[%c0_117, %c0_118, %c0_119], %104 {strides = array<i32>} : memref<1x64x128xbf16, #tpu.memory_space<vmem>>, vector<1x64x128xbf16>,
    %cst_120 = arith.constant dense<0.000000e+00> : vector<128xf32>
    %105 = vector.multi_reduction <add>, %100, %cst_120 [0] : vector<64x128xf32> to vector<128xf32>
    %106 = vector.shape_cast %105 : vector<128xf32> to vector<1x128xf32>
    %c0_121 = arith.constant 0 : index
    %c2_122 = arith.constant 2 : index
    %c0_123 = arith.constant 0 : index
    %107 = vector.load %arg7[%c0_121, %c2_122, %c0_123] : memref<1x4x128xf32, #tpu.memory_space<vmem>>, vector<1x1x128xf32>
    %108 = vector.shape_cast %107 : vector<1x1x128xf32> to vector<1x128xf32>
    %109 = vector.shape_cast %106 : vector<1x128xf32> to vector<1x1x128xf32>
    tpu.vector_store %arg7[%c0_121, %c2_122, %c0_123], %109 {strides = array<i32>} : memref<1x4x128xf32, #tpu.memory_space<vmem>>, vector<1x1x128xf32>,
    %110 = arith.mulf %100, %100 : vector<64x128xf32>
    %cst_124 = arith.constant dense<0.000000e+00> : vector<128xf32>
    %111 = vector.multi_reduction <add>, %110, %cst_124 [0] : vector<64x128xf32> to vector<128xf32>
    %112 = vector.shape_cast %111 : vector<128xf32> to vector<1x128xf32>
    %c0_125 = arith.constant 0 : index
    %c3_126 = arith.constant 3 : index
    %c0_127 = arith.constant 0 : index
    %113 = vector.load %arg7[%c0_125, %c3_126, %c0_127] : memref<1x4x128xf32, #tpu.memory_space<vmem>>, vector<1x1x128xf32>
    %114 = vector.shape_cast %113 : vector<1x1x128xf32> to vector<1x128xf32>
    %115 = vector.shape_cast %112 : vector<1x128xf32> to vector<1x1x128xf32>
    tpu.vector_store %arg7[%c0_125, %c3_126, %c0_127], %115 {strides = array<i32>} : memref<1x4x128xf32, #tpu.memory_space<vmem>>, vector<1x1x128xf32>,
    return
  }
  func.func @transform_0(%arg0: i32, %arg1: i32) -> (i32, i32, i32, i32) {
    %c0_i32 = arith.constant 0 : i32
    %c0_i32_0 = arith.constant 0 : i32
    %c0_i32_1 = arith.constant 0 : i32
    %c0_i32_2 = arith.constant 0 : i32
    return %arg0, %c0_i32, %c0_i32_0, %c0_i32_1 : i32, i32, i32, i32
  }
  func.func @transform_1(%arg0: i32, %arg1: i32) -> (i32, i32, i32) {
    %c0_i32 = arith.constant 0 : i32
    %c0_i32_0 = arith.constant 0 : i32
    %c0_i32_1 = arith.constant 0 : i32
    return %c0_i32, %c0_i32_0, %arg1 : i32, i32, i32
  }
  func.func @transform_2(%arg0: i32, %arg1: i32) -> (i32, i32) {
    %c0_i32 = arith.constant 0 : i32
    %c0_i32_0 = arith.constant 0 : i32
    return %c0_i32, %arg1 : i32, i32
  }
  func.func @transform_3(%arg0: i32, %arg1: i32) -> (i32, i32, i32) {
    %c0_i32 = arith.constant 0 : i32
    %c0_i32_0 = arith.constant 0 : i32
    return %arg0, %c0_i32, %arg1 : i32, i32, i32
  }
  func.func @transform_4(%arg0: i32, %arg1: i32) -> (i32, i32, i32) {
    %c0_i32 = arith.constant 0 : i32
    %c0_i32_0 = arith.constant 0 : i32
    return %arg0, %c0_i32, %arg1 : i32, i32, i32
  }
  func.func @transform_5(%arg0: i32, %arg1: i32) -> (i32, i32, i32) {
    %c0_i32 = arith.constant 0 : i32
    %c0_i32_0 = arith.constant 0 : i32
    return %arg0, %c0_i32, %arg1 : i32, i32, i32
  }
}

module attributes {stable_mosaic.version = 11 : i64} {
  func.func @_conv3x3_s1_kernel(%arg0: i32, %arg1: i32, %arg2: memref<1x8x8x128xbf16, #tpu.memory_space<vmem>>, %arg3: memref<1x128xf32, #tpu.memory_space<vmem>>, %arg4: memref<1x128xf32, #tpu.memory_space<vmem>>, %arg5: memref<9x128x128xbf16, #tpu.memory_space<vmem>>, %arg6: memref<1x64x128xbf16, #tpu.memory_space<vmem>>, %arg7: memref<1x2x128xf32, #tpu.memory_space<vmem>>, %arg8: memref<10x10x128xbf16, #tpu.memory_space<vmem>>, %arg9: memref<64x128xf32, #tpu.memory_space<vmem>>) attributes {dimension_semantics = [#tpu.dimension_semantics<parallel>, #tpu.dimension_semantics<parallel>], iteration_bounds = array<i64: 2, 1>, scalar_prefetch = 0 : i64, scratch_operands = 2 : i64, tpu.core_type = #tpu.core_type<tc>, window_params = [{transform_indices = @transform_0, window_bounds = array<i64: 1, 8, 8, 128>}, {pipeline_mode = #tpu.pipeline_mode<synchronous>, transform_indices = @transform_1, window_bounds = array<i64: 1, 128>}, {pipeline_mode = #tpu.pipeline_mode<synchronous>, transform_indices = @transform_2, window_bounds = array<i64: 1, 128>}, {transform_indices = @transform_3, window_bounds = array<i64: 9, 128, 128>}, {transform_indices = @transform_4, window_bounds = array<i64: 1, 64, 128>}, {transform_indices = @transform_5, window_bounds = array<i64: 1, 2, 128>}]} {
    %c0 = arith.constant 0 : index
    %c0_0 = arith.constant 0 : index
    %c0_1 = arith.constant 0 : index
    %c0_2 = arith.constant 0 : index
    %0 = vector.load %arg2[%c0, %c0_0, %c0_1, %c0_2] : memref<1x8x8x128xbf16, #tpu.memory_space<vmem>>, vector<1x8x8x128xbf16>
    %1 = vector.shape_cast %0 : vector<1x8x8x128xbf16> to vector<8x8x128xbf16>
    %2 = arith.extf %1 : vector<8x8x128xbf16> to vector<8x8x128xf32>
    %c0_3 = arith.constant 0 : index
    %c0_4 = arith.constant 0 : index
    %3 = vector.load %arg3[%c0_3, %c0_4] : memref<1x128xf32, #tpu.memory_space<vmem>>, vector<1x128xf32>
    %4 = vector.shape_cast %3 : vector<1x128xf32> to vector<1x1x128xf32>
    %5 = vector.broadcast %4 : vector<1x1x128xf32> to vector<8x8x128xf32>
    %6 = arith.mulf %2, %5 : vector<8x8x128xf32>
    %c0_5 = arith.constant 0 : index
    %c0_6 = arith.constant 0 : index
    %7 = vector.load %arg4[%c0_5, %c0_6] : memref<1x128xf32, #tpu.memory_space<vmem>>, vector<1x128xf32>
    %8 = vector.shape_cast %7 : vector<1x128xf32> to vector<1x1x128xf32>
    %9 = vector.broadcast %8 : vector<1x1x128xf32> to vector<8x8x128xf32>
    %10 = arith.addf %6, %9 : vector<8x8x128xf32>
    %cst = arith.constant 0.000000e+00 : f32
    %11 = vector.broadcast %cst : f32 to vector<8x8x128xf32>
    %12 = arith.maximumf %10, %11 : vector<8x8x128xf32>
    %13 = arith.truncf %12 : vector<8x8x128xf32> to vector<8x8x128xbf16>
    %cst_7 = arith.constant 0.000000e+00 : bf16
    %14 = vector.broadcast %cst_7 : bf16 to vector<1x10x128xbf16>
    %cst_8 = arith.constant 0.000000e+00 : bf16
    %15 = vector.broadcast %cst_8 : bf16 to vector<8x1x128xbf16>
    %c0_9 = arith.constant 0 : index
    %c0_10 = arith.constant 0 : index
    %c0_11 = arith.constant 0 : index
    %16 = vector.load %arg8[%c0_9, %c0_10, %c0_11] : memref<10x10x128xbf16, #tpu.memory_space<vmem>>, vector<1x10x128xbf16>
    tpu.vector_store %arg8[%c0_9, %c0_10, %c0_11], %14 {strides = array<i32>} : memref<10x10x128xbf16, #tpu.memory_space<vmem>>, vector<1x10x128xbf16>,
    %c9 = arith.constant 9 : index
    %c0_12 = arith.constant 0 : index
    %c0_13 = arith.constant 0 : index
    %17 = vector.load %arg8[%c9, %c0_12, %c0_13] : memref<10x10x128xbf16, #tpu.memory_space<vmem>>, vector<1x10x128xbf16>
    tpu.vector_store %arg8[%c9, %c0_12, %c0_13], %14 {strides = array<i32>} : memref<10x10x128xbf16, #tpu.memory_space<vmem>>, vector<1x10x128xbf16>,
    %c1 = arith.constant 1 : index
    %c0_14 = arith.constant 0 : index
    %c0_15 = arith.constant 0 : index
    %18 = vector.load %arg8[%c1, %c0_14, %c0_15] : memref<10x10x128xbf16, #tpu.memory_space<vmem>>, vector<8x1x128xbf16>
    tpu.vector_store %arg8[%c1, %c0_14, %c0_15], %15 {strides = array<i32>} : memref<10x10x128xbf16, #tpu.memory_space<vmem>>, vector<8x1x128xbf16>,
    %c1_16 = arith.constant 1 : index
    %c9_17 = arith.constant 9 : index
    %c0_18 = arith.constant 0 : index
    %19 = vector.load %arg8[%c1_16, %c9_17, %c0_18] : memref<10x10x128xbf16, #tpu.memory_space<vmem>>, vector<8x1x128xbf16>
    tpu.vector_store %arg8[%c1_16, %c9_17, %c0_18], %15 {strides = array<i32>} : memref<10x10x128xbf16, #tpu.memory_space<vmem>>, vector<8x1x128xbf16>,
    %c1_19 = arith.constant 1 : index
    %c1_20 = arith.constant 1 : index
    %c0_21 = arith.constant 0 : index
    %20 = vector.load %arg8[%c1_19, %c1_20, %c0_21] : memref<10x10x128xbf16, #tpu.memory_space<vmem>>, vector<8x8x128xbf16>
    tpu.vector_store %arg8[%c1_19, %c1_20, %c0_21], %13 {strides = array<i32>} : memref<10x10x128xbf16, #tpu.memory_space<vmem>>, vector<8x8x128xbf16>,
    %cst_22 = arith.constant 0.000000e+00 : f32
    %21 = vector.broadcast %cst_22 : f32 to vector<64x128xf32>
    %c0_23 = arith.constant 0 : index
    %c0_24 = arith.constant 0 : index
    %22 = vector.load %arg9[%c0_23, %c0_24] : memref<64x128xf32, #tpu.memory_space<vmem>>, vector<64x128xf32>
    tpu.vector_store %arg9[%c0_23, %c0_24], %21 {strides = array<i32>} : memref<64x128xf32, #tpu.memory_space<vmem>>, vector<64x128xf32>,
    %c0_25 = arith.constant 0 : index
    %c0_26 = arith.constant 0 : index
    %c0_27 = arith.constant 0 : index
    %23 = vector.load %arg8[%c0_25, %c0_26, %c0_27] : memref<10x10x128xbf16, #tpu.memory_space<vmem>>, vector<8x8x128xbf16>
    %24 = vector.shape_cast %23 : vector<8x8x128xbf16> to vector<64x128xbf16>
    %c0_28 = arith.constant 0 : index
    %c0_29 = arith.constant 0 : index
    %25 = vector.load %arg9[%c0_28, %c0_29] : memref<64x128xf32, #tpu.memory_space<vmem>>, vector<64x128xf32>
    %c0_30 = arith.constant 0 : index
    %c0_31 = arith.constant 0 : index
    %c0_32 = arith.constant 0 : index
    %26 = vector.load %arg5[%c0_30, %c0_31, %c0_32] : memref<9x128x128xbf16, #tpu.memory_space<vmem>>, vector<1x128x128xbf16>
    %27 = vector.shape_cast %26 : vector<1x128x128xbf16> to vector<128x128xbf16>
    %cst_33 = arith.constant dense<0.000000e+00> : vector<64x128xf32>
    %28 = tpu.matmul %24, %27, %cst_33 {dimension_numbers = #tpu.dot_dimension_numbers<[1], [0], [0], [1], [0, 0, 1, 1], [], []>} : vector<64x128xbf16>, vector<128x128xbf16>, vector<64x128xf32> -> vector<64x128xf32>
    %29 = arith.addf %25, %28 : vector<64x128xf32>
    %c0_34 = arith.constant 0 : index
    %c0_35 = arith.constant 0 : index
    %30 = vector.load %arg9[%c0_34, %c0_35] : memref<64x128xf32, #tpu.memory_space<vmem>>, vector<64x128xf32>
    tpu.vector_store %arg9[%c0_34, %c0_35], %29 {strides = array<i32>} : memref<64x128xf32, #tpu.memory_space<vmem>>, vector<64x128xf32>,
    %c0_36 = arith.constant 0 : index
    %c1_37 = arith.constant 1 : index
    %c0_38 = arith.constant 0 : index
    %31 = vector.load %arg8[%c0_36, %c1_37, %c0_38] : memref<10x10x128xbf16, #tpu.memory_space<vmem>>, vector<8x8x128xbf16>
    %32 = vector.shape_cast %31 : vector<8x8x128xbf16> to vector<64x128xbf16>
    %c0_39 = arith.constant 0 : index
    %c0_40 = arith.constant 0 : index
    %33 = vector.load %arg9[%c0_39, %c0_40] : memref<64x128xf32, #tpu.memory_space<vmem>>, vector<64x128xf32>
    %c1_41 = arith.constant 1 : index
    %c0_42 = arith.constant 0 : index
    %c0_43 = arith.constant 0 : index
    %34 = vector.load %arg5[%c1_41, %c0_42, %c0_43] : memref<9x128x128xbf16, #tpu.memory_space<vmem>>, vector<1x128x128xbf16>
    %35 = vector.shape_cast %34 : vector<1x128x128xbf16> to vector<128x128xbf16>
    %cst_44 = arith.constant dense<0.000000e+00> : vector<64x128xf32>
    %36 = tpu.matmul %32, %35, %cst_44 {dimension_numbers = #tpu.dot_dimension_numbers<[1], [0], [0], [1], [0, 0, 1, 1], [], []>} : vector<64x128xbf16>, vector<128x128xbf16>, vector<64x128xf32> -> vector<64x128xf32>
    %37 = arith.addf %33, %36 : vector<64x128xf32>
    %c0_45 = arith.constant 0 : index
    %c0_46 = arith.constant 0 : index
    %38 = vector.load %arg9[%c0_45, %c0_46] : memref<64x128xf32, #tpu.memory_space<vmem>>, vector<64x128xf32>
    tpu.vector_store %arg9[%c0_45, %c0_46], %37 {strides = array<i32>} : memref<64x128xf32, #tpu.memory_space<vmem>>, vector<64x128xf32>,
    %c0_47 = arith.constant 0 : index
    %c2 = arith.constant 2 : index
    %c0_48 = arith.constant 0 : index
    %39 = vector.load %arg8[%c0_47, %c2, %c0_48] : memref<10x10x128xbf16, #tpu.memory_space<vmem>>, vector<8x8x128xbf16>
    %40 = vector.shape_cast %39 : vector<8x8x128xbf16> to vector<64x128xbf16>
    %c0_49 = arith.constant 0 : index
    %c0_50 = arith.constant 0 : index
    %41 = vector.load %arg9[%c0_49, %c0_50] : memref<64x128xf32, #tpu.memory_space<vmem>>, vector<64x128xf32>
    %c2_51 = arith.constant 2 : index
    %c0_52 = arith.constant 0 : index
    %c0_53 = arith.constant 0 : index
    %42 = vector.load %arg5[%c2_51, %c0_52, %c0_53] : memref<9x128x128xbf16, #tpu.memory_space<vmem>>, vector<1x128x128xbf16>
    %43 = vector.shape_cast %42 : vector<1x128x128xbf16> to vector<128x128xbf16>
    %cst_54 = arith.constant dense<0.000000e+00> : vector<64x128xf32>
    %44 = tpu.matmul %40, %43, %cst_54 {dimension_numbers = #tpu.dot_dimension_numbers<[1], [0], [0], [1], [0, 0, 1, 1], [], []>} : vector<64x128xbf16>, vector<128x128xbf16>, vector<64x128xf32> -> vector<64x128xf32>
    %45 = arith.addf %41, %44 : vector<64x128xf32>
    %c0_55 = arith.constant 0 : index
    %c0_56 = arith.constant 0 : index
    %46 = vector.load %arg9[%c0_55, %c0_56] : memref<64x128xf32, #tpu.memory_space<vmem>>, vector<64x128xf32>
    tpu.vector_store %arg9[%c0_55, %c0_56], %45 {strides = array<i32>} : memref<64x128xf32, #tpu.memory_space<vmem>>, vector<64x128xf32>,
    %c1_57 = arith.constant 1 : index
    %c0_58 = arith.constant 0 : index
    %c0_59 = arith.constant 0 : index
    %47 = vector.load %arg8[%c1_57, %c0_58, %c0_59] : memref<10x10x128xbf16, #tpu.memory_space<vmem>>, vector<8x8x128xbf16>
    %48 = vector.shape_cast %47 : vector<8x8x128xbf16> to vector<64x128xbf16>
    %c0_60 = arith.constant 0 : index
    %c0_61 = arith.constant 0 : index
    %49 = vector.load %arg9[%c0_60, %c0_61] : memref<64x128xf32, #tpu.memory_space<vmem>>, vector<64x128xf32>
    %c3 = arith.constant 3 : index
    %c0_62 = arith.constant 0 : index
    %c0_63 = arith.constant 0 : index
    %50 = vector.load %arg5[%c3, %c0_62, %c0_63] : memref<9x128x128xbf16, #tpu.memory_space<vmem>>, vector<1x128x128xbf16>
    %51 = vector.shape_cast %50 : vector<1x128x128xbf16> to vector<128x128xbf16>
    %cst_64 = arith.constant dense<0.000000e+00> : vector<64x128xf32>
    %52 = tpu.matmul %48, %51, %cst_64 {dimension_numbers = #tpu.dot_dimension_numbers<[1], [0], [0], [1], [0, 0, 1, 1], [], []>} : vector<64x128xbf16>, vector<128x128xbf16>, vector<64x128xf32> -> vector<64x128xf32>
    %53 = arith.addf %49, %52 : vector<64x128xf32>
    %c0_65 = arith.constant 0 : index
    %c0_66 = arith.constant 0 : index
    %54 = vector.load %arg9[%c0_65, %c0_66] : memref<64x128xf32, #tpu.memory_space<vmem>>, vector<64x128xf32>
    tpu.vector_store %arg9[%c0_65, %c0_66], %53 {strides = array<i32>} : memref<64x128xf32, #tpu.memory_space<vmem>>, vector<64x128xf32>,
    %c1_67 = arith.constant 1 : index
    %c1_68 = arith.constant 1 : index
    %c0_69 = arith.constant 0 : index
    %55 = vector.load %arg8[%c1_67, %c1_68, %c0_69] : memref<10x10x128xbf16, #tpu.memory_space<vmem>>, vector<8x8x128xbf16>
    %56 = vector.shape_cast %55 : vector<8x8x128xbf16> to vector<64x128xbf16>
    %c0_70 = arith.constant 0 : index
    %c0_71 = arith.constant 0 : index
    %57 = vector.load %arg9[%c0_70, %c0_71] : memref<64x128xf32, #tpu.memory_space<vmem>>, vector<64x128xf32>
    %c4 = arith.constant 4 : index
    %c0_72 = arith.constant 0 : index
    %c0_73 = arith.constant 0 : index
    %58 = vector.load %arg5[%c4, %c0_72, %c0_73] : memref<9x128x128xbf16, #tpu.memory_space<vmem>>, vector<1x128x128xbf16>
    %59 = vector.shape_cast %58 : vector<1x128x128xbf16> to vector<128x128xbf16>
    %cst_74 = arith.constant dense<0.000000e+00> : vector<64x128xf32>
    %60 = tpu.matmul %56, %59, %cst_74 {dimension_numbers = #tpu.dot_dimension_numbers<[1], [0], [0], [1], [0, 0, 1, 1], [], []>} : vector<64x128xbf16>, vector<128x128xbf16>, vector<64x128xf32> -> vector<64x128xf32>
    %61 = arith.addf %57, %60 : vector<64x128xf32>
    %c0_75 = arith.constant 0 : index
    %c0_76 = arith.constant 0 : index
    %62 = vector.load %arg9[%c0_75, %c0_76] : memref<64x128xf32, #tpu.memory_space<vmem>>, vector<64x128xf32>
    tpu.vector_store %arg9[%c0_75, %c0_76], %61 {strides = array<i32>} : memref<64x128xf32, #tpu.memory_space<vmem>>, vector<64x128xf32>,
    %c1_77 = arith.constant 1 : index
    %c2_78 = arith.constant 2 : index
    %c0_79 = arith.constant 0 : index
    %63 = vector.load %arg8[%c1_77, %c2_78, %c0_79] : memref<10x10x128xbf16, #tpu.memory_space<vmem>>, vector<8x8x128xbf16>
    %64 = vector.shape_cast %63 : vector<8x8x128xbf16> to vector<64x128xbf16>
    %c0_80 = arith.constant 0 : index
    %c0_81 = arith.constant 0 : index
    %65 = vector.load %arg9[%c0_80, %c0_81] : memref<64x128xf32, #tpu.memory_space<vmem>>, vector<64x128xf32>
    %c5 = arith.constant 5 : index
    %c0_82 = arith.constant 0 : index
    %c0_83 = arith.constant 0 : index
    %66 = vector.load %arg5[%c5, %c0_82, %c0_83] : memref<9x128x128xbf16, #tpu.memory_space<vmem>>, vector<1x128x128xbf16>
    %67 = vector.shape_cast %66 : vector<1x128x128xbf16> to vector<128x128xbf16>
    %cst_84 = arith.constant dense<0.000000e+00> : vector<64x128xf32>
    %68 = tpu.matmul %64, %67, %cst_84 {dimension_numbers = #tpu.dot_dimension_numbers<[1], [0], [0], [1], [0, 0, 1, 1], [], []>} : vector<64x128xbf16>, vector<128x128xbf16>, vector<64x128xf32> -> vector<64x128xf32>
    %69 = arith.addf %65, %68 : vector<64x128xf32>
    %c0_85 = arith.constant 0 : index
    %c0_86 = arith.constant 0 : index
    %70 = vector.load %arg9[%c0_85, %c0_86] : memref<64x128xf32, #tpu.memory_space<vmem>>, vector<64x128xf32>
    tpu.vector_store %arg9[%c0_85, %c0_86], %69 {strides = array<i32>} : memref<64x128xf32, #tpu.memory_space<vmem>>, vector<64x128xf32>,
    %c2_87 = arith.constant 2 : index
    %c0_88 = arith.constant 0 : index
    %c0_89 = arith.constant 0 : index
    %71 = vector.load %arg8[%c2_87, %c0_88, %c0_89] : memref<10x10x128xbf16, #tpu.memory_space<vmem>>, vector<8x8x128xbf16>
    %72 = vector.shape_cast %71 : vector<8x8x128xbf16> to vector<64x128xbf16>
    %c0_90 = arith.constant 0 : index
    %c0_91 = arith.constant 0 : index
    %73 = vector.load %arg9[%c0_90, %c0_91] : memref<64x128xf32, #tpu.memory_space<vmem>>, vector<64x128xf32>
    %c6 = arith.constant 6 : index
    %c0_92 = arith.constant 0 : index
    %c0_93 = arith.constant 0 : index
    %74 = vector.load %arg5[%c6, %c0_92, %c0_93] : memref<9x128x128xbf16, #tpu.memory_space<vmem>>, vector<1x128x128xbf16>
    %75 = vector.shape_cast %74 : vector<1x128x128xbf16> to vector<128x128xbf16>
    %cst_94 = arith.constant dense<0.000000e+00> : vector<64x128xf32>
    %76 = tpu.matmul %72, %75, %cst_94 {dimension_numbers = #tpu.dot_dimension_numbers<[1], [0], [0], [1], [0, 0, 1, 1], [], []>} : vector<64x128xbf16>, vector<128x128xbf16>, vector<64x128xf32> -> vector<64x128xf32>
    %77 = arith.addf %73, %76 : vector<64x128xf32>
    %c0_95 = arith.constant 0 : index
    %c0_96 = arith.constant 0 : index
    %78 = vector.load %arg9[%c0_95, %c0_96] : memref<64x128xf32, #tpu.memory_space<vmem>>, vector<64x128xf32>
    tpu.vector_store %arg9[%c0_95, %c0_96], %77 {strides = array<i32>} : memref<64x128xf32, #tpu.memory_space<vmem>>, vector<64x128xf32>,
    %c2_97 = arith.constant 2 : index
    %c1_98 = arith.constant 1 : index
    %c0_99 = arith.constant 0 : index
    %79 = vector.load %arg8[%c2_97, %c1_98, %c0_99] : memref<10x10x128xbf16, #tpu.memory_space<vmem>>, vector<8x8x128xbf16>
    %80 = vector.shape_cast %79 : vector<8x8x128xbf16> to vector<64x128xbf16>
    %c0_100 = arith.constant 0 : index
    %c0_101 = arith.constant 0 : index
    %81 = vector.load %arg9[%c0_100, %c0_101] : memref<64x128xf32, #tpu.memory_space<vmem>>, vector<64x128xf32>
    %c7 = arith.constant 7 : index
    %c0_102 = arith.constant 0 : index
    %c0_103 = arith.constant 0 : index
    %82 = vector.load %arg5[%c7, %c0_102, %c0_103] : memref<9x128x128xbf16, #tpu.memory_space<vmem>>, vector<1x128x128xbf16>
    %83 = vector.shape_cast %82 : vector<1x128x128xbf16> to vector<128x128xbf16>
    %cst_104 = arith.constant dense<0.000000e+00> : vector<64x128xf32>
    %84 = tpu.matmul %80, %83, %cst_104 {dimension_numbers = #tpu.dot_dimension_numbers<[1], [0], [0], [1], [0, 0, 1, 1], [], []>} : vector<64x128xbf16>, vector<128x128xbf16>, vector<64x128xf32> -> vector<64x128xf32>
    %85 = arith.addf %81, %84 : vector<64x128xf32>
    %c0_105 = arith.constant 0 : index
    %c0_106 = arith.constant 0 : index
    %86 = vector.load %arg9[%c0_105, %c0_106] : memref<64x128xf32, #tpu.memory_space<vmem>>, vector<64x128xf32>
    tpu.vector_store %arg9[%c0_105, %c0_106], %85 {strides = array<i32>} : memref<64x128xf32, #tpu.memory_space<vmem>>, vector<64x128xf32>,
    %c2_107 = arith.constant 2 : index
    %c2_108 = arith.constant 2 : index
    %c0_109 = arith.constant 0 : index
    %87 = vector.load %arg8[%c2_107, %c2_108, %c0_109] : memref<10x10x128xbf16, #tpu.memory_space<vmem>>, vector<8x8x128xbf16>
    %88 = vector.shape_cast %87 : vector<8x8x128xbf16> to vector<64x128xbf16>
    %c0_110 = arith.constant 0 : index
    %c0_111 = arith.constant 0 : index
    %89 = vector.load %arg9[%c0_110, %c0_111] : memref<64x128xf32, #tpu.memory_space<vmem>>, vector<64x128xf32>
    %c8 = arith.constant 8 : index
    %c0_112 = arith.constant 0 : index
    %c0_113 = arith.constant 0 : index
    %90 = vector.load %arg5[%c8, %c0_112, %c0_113] : memref<9x128x128xbf16, #tpu.memory_space<vmem>>, vector<1x128x128xbf16>
    %91 = vector.shape_cast %90 : vector<1x128x128xbf16> to vector<128x128xbf16>
    %cst_114 = arith.constant dense<0.000000e+00> : vector<64x128xf32>
    %92 = tpu.matmul %88, %91, %cst_114 {dimension_numbers = #tpu.dot_dimension_numbers<[1], [0], [0], [1], [0, 0, 1, 1], [], []>} : vector<64x128xbf16>, vector<128x128xbf16>, vector<64x128xf32> -> vector<64x128xf32>
    %93 = arith.addf %89, %92 : vector<64x128xf32>
    %c0_115 = arith.constant 0 : index
    %c0_116 = arith.constant 0 : index
    %94 = vector.load %arg9[%c0_115, %c0_116] : memref<64x128xf32, #tpu.memory_space<vmem>>, vector<64x128xf32>
    tpu.vector_store %arg9[%c0_115, %c0_116], %93 {strides = array<i32>} : memref<64x128xf32, #tpu.memory_space<vmem>>, vector<64x128xf32>,
    %c0_117 = arith.constant 0 : index
    %c0_118 = arith.constant 0 : index
    %95 = vector.load %arg9[%c0_117, %c0_118] : memref<64x128xf32, #tpu.memory_space<vmem>>, vector<64x128xf32>
    %96 = arith.truncf %95 : vector<64x128xf32> to vector<64x128xbf16>
    %c0_119 = arith.constant 0 : index
    %c0_120 = arith.constant 0 : index
    %c0_121 = arith.constant 0 : index
    %97 = vector.load %arg6[%c0_119, %c0_120, %c0_121] : memref<1x64x128xbf16, #tpu.memory_space<vmem>>, vector<1x64x128xbf16>
    %98 = vector.shape_cast %97 : vector<1x64x128xbf16> to vector<64x128xbf16>
    %99 = vector.shape_cast %96 : vector<64x128xbf16> to vector<1x64x128xbf16>
    tpu.vector_store %arg6[%c0_119, %c0_120, %c0_121], %99 {strides = array<i32>} : memref<1x64x128xbf16, #tpu.memory_space<vmem>>, vector<1x64x128xbf16>,
    %cst_122 = arith.constant dense<0.000000e+00> : vector<128xf32>
    %100 = vector.multi_reduction <add>, %95, %cst_122 [0] : vector<64x128xf32> to vector<128xf32>
    %101 = vector.shape_cast %100 : vector<128xf32> to vector<1x128xf32>
    %c0_123 = arith.constant 0 : index
    %c0_124 = arith.constant 0 : index
    %c0_125 = arith.constant 0 : index
    %102 = vector.load %arg7[%c0_123, %c0_124, %c0_125] : memref<1x2x128xf32, #tpu.memory_space<vmem>>, vector<1x1x128xf32>
    %103 = vector.shape_cast %102 : vector<1x1x128xf32> to vector<1x128xf32>
    %104 = vector.shape_cast %101 : vector<1x128xf32> to vector<1x1x128xf32>
    tpu.vector_store %arg7[%c0_123, %c0_124, %c0_125], %104 {strides = array<i32>} : memref<1x2x128xf32, #tpu.memory_space<vmem>>, vector<1x1x128xf32>,
    %105 = arith.mulf %95, %95 : vector<64x128xf32>
    %cst_126 = arith.constant dense<0.000000e+00> : vector<128xf32>
    %106 = vector.multi_reduction <add>, %105, %cst_126 [0] : vector<64x128xf32> to vector<128xf32>
    %107 = vector.shape_cast %106 : vector<128xf32> to vector<1x128xf32>
    %c0_127 = arith.constant 0 : index
    %c1_128 = arith.constant 1 : index
    %c0_129 = arith.constant 0 : index
    %108 = vector.load %arg7[%c0_127, %c1_128, %c0_129] : memref<1x2x128xf32, #tpu.memory_space<vmem>>, vector<1x1x128xf32>
    %109 = vector.shape_cast %108 : vector<1x1x128xf32> to vector<1x128xf32>
    %110 = vector.shape_cast %107 : vector<1x128xf32> to vector<1x1x128xf32>
    tpu.vector_store %arg7[%c0_127, %c1_128, %c0_129], %110 {strides = array<i32>} : memref<1x2x128xf32, #tpu.memory_space<vmem>>, vector<1x1x128xf32>,
    return
  }
  func.func @transform_0(%arg0: i32, %arg1: i32) -> (i32, i32, i32, i32) {
    %c0_i32 = arith.constant 0 : i32
    %c0_i32_0 = arith.constant 0 : i32
    %c0_i32_1 = arith.constant 0 : i32
    %c0_i32_2 = arith.constant 0 : i32
    return %arg0, %c0_i32, %c0_i32_0, %c0_i32_1 : i32, i32, i32, i32
  }
  func.func @transform_1(%arg0: i32, %arg1: i32) -> (i32, i32) {
    %c0_i32 = arith.constant 0 : i32
    %c0_i32_0 = arith.constant 0 : i32
    %c0_i32_1 = arith.constant 0 : i32
    return %c0_i32, %c0_i32_0 : i32, i32
  }
  func.func @transform_2(%arg0: i32, %arg1: i32) -> (i32, i32) {
    %c0_i32 = arith.constant 0 : i32
    %c0_i32_0 = arith.constant 0 : i32
    %c0_i32_1 = arith.constant 0 : i32
    return %c0_i32, %c0_i32_0 : i32, i32
  }
  func.func @transform_3(%arg0: i32, %arg1: i32) -> (i32, i32, i32) {
    %c0_i32 = arith.constant 0 : i32
    %c0_i32_0 = arith.constant 0 : i32
    %c0_i32_1 = arith.constant 0 : i32
    return %c0_i32, %c0_i32_0, %arg1 : i32, i32, i32
  }
  func.func @transform_4(%arg0: i32, %arg1: i32) -> (i32, i32, i32) {
    %c0_i32 = arith.constant 0 : i32
    %c0_i32_0 = arith.constant 0 : i32
    return %arg0, %c0_i32, %arg1 : i32, i32, i32
  }
  func.func @transform_5(%arg0: i32, %arg1: i32) -> (i32, i32, i32) {
    %c0_i32 = arith.constant 0 : i32
    %c0_i32_0 = arith.constant 0 : i32
    return %arg0, %c0_i32, %arg1 : i32, i32, i32
  }
}

module attributes {stable_mosaic.version = 11 : i64} {
  func.func @_bn_add_relu_kernel(%arg0: i32, %arg1: memref<128x128xbf16, #tpu.memory_space<vmem>>, %arg2: memref<128x128xbf16, #tpu.memory_space<vmem>>, %arg3: memref<1x128xf32, #tpu.memory_space<vmem>>, %arg4: memref<1x128xf32, #tpu.memory_space<vmem>>, %arg5: memref<1x128xf32, #tpu.memory_space<vmem>>, %arg6: memref<1x128xf32, #tpu.memory_space<vmem>>, %arg7: memref<128x128xf32, #tpu.memory_space<vmem>>) attributes {dimension_semantics = [#tpu.dimension_semantics<parallel>], iteration_bounds = array<i64: 1>, scalar_prefetch = 0 : i64, scratch_operands = 0 : i64, tpu.core_type = #tpu.core_type<tc>, window_params = [{transform_indices = @transform_0, window_bounds = array<i64: 128, 128>}, {transform_indices = @transform_1, window_bounds = array<i64: 128, 128>}, {pipeline_mode = #tpu.pipeline_mode<synchronous>, transform_indices = @transform_2, window_bounds = array<i64: 1, 128>}, {pipeline_mode = #tpu.pipeline_mode<synchronous>, transform_indices = @transform_3, window_bounds = array<i64: 1, 128>}, {pipeline_mode = #tpu.pipeline_mode<synchronous>, transform_indices = @transform_4, window_bounds = array<i64: 1, 128>}, {pipeline_mode = #tpu.pipeline_mode<synchronous>, transform_indices = @transform_5, window_bounds = array<i64: 1, 128>}, {transform_indices = @transform_6, window_bounds = array<i64: 128, 128>}]} {
    %c0 = arith.constant 0 : index
    %c0_0 = arith.constant 0 : index
    %0 = vector.load %arg1[%c0, %c0_0] : memref<128x128xbf16, #tpu.memory_space<vmem>>, vector<128x128xbf16>
    %1 = arith.extf %0 : vector<128x128xbf16> to vector<128x128xf32>
    %c0_1 = arith.constant 0 : index
    %c0_2 = arith.constant 0 : index
    %2 = vector.load %arg3[%c0_1, %c0_2] : memref<1x128xf32, #tpu.memory_space<vmem>>, vector<1x128xf32>
    %3 = vector.broadcast %2 : vector<1x128xf32> to vector<128x128xf32>
    %4 = arith.mulf %1, %3 : vector<128x128xf32>
    %c0_3 = arith.constant 0 : index
    %c0_4 = arith.constant 0 : index
    %5 = vector.load %arg4[%c0_3, %c0_4] : memref<1x128xf32, #tpu.memory_space<vmem>>, vector<1x128xf32>
    %6 = vector.broadcast %5 : vector<1x128xf32> to vector<128x128xf32>
    %7 = arith.addf %4, %6 : vector<128x128xf32>
    %c0_5 = arith.constant 0 : index
    %c0_6 = arith.constant 0 : index
    %8 = vector.load %arg2[%c0_5, %c0_6] : memref<128x128xbf16, #tpu.memory_space<vmem>>, vector<128x128xbf16>
    %9 = arith.extf %8 : vector<128x128xbf16> to vector<128x128xf32>
    %c0_7 = arith.constant 0 : index
    %c0_8 = arith.constant 0 : index
    %10 = vector.load %arg5[%c0_7, %c0_8] : memref<1x128xf32, #tpu.memory_space<vmem>>, vector<1x128xf32>
    %11 = vector.broadcast %10 : vector<1x128xf32> to vector<128x128xf32>
    %12 = arith.mulf %9, %11 : vector<128x128xf32>
    %c0_9 = arith.constant 0 : index
    %c0_10 = arith.constant 0 : index
    %13 = vector.load %arg6[%c0_9, %c0_10] : memref<1x128xf32, #tpu.memory_space<vmem>>, vector<1x128xf32>
    %14 = vector.broadcast %13 : vector<1x128xf32> to vector<128x128xf32>
    %15 = arith.addf %12, %14 : vector<128x128xf32>
    %16 = arith.addf %7, %15 : vector<128x128xf32>
    %cst = arith.constant 0.000000e+00 : f32
    %17 = vector.broadcast %cst : f32 to vector<128x128xf32>
    %18 = arith.maximumf %16, %17 : vector<128x128xf32>
    %c0_11 = arith.constant 0 : index
    %c0_12 = arith.constant 0 : index
    %19 = vector.load %arg7[%c0_11, %c0_12] : memref<128x128xf32, #tpu.memory_space<vmem>>, vector<128x128xf32>
    tpu.vector_store %arg7[%c0_11, %c0_12], %18 {strides = array<i32>} : memref<128x128xf32, #tpu.memory_space<vmem>>, vector<128x128xf32>,
    return
  }
  func.func @transform_0(%arg0: i32) -> (i32, i32) {
    %c0_i32 = arith.constant 0 : i32
    %c0_i32_0 = arith.constant 0 : i32
    return %arg0, %c0_i32 : i32, i32
  }
  func.func @transform_1(%arg0: i32) -> (i32, i32) {
    %c0_i32 = arith.constant 0 : i32
    %c0_i32_0 = arith.constant 0 : i32
    return %arg0, %c0_i32 : i32, i32
  }
  func.func @transform_2(%arg0: i32) -> (i32, i32) {
    %c0_i32 = arith.constant 0 : i32
    %c0_i32_0 = arith.constant 0 : i32
    %c0_i32_1 = arith.constant 0 : i32
    return %c0_i32, %c0_i32_0 : i32, i32
  }
  func.func @transform_3(%arg0: i32) -> (i32, i32) {
    %c0_i32 = arith.constant 0 : i32
    %c0_i32_0 = arith.constant 0 : i32
    %c0_i32_1 = arith.constant 0 : i32
    return %c0_i32, %c0_i32_0 : i32, i32
  }
  func.func @transform_4(%arg0: i32) -> (i32, i32) {
    %c0_i32 = arith.constant 0 : i32
    %c0_i32_0 = arith.constant 0 : i32
    %c0_i32_1 = arith.constant 0 : i32
    return %c0_i32, %c0_i32_0 : i32, i32
  }
  func.func @transform_5(%arg0: i32) -> (i32, i32) {
    %c0_i32 = arith.constant 0 : i32
    %c0_i32_0 = arith.constant 0 : i32
    %c0_i32_1 = arith.constant 0 : i32
    return %c0_i32, %c0_i32_0 : i32, i32
  }
  func.func @transform_6(%arg0: i32) -> (i32, i32) {
    %c0_i32 = arith.constant 0 : i32
    %c0_i32_0 = arith.constant 0 : i32
    return %arg0, %c0_i32 : i32, i32
  }
}

</mosaic_0001>

<llo_original>
// kernel: basic_block_forward.5
$region0: #{basic_block_forward.5}
  #allocation0 [shape = 'u32[]', space=smem, size = 0x4, offset = 0x4, fixed_abs, tag = 'smem constant byte address 0x4 - core index']
  #allocation1 [shape = 'u32[144,128]{1,0:T(1,128)}', space=vmem, size = 0x12000, scoped, tag = 'internal scratch']
  %s0 = inlined_call_operand.vmem [shape: bf16[128,128], index: 0, kind: input, shape index: {}]
  %s1 = inlined_call_operand.vmem [shape: bf16[128,128], index: 1, kind: input, shape index: {}]
  %s2 = inlined_call_operand.vmem [shape: f32[1,128], index: 2, kind: input, shape index: {}]
  %s3 = inlined_call_operand.vmem [shape: f32[1,128], index: 3, kind: input, shape index: {}]
  %s4 = inlined_call_operand.vmem [shape: f32[1,128], index: 4, kind: input, shape index: {}]
  %s5 = inlined_call_operand.vmem [shape: f32[1,128], index: 5, kind: input, shape index: {}]
  %s6 = inlined_call_operand.vmem [shape: f32[128,128], index: 6, kind: output, shape index: {}]
  %s7 = sld [smem:[#allocation0]]
  $region34: #{basic_block_forward.5} parent=0
    _
  %s9 = ssub.s32 1, %s7
  %s10 = scalar_select 0, %s9, %s7
  // Predicated region
  $region2: #{basic_block_forward.5} parent=0 // pred_check
    _
  $region3: #{basic_block_forward.5} parent=0 // pred_check_branch
    %12 = sbr.rel (0) target = $region5
  $region4: #{basic_block_forward.5} parent=0 // pred_region
    _
  $region5: #{basic_block_forward.5} parent=0 // pred_fallthru
    _
  // Predicated region
  $region6: #{basic_block_forward.5} parent=0 // pred_check
    _
  $region7: #{basic_block_forward.5} parent=0 // pred_check_branch
    %14 = sbr.rel (0) target = $region9
  $region8: #{basic_block_forward.5} parent=0 // pred_region
    _
  $region9: #{basic_block_forward.5} parent=0 // pred_fallthru
    _
  // Predicated region
  $region10: #{basic_block_forward.5} parent=0 // pred_check
    _
  $region11: #{basic_block_forward.5} parent=0 // pred_check_branch
    %16 = sbr.rel (0) target = $region13
  $region12: #{basic_block_forward.5} parent=0 // pred_region
    _
  $region13: #{basic_block_forward.5} parent=0 // pred_fallthru
    _
  // Predicated region
  $region14: #{basic_block_forward.5} parent=0 // pred_check
    _
  $region15: #{basic_block_forward.5} parent=0 // pred_check_branch
    %18 = sbr.rel (0) target = $region17
  $region16: #{basic_block_forward.5} parent=0 // pred_region
    _
  $region17: #{basic_block_forward.5} parent=0 // pred_fallthru
    _
  // Predicated region
  $region18: #{basic_block_forward.5} parent=0 // pred_check
    _
  $region19: #{basic_block_forward.5} parent=0 // pred_check_branch
    %20 = sbr.rel (0) target = $region21
  $region20: #{basic_block_forward.5} parent=0 // pred_region
    _
  $region21: #{basic_block_forward.5} parent=0 // pred_fallthru
    _
  // Predicated region
  $region22: #{basic_block_forward.5} parent=0 // pred_check
    _
  $region23: #{basic_block_forward.5} parent=0 // pred_check_branch
    %22 = sbr.rel (0) target = $region25
  $region24: #{basic_block_forward.5} parent=0 // pred_region
    _
  $region25: #{basic_block_forward.5} parent=0 // pred_fallthru
    _
  %v23 = vld [vmem:[%s0] sm:$0xf]
  %v24 = vld [vmem:[%s0 + $0x4] sm:$0xf]
  %v25 = vld [vmem:[%s0 + $0x8] sm:$0xf]
  %v26 = vld [vmem:[%s0 + $0xc] sm:$0xf]
  %v27 = vld [vmem:[%s0 + $0x10] sm:$0xf]
  %v28 = vld [vmem:[%s0 + $0x14] sm:$0xf]
  %v29 = vld [vmem:[%s0 + $0x18] sm:$0xf]
  %v30 = vld [vmem:[%s0 + $0x1c] sm:$0xf]
  %v31 = vld [vmem:[%s0 + $0x20] sm:$0xf]
  %v32 = vld [vmem:[%s0 + $0x24] sm:$0xf]
  %v33 = vld [vmem:[%s0 + $0x28] sm:$0xf]
  %v34 = vld [vmem:[%s0 + $0x2c] sm:$0xf]
  %v35 = vld [vmem:[%s0 + $0x30] sm:$0xf]
  %v36 = vld [vmem:[%s0 + $0x34] sm:$0xf]
  %v37 = vld [vmem:[%s0 + $0x38] sm:$0xf]
  %v38 = vld [vmem:[%s0 + $0x3c] sm:$0xf]
  %v39 = vunpack.c.l.bf16 %v23
  %v40 = vunpack.c.l.bf16 %v24
  %v41 = vunpack.c.l.bf16 %v25
  %v42 = vunpack.c.l.bf16 %v26
  %v43 = vunpack.c.l.bf16 %v27
  %v44 = vunpack.c.l.bf16 %v28
  %v45 = vunpack.c.l.bf16 %v29
  %v46 = vunpack.c.l.bf16 %v30
  %v47 = vunpack.c.l.bf16 %v31
  %v48 = vunpack.c.l.bf16 %v32
  %v49 = vunpack.c.l.bf16 %v33
  %v50 = vunpack.c.l.bf16 %v34
  %v51 = vunpack.c.l.bf16 %v35
  %v52 = vunpack.c.l.bf16 %v36
  %v53 = vunpack.c.l.bf16 %v37
  %v54 = vunpack.c.l.bf16 %v38
  %v55 = vld [vmem:[%s2] sm:$0x1]
  %v57 = vlaneseq
  %v58 = vshrl.u32 %v57, 7
  %v59 = vsub.s32 0, %v58
  %v60 = vrot.slane %v55, %v59
  %v62 = vmul.f32 %v39, %v60
  %v63 = vmul.f32 %v40, %v60
  %v64 = vmul.f32 %v41, %v60
  %v65 = vmul.f32 %v42, %v60
  %v66 = vmul.f32 %v43, %v60
  %v67 = vmul.f32 %v44, %v60
  %v68 = vmul.f32 %v45, %v60
  %v69 = vmul.f32 %v46, %v60
  %v70 = vmul.f32 %v47, %v60
  %v71 = vmul.f32 %v48, %v60
  %v72 = vmul.f32 %v49, %v60
  %v73 = vmul.f32 %v50, %v60
  %v74 = vmul.f32 %v51, %v60
  %v75 = vmul.f32 %v52, %v60
  %v76 = vmul.f32 %v53, %v60
  %v77 = vmul.f32 %v54, %v60
  %v78 = vld [vmem:[%s3] sm:$0x1]
  %v80 = vlaneseq
  %v81 = vshrl.u32 %v80, 7
  %v82 = vsub.s32 0, %v81
  %v83 = vrot.slane %v78, %v82
  %v85 = vadd.f32 %v62, %v83
  %v86 = vadd.f32 %v63, %v83
  %v87 = vadd.f32 %v64, %v83
  %v88 = vadd.f32 %v65, %v83
  %v89 = vadd.f32 %v66, %v83
  %v90 = vadd.f32 %v67, %v83
  %v91 = vadd.f32 %v68, %v83
  %v92 = vadd.f32 %v69, %v83
  %v93 = vadd.f32 %v70, %v83
  %v94 = vadd.f32 %v71, %v83
  %v95 = vadd.f32 %v72, %v83
  %v96 = vadd.f32 %v73, %v83
  %v97 = vadd.f32 %v74, %v83
  %v98 = vadd.f32 %v75, %v83
  %v99 = vadd.f32 %v76, %v83
  %v100 = vadd.f32 %v77, %v83
  %v101 = vld [vmem:[%s1] sm:$0xf]
  %v102 = vld [vmem:[%s1 + $0x4] sm:$0xf]
  %v103 = vld [vmem:[%s1 + $0x8] sm:$0xf]
  %v104 = vld [vmem:[%s1 + $0xc] sm:$0xf]
  %v105 = vld [vmem:[%s1 + $0x10] sm:$0xf]
  %v106 = vld [vmem:[%s1 + $0x14] sm:$0xf]
  %v107 = vld [vmem:[%s1 + $0x18] sm:$0xf]
  %v108 = vld [vmem:[%s1 + $0x1c] sm:$0xf]
  %v109 = vld [vmem:[%s1 + $0x20] sm:$0xf]
  %v110 = vld [vmem:[%s1 + $0x24] sm:$0xf]
  %v111 = vld [vmem:[%s1 + $0x28] sm:$0xf]
  %v112 = vld [vmem:[%s1 + $0x2c] sm:$0xf]
  %v113 = vld [vmem:[%s1 + $0x30] sm:$0xf]
  %v114 = vld [vmem:[%s1 + $0x34] sm:$0xf]
  %v115 = vld [vmem:[%s1 + $0x38] sm:$0xf]
  %v116 = vld [vmem:[%s1 + $0x3c] sm:$0xf]
  %v117 = vunpack.c.l.bf16 %v101
  %v118 = vunpack.c.l.bf16 %v102
  %v119 = vunpack.c.l.bf16 %v103
  %v120 = vunpack.c.l.bf16 %v104
  %v121 = vunpack.c.l.bf16 %v105
  %v122 = vunpack.c.l.bf16 %v106
  %v123 = vunpack.c.l.bf16 %v107
  %v124 = vunpack.c.l.bf16 %v108
  %v125 = vunpack.c.l.bf16 %v109
  %v126 = vunpack.c.l.bf16 %v110
  %v127 = vunpack.c.l.bf16 %v111
  %v128 = vunpack.c.l.bf16 %v112
  %v129 = vunpack.c.l.bf16 %v113
  %v130 = vunpack.c.l.bf16 %v114
  %v131 = vunpack.c.l.bf16 %v115
  %v132 = vunpack.c.l.bf16 %v116
  %v133 = vld [vmem:[%s4] sm:$0x1]
  %v135 = vlaneseq
  %v136 = vshrl.u32 %v135, 7
  %v137 = vsub.s32 0, %v136
  %v138 = vrot.slane %v133, %v137
  %v140 = vmul.f32 %v117, %v138
  %v141 = vmul.f32 %v118, %v138
  %v142 = vmul.f32 %v119, %v138
  %v143 = vmul.f32 %v120, %v138
  %v144 = vmul.f32 %v121, %v138
  %v145 = vmul.f32 %v122, %v138
  %v146 = vmul.f32 %v123, %v138
  %v147 = vmul.f32 %v124, %v138
  %v148 = vmul.f32 %v125, %v138
  %v149 = vmul.f32 %v126, %v138
  %v150 = vmul.f32 %v127, %v138
  %v151 = vmul.f32 %v128, %v138
  %v152 = vmul.f32 %v129, %v138
  %v153 = vmul.f32 %v130, %v138
  %v154 = vmul.f32 %v131, %v138
  %v155 = vmul.f32 %v132, %v138
  %v156 = vld [vmem:[%s5] sm:$0x1]
  %v158 = vlaneseq
  %v159 = vshrl.u32 %v158, 7
  %v160 = vsub.s32 0, %v159
  %v161 = vrot.slane %v156, %v160
  %v163 = vadd.f32 %v140, %v161
  %v164 = vadd.f32 %v141, %v161
  %v165 = vadd.f32 %v142, %v161
  %v166 = vadd.f32 %v143, %v161
  %v167 = vadd.f32 %v144, %v161
  %v168 = vadd.f32 %v145, %v161
  %v169 = vadd.f32 %v146, %v161
  %v170 = vadd.f32 %v147, %v161
  %v171 = vadd.f32 %v148, %v161
  %v172 = vadd.f32 %v149, %v161
  %v173 = vadd.f32 %v150, %v161
  %v174 = vadd.f32 %v151, %v161
  %v175 = vadd.f32 %v152, %v161
  %v176 = vadd.f32 %v153, %v161
  %v177 = vadd.f32 %v154, %v161
  %v178 = vadd.f32 %v155, %v161
  %v179 = vadd.f32 %v85, %v163
  %v180 = vadd.f32 %v86, %v164
  %v181 = vadd.f32 %v87, %v165
  %v182 = vadd.f32 %v88, %v166
  %v183 = vadd.f32 %v89, %v167
  %v184 = vadd.f32 %v90, %v168
  %v185 = vadd.f32 %v91, %v169
  %v186 = vadd.f32 %v92, %v170
  %v187 = vadd.f32 %v93, %v171
  %v188 = vadd.f32 %v94, %v172
  %v189 = vadd.f32 %v95, %v173
  %v190 = vadd.f32 %v96, %v174
  %v191 = vadd.f32 %v97, %v175
  %v192 = vadd.f32 %v98, %v176
  %v193 = vadd.f32 %v99, %v177
  %v194 = vadd.f32 %v100, %v178
  %v195 = vmax.f32 %v179, 0.0
  %v196 = vmax.f32 %v180, 0.0
  %v197 = vmax.f32 %v181, 0.0
  %v198 = vmax.f32 %v182, 0.0
  %v199 = vmax.f32 %v183, 0.0
  %v200 = vmax.f32 %v184, 0.0
  %v201 = vmax.f32 %v185, 0.0
  %v202 = vmax.f32 %v186, 0.0
  %v203 = vmax.f32 %v187, 0.0
  %v204 = vmax.f32 %v188, 0.0
  %v205 = vmax.f32 %v189, 0.0
  %v206 = vmax.f32 %v190, 0.0
  %v207 = vmax.f32 %v191, 0.0
  %v208 = vmax.f32 %v192, 0.0
  %v209 = vmax.f32 %v193, 0.0
  %v210 = vmax.f32 %v194, 0.0
  %211 = vst [vmem:[%s6] sm:$0xff] %v195
  %212 = vst [vmem:[%s6 + $0x8] sm:$0xff] %v196
  %213 = vst [vmem:[%s6 + $0x10] sm:$0xff] %v197
  %214 = vst [vmem:[%s6 + $0x18] sm:$0xff] %v198
  %215 = vst [vmem:[%s6 + $0x20] sm:$0xff] %v199
  %216 = vst [vmem:[%s6 + $0x28] sm:$0xff] %v200
  %217 = vst [vmem:[%s6 + $0x30] sm:$0xff] %v201
  %218 = vst [vmem:[%s6 + $0x38] sm:$0xff] %v202
  %219 = vst [vmem:[%s6 + $0x40] sm:$0xff] %v203
  %220 = vst [vmem:[%s6 + $0x48] sm:$0xff] %v204
  %221 = vst [vmem:[%s6 + $0x50] sm:$0xff] %v205
  %222 = vst [vmem:[%s6 + $0x58] sm:$0xff] %v206
  %223 = vst [vmem:[%s6 + $0x60] sm:$0xff] %v207
  %224 = vst [vmem:[%s6 + $0x68] sm:$0xff] %v208
  %225 = vst [vmem:[%s6 + $0x70] sm:$0xff] %v209
  %226 = vst [vmem:[%s6 + $0x78] sm:$0xff] %v210
  // Predicated region
  $region26: #{basic_block_forward.5} parent=0 // pred_check
    _
  $region27: #{basic_block_forward.5} parent=0 // pred_check_branch
    %228 = sbr.rel (0) target = $region29
  $region28: #{basic_block_forward.5} parent=0 // pred_region
    _
  $region29: #{basic_block_forward.5} parent=0 // pred_fallthru
    _
  // Predicated region
  $region30: #{basic_block_forward.5} parent=0 // pred_check
    _
  $region31: #{basic_block_forward.5} parent=0 // pred_check_branch
    %230 = sbr.rel (0) target = $region33
  $region32: #{basic_block_forward.5} parent=0 // pred_region
    _
  $region33: #{basic_block_forward.5} parent=0 // pred_fallthru
    _

// kernel: basic_block_forward.3
$region0: #{basic_block_forward.3}
  #allocation0 [shape = 'u32[]', space=smem, size = 0x4, offset = 0x4, fixed_abs, tag = 'smem constant byte address 0x4 - core index']
  #allocation1 [shape = 'u32[144,128]{1,0:T(1,128)}', space=vmem, size = 0x12000, scoped, tag = 'internal scratch']
  #allocation2 [shape = 'f32[64,128]{1,0:T(8,128)}', space=vmem, size = 0x8000, scoped, tag = 'scratch operand']
  %s0 = inlined_call_operand.vmem [shape: bf16[8,9,9,128], index: 0, kind: input, shape index: {}]
  %s1 = inlined_call_operand.vmem [shape: bf16[9,128,128], index: 1, kind: input, shape index: {}]
  %s2 = inlined_call_operand.vmem [shape: bf16[128,128], index: 2, kind: input, shape index: {}]
  %s3 = inlined_call_operand.vmem [shape: bf16[2,64,128], index: 3, kind: output, shape index: {0}]
  %s4 = inlined_call_operand.vmem [shape: bf16[2,64,128], index: 4, kind: output, shape index: {1}]
  %s5 = inlined_call_operand.vmem [shape: f32[2,4,128], index: 5, kind: output, shape index: {2}]
  %6 = xla_tuple %s3, %s4, %s5
  %s7 = sld [smem:[#allocation0]]
  $region61: #{basic_block_forward.3} parent=0
    _
  %s9 = ssub.s32 1, %s7
  %s10 = scalar_select 0, %s9, %s7
  loop: start=0, step=1, limit=4
  $region2: #{basic_block_forward.3} parent=0 // loop_pre_header
    _
  $region3: #{basic_block_forward.3} parent=0 // loop_header
    %s12 = sphi 0, %s16
    %p13 = scmp.ge.s32.totalorder %s12, 4
    %s19 = sphi 0, %s31
    %s20 = sphi 0, %s27
    %s21 = sphi 0, %s19
    %s22 = sphi 0, %s20
    %s23 = sphi 0, %s21
    %s24 = sphi 0, %s22
    %s34 = sphi 0, %s36
    %s37 = sphi 0, %s34
    %s38 = sphi 0, %s37
    %s54 = sphi 0, %s38
    %s60 = sphi 0, %s62
    %s63 = sphi 0, %s60
    %s64 = sphi 0, %s63
    %s80 = sphi 0, %s64
    %s86 = sphi 0, %s88
    %s89 = sphi 0, %s86
    %s90 = sphi 0, %s89
    %s106 = sphi 0, %s90
    %s114 = sphi 0, %s116
    %s117 = sphi 0, %s114
    %s118 = sphi 0, %s117
    %s134 = sphi 0, %s118
    %s142 = sphi 0, %s144
    %s145 = sphi 0, %s142
    %s146 = sphi 0, %s145
    %s162 = sphi 0, %s146
    %s170 = sphi 0, %s172
    %s173 = sphi 0, %s170
    %s174 = sphi 0, %s173
    %s190 = sphi 0, %s174
  $region4: #{basic_block_forward.3} parent=0 // loop_header_branch
    %15 = sbr.rel (%p13) target = $region8
  $region5: #{basic_block_forward.3} parent=0 // loop_body
    %s17 = ssub.s32 %s12, 1
    %s18 = ssub.s32 %s12, 2
    %s25 = sadd.s32 1, %s20
    %p26 = scmp.ge.s32.totalorder %s25, 1
    %s27 = scalar_select %p26, 0, %s25
    %s28 = sadd.s32 1, %s19
    %s29 = scalar_select %p26, %s28, %s19
    %p30 = scmp.ge.s32.totalorder %s29, 2
    %s31 = scalar_select %p30, 0, %s29
    %s32 = ssub.s32 %s19, %s31
    %p33 = scmp.eq.s32.totalorder %s32, 0
    %s35 = sadd.s32 %s34, 1
    %s36 = scalar_select %p33, %s34, %s35
    %p39 = pneg %p33
    %p40 = scmp.eq.s32.totalorder %s12, 1
    %p41 = por %p39, %p40
    %p42 = scmp.ne.s32.totalorder %s34, %s37
    %p43 = scmp.eq.s32.totalorder %s12, 0
    %p44 = por %p42, %p43
    %p45 = scmp.ne.s32.totalorder %s34, %s37
    %p46 = scmp.eq.s32.totalorder %s17, 1
    %p47 = por %p45, %p46
    %p48 = scmp.ne.s32.totalorder %s37, %s38
    %p49 = scmp.eq.s32.totalorder %s17, 0
    %p50 = por %p48, %p49
    %p51 = scmp.ne.s32.totalorder %s37, %s38
    %p52 = scmp.eq.s32.totalorder %s18, 1
    %p53 = por %p51, %p52
    %p55 = scmp.ne.s32.totalorder %s38, %s54
    %p56 = scmp.eq.s32.totalorder %s18, 0
    %p57 = por %p55, %p56
    %s58 = ssub.s32 %s20, %s27
    %p59 = scmp.eq.s32.totalorder %s58, 0
    %s61 = sadd.s32 %s60, 1
    %s62 = scalar_select %p59, %s60, %s61
    %p65 = pneg %p59
    %p66 = scmp.eq.s32.totalorder %s12, 1
    %p67 = por %p65, %p66
    %p68 = scmp.ne.s32.totalorder %s60, %s63
    %p69 = scmp.eq.s32.totalorder %s12, 0
    %p70 = por %p68, %p69
    %p71 = scmp.ne.s32.totalorder %s60, %s63
    %p72 = scmp.eq.s32.totalorder %s17, 1
    %p73 = por %p71, %p72
    %p74 = scmp.ne.s32.totalorder %s63, %s64
    %p75 = scmp.eq.s32.totalorder %s17, 0
    %p76 = por %p74, %p75
    %p77 = scmp.ne.s32.totalorder %s63, %s64
    %p78 = scmp.eq.s32.totalorder %s18, 1
    %p79 = por %p77, %p78
    %p81 = scmp.ne.s32.totalorder %s64, %s80
    %p82 = scmp.eq.s32.totalorder %s18, 0
    %p83 = por %p81, %p82
    %s84 = ssub.s32 %s20, %s27
    %p85 = scmp.eq.s32.totalorder %s84, 0
    %s87 = sadd.s32 %s86, 1
    %s88 = scalar_select %p85, %s86, %s87
    %p91 = pneg %p85
    %p92 = scmp.eq.s32.totalorder %s12, 1
    %p93 = por %p91, %p92
    %p94 = scmp.ne.s32.totalorder %s86, %s89
    %p95 = scmp.eq.s32.totalorder %s12, 0
    %p96 = por %p94, %p95
    %p97 = scmp.ne.s32.totalorder %s86, %s89
    %p98 = scmp.eq.s32.totalorder %s17, 1
    %p99 = por %p97, %p98
    %p100 = scmp.ne.s32.totalorder %s89, %s90
    %p101 = scmp.eq.s32.totalorder %s17, 0
    %p102 = por %p100, %p101
    %p103 = scmp.ne.s32.totalorder %s89, %s90
    %p104 = scmp.eq.s32.totalorder %s18, 1
    %p105 = por %p103, %p104
    %p107 = scmp.ne.s32.totalorder %s90, %s106
    %p108 = scmp.eq.s32.totalorder %s18, 0
    %p109 = por %p107, %p108
    %s110 = ssub.s32 %s19, %s31
    %s111 = ssub.s32 %s20, %s27
    %s112 = sor.u32 %s110, %s111
    %p113 = scmp.eq.s32.totalorder %s112, 0
    %s115 = sadd.s32 %s114, 1
    %s116 = scalar_select %p113, %s114, %s115
    %p119 = pneg %p113
    %p120 = scmp.eq.s32.totalorder %s12, 1
    %p121 = por %p119, %p120
    %p122 = scmp.ne.s32.totalorder %s114, %s117
    %p123 = scmp.eq.s32.totalorder %s12, 0
    %p124 = por %p122, %p123
    %p125 = scmp.ne.s32.totalorder %s114, %s117
    %p126 = scmp.eq.s32.totalorder %s17, 1
    %p127 = por %p125, %p126
    %p128 = scmp.ne.s32.totalorder %s117, %s118
    %p129 = scmp.eq.s32.totalorder %s17, 0
    %p130 = por %p128, %p129
    %p131 = scmp.ne.s32.totalorder %s117, %s118
    %p132 = scmp.eq.s32.totalorder %s18, 1
    %p133 = por %p131, %p132
    %p135 = scmp.ne.s32.totalorder %s118, %s134
    %p136 = scmp.eq.s32.totalorder %s18, 0
    %p137 = por %p135, %p136
    %s138 = ssub.s32 %s19, %s31
    %s139 = ssub.s32 %s20, %s27
    %s140 = sor.u32 %s138, %s139
    %p141 = scmp.eq.s32.totalorder %s140, 0
    %s143 = sadd.s32 %s142, 1
    %s144 = scalar_select %p141, %s142, %s143
    %p147 = pneg %p141
    %p148 = scmp.eq.s32.totalorder %s12, 1
    %p149 = por %p147, %p148
    %p150 = scmp.ne.s32.totalorder %s142, %s145
    %p151 = scmp.eq.s32.totalorder %s12, 0
    %p152 = por %p150, %p151
    %p153 = scmp.ne.s32.totalorder %s142, %s145
    %p154 = scmp.eq.s32.totalorder %s17, 1
    %p155 = por %p153, %p154
    %p156 = scmp.ne.s32.totalorder %s145, %s146
    %p157 = scmp.eq.s32.totalorder %s17, 0
    %p158 = por %p156, %p157
    %p159 = scmp.ne.s32.totalorder %s145, %s146
    %p160 = scmp.eq.s32.totalorder %s18, 1
    %p161 = por %p159, %p160
    %p163 = scmp.ne.s32.totalorder %s146, %s162
    %p164 = scmp.eq.s32.totalorder %s18, 0
    %p165 = por %p163, %p164
    %s166 = ssub.s32 %s19, %s31
    %s167 = ssub.s32 %s20, %s27
    %s168 = sor.u32 %s166, %s167
    %p169 = scmp.eq.s32.totalorder %s168, 0
    %s171 = sadd.s32 %s170, 1
    %s172 = scalar_select %p169, %s170, %s171
    %p175 = pneg %p169
    %p176 = scmp.eq.s32.totalorder %s12, 1
    %p177 = por %p175, %p176
    %p178 = scmp.ne.s32.totalorder %s170, %s173
    %p179 = scmp.eq.s32.totalorder %s12, 0
    %p180 = por %p178, %p179
    %p181 = scmp.ne.s32.totalorder %s170, %s173
    %p182 = scmp.eq.s32.totalorder %s17, 1
    %p183 = por %p181, %p182
    %p184 = scmp.ne.s32.totalorder %s173, %s174
    %p185 = scmp.eq.s32.totalorder %s17, 0
    %p186 = por %p184, %p185
    %p187 = scmp.ne.s32.totalorder %s173, %s174
    %p188 = scmp.eq.s32.totalorder %s18, 1
    %p189 = por %p187, %p188
    %p191 = scmp.ne.s32.totalorder %s174, %s190
    %p192 = scmp.eq.s32.totalorder %s18, 0
    %p193 = por %p191, %p192
    %p194 = scmp.le.s32.totalorder 1, %s12
    %p195 = scmp.lt.s32.totalorder %s12, 3
    %p196 = pnand %p194, %p195
    %p197 = pneg %p196
    // Predicated region
    $region9: #{basic_block_forward.3} parent=5 // pred_check
      _
    $region10: #{basic_block_forward.3} parent=5 // pred_check_branch
      %199 = sbr.rel (%p196) target = $region12
    $region11: #{basic_block_forward.3} parent=5 // pred_region
      %s200 = ssub.s32 %s12, 1
      // Predicated region
      $region13: #{basic_block_forward.3} parent=11 // pred_check
        %p201 = pneg %p76
      $region14: #{basic_block_forward.3} parent=11 // pred_check_branch
        %203 = sbr.rel (%p201) target = $region16
      $region15: #{basic_block_forward.3} parent=11 // pred_region
        %p204 = scmp.lt.s32.totalorder %s22, 0
        %s205 = scalar_select %p204, %s22, 0
        %s206 = smul.addr %s205, 4
        %s207 = scalar_lea.vmem %s1, %s206
      $region16: #{basic_block_forward.3} parent=11 // pred_fallthru
        _
      // Predicated region
      $region17: #{basic_block_forward.3} parent=11 // pred_check
        %p208 = pneg %p102
      $region18: #{basic_block_forward.3} parent=11 // pred_check_branch
        %210 = sbr.rel (%p208) target = $region20
      $region19: #{basic_block_forward.3} parent=11 // pred_region
        %p211 = scmp.lt.s32.totalorder %s22, 0
        %s212 = scalar_select %p211, %s22, 0
        %s213 = smul.addr %s212, 4
        %s214 = scalar_lea.vmem %s2, %s213
      $region20: #{basic_block_forward.3} parent=11 // pred_fallthru
        _
    $region12: #{basic_block_forward.3} parent=5 // pred_fallthru
      _
    %p215 = scmp.lt.s32.totalorder %s12, 2
    // Predicated region
    $region21: #{basic_block_forward.3} parent=5 // pred_check
      %p216 = pneg %p215
    $region22: #{basic_block_forward.3} parent=5 // pred_check_branch
      %218 = sbr.rel (%p216) target = $region24
    $region23: #{basic_block_forward.3} parent=5 // pred_region
      // Predicated region
      $region25: #{basic_block_forward.3} parent=23 // pred_check
        %p219 = pneg %p44
      $region26: #{basic_block_forward.3} parent=23 // pred_check_branch
        %221 = sbr.rel (%p219) target = $region28
      $region27: #{basic_block_forward.3} parent=23 // pred_region
        %s222 = smul.u32 4, %s19
        %p223 = scmp.lt.s32.totalorder %s222, 7
        %s224 = scalar_select %p223, %s222, 7
        %s225 = smul.addr %s224, 18
        %s226 = smul.addr %s225, 4
        %s227 = scalar_lea.vmem %s0, %s226
        %s228 = smul.u32 4, %s19
      $region28: #{basic_block_forward.3} parent=23 // pred_fallthru
        _
    $region24: #{basic_block_forward.3} parent=5 // pred_fallthru
      _
    %p229 = scmp.le.s32.totalorder 1, %s12
    %p230 = scmp.lt.s32.totalorder %s12, 3
    %p231 = pnand %p229, %p230
    %p232 = pneg %p231
    // Predicated region
    $region29: #{basic_block_forward.3} parent=5 // pred_check
      _
    $region30: #{basic_block_forward.3} parent=5 // pred_check_branch
      %234 = sbr.rel (%p231) target = $region32
    $region31: #{basic_block_forward.3} parent=5 // pred_region
      %s235 = ssub.s32 %s12, 1
      %s236 = smul.u32 4, %s21
      %p237 = scmp.lt.s32.totalorder %s236, 7
      %s238 = scalar_select %p237, %s236, 7
      %s239 = smul.addr %s238, 18
      %s240 = smul.addr %s239, 4
      %s241 = scalar_lea.vmem %s0, %s240
      %p242 = pneg %p50
      %p243 = pneg %p47
      %p244 = scmp.lt.s32.totalorder %s22, 0
      %s245 = scalar_select %p244, %s22, 0
      %s246 = smul.addr %s245, 4
      %s247 = scalar_lea.vmem %s1, %s246
      %p248 = pneg %p76
      %p249 = pneg %p73
      %p250 = scmp.lt.s32.totalorder %s22, 0
      %s251 = scalar_select %p250, %s22, 0
      %s252 = smul.addr %s251, 4
      %s253 = scalar_lea.vmem %s2, %s252
      %p254 = pneg %p102
      %p255 = pneg %p99
      %p256 = pneg %p130
      %p257 = pneg %p127
      %p258 = scmp.lt.s32.totalorder %s21, 1
      %s259 = scalar_select %p258, %s21, 1
      %p260 = scmp.lt.s32.totalorder %s22, 0
      %s261 = scalar_select %p260, %s22, 0
      %s262 = smul.addr %s259, 8
      %s263 = sadd.s32 %s261, %s262
      %s264 = smul.addr %s263, 4
      %s265 = scalar_lea.vmem %s3, %s264
      %p266 = pneg %p158
      %p267 = pneg %p155
      %p268 = scmp.lt.s32.totalorder %s21, 1
      %s269 = scalar_select %p268, %s21, 1
      %p270 = scmp.lt.s32.totalorder %s22, 0
      %s271 = scalar_select %p270, %s22, 0
      %s272 = smul.addr %s269, 8
      %s273 = sadd.s32 %s271, %s272
      %s274 = smul.addr %s273, 4
      %s275 = scalar_lea.vmem %s4, %s274
      %p276 = pneg %p186
      %p277 = pneg %p183
      %p278 = scmp.lt.s32.totalorder %s21, 1
      %s279 = scalar_select %p278, %s21, 1
      %p280 = scmp.lt.s32.totalorder %s22, 0
      %s281 = scalar_select %p280, %s22, 0
      %s282 = sadd.s32 %s281, %s279
      %s283 = smul.addr %s282, 4
      %s284 = scalar_lea.vmem %s5, %s283
      %s285 = smul.u32 4, %s21
      %p286 = scmp.lt.s32.totalorder %s285, 7
      %s287 = scalar_select %p286, %s285, 7
      %s288 = smul.addr %s287, 18
      %s289 = smul.addr %s288, 4
      %s290 = scalar_lea.vmem %s0, %s289
      %s291 = smul.u32 4, %s21
      %p292 = scmp.lt.s32.totalorder %s22, 0
      %s293 = scalar_select %p292, %s22, 0
      %s294 = smul.addr %s293, 4
      %s295 = scalar_lea.vmem %s1, %s294
      %p296 = scmp.lt.s32.totalorder %s22, 0
      %s297 = scalar_select %p296, %s22, 0
      %s298 = smul.addr %s297, 4
      %s299 = scalar_lea.vmem %s2, %s298
      %p300 = scmp.lt.s32.totalorder %s21, 1
      %s301 = scalar_select %p300, %s21, 1
      %p302 = scmp.lt.s32.totalorder %s22, 0
      %s303 = scalar_select %p302, %s22, 0
      %s304 = smul.addr %s301, 8
      %s305 = sadd.s32 %s303, %s304
      %s306 = smul.addr %s305, 4
      %s307 = scalar_lea.vmem %s3, %s306
      %p308 = scmp.lt.s32.totalorder %s21, 1
      %s309 = scalar_select %p308, %s21, 1
      %p310 = scmp.lt.s32.totalorder %s22, 0
      %s311 = scalar_select %p310, %s22, 0
      %s312 = smul.addr %s309, 8
      %s313 = sadd.s32 %s311, %s312
      %s314 = smul.addr %s313, 4
      %s315 = scalar_lea.vmem %s4, %s314
      %p316 = scmp.lt.s32.totalorder %s21, 1
      %s317 = scalar_select %p316, %s21, 1
      %p318 = scmp.lt.s32.totalorder %s22, 0
      %s319 = scalar_select %p318, %s22, 0
      %s320 = sadd.s32 %s319, %s317
      %s321 = smul.addr %s320, 4
      %s322 = scalar_lea.vmem %s5, %s321
      %324 = vst [vmem:[#allocation2] sm:$0xff] 0.0
      %325 = vst [vmem:[#allocation2 + $0x8] sm:$0xff] 0.0
      %326 = vst [vmem:[#allocation2 + $0x10] sm:$0xff] 0.0
      %327 = vst [vmem:[#allocation2 + $0x18] sm:$0xff] 0.0
      %328 = vst [vmem:[#allocation2 + $0x20] sm:$0xff] 0.0
      %329 = vst [vmem:[#allocation2 + $0x28] sm:$0xff] 0.0
      %330 = vst [vmem:[#allocation2 + $0x30] sm:$0xff] 0.0
      %331 = vst [vmem:[#allocation2 + $0x38] sm:$0xff] 0.0
      %v332 = vld [vmem:[%s290] sm:$0xf]
      %v333 = vld [vmem:[%s290 + $0x8] sm:$0xf]
      %v334 = vld [vmem:[%s290 + $0x10] sm:$0xf]
      %v335 = vld [vmem:[%s290 + $0x18] sm:$0xf]
      %v336 = vld [vmem:[%s290 + $0x20] sm:$0xf]
      %v337 = vld [vmem:[%s290 + $0x28] sm:$0xf]
      %v338 = vld [vmem:[%s290 + $0x30] sm:$0xf]
      %v339 = vld [vmem:[%s290 + $0x38] sm:$0xf]
      %v340 = vld [vmem:[#allocation2] sm:$0xff]
      %v341 = vld [vmem:[#allocation2 + $0x8] sm:$0xff]
      %v342 = vld [vmem:[#allocation2 + $0x10] sm:$0xff]
      %v343 = vld [vmem:[#allocation2 + $0x18] sm:$0xff]
      %v344 = vld [vmem:[#allocation2 + $0x20] sm:$0xff]
      %v345 = vld [vmem:[#allocation2 + $0x28] sm:$0xff]
      %v346 = vld [vmem:[#allocation2 + $0x30] sm:$0xff]
      %v347 = vld [vmem:[#allocation2 + $0x38] sm:$0xff]
      %v348 = vld [vmem:[%s295] sm:$0xf]
      %v349 = vld [vmem:[%s295 + $0x4] sm:$0xf]
      %v350 = vld [vmem:[%s295 + $0x8] sm:$0xf]
      %v351 = vld [vmem:[%s295 + $0xc] sm:$0xf]
      %v352 = vld [vmem:[%s295 + $0x10] sm:$0xf]
      %v353 = vld [vmem:[%s295 + $0x14] sm:$0xf]
      %v354 = vld [vmem:[%s295 + $0x18] sm:$0xf]
      %v355 = vld [vmem:[%s295 + $0x1c] sm:$0xf]
      %v356 = vld [vmem:[%s295 + $0x20] sm:$0xf]
      %v357 = vld [vmem:[%s295 + $0x24] sm:$0xf]
      %v358 = vld [vmem:[%s295 + $0x28] sm:$0xf]
      %v359 = vld [vmem:[%s295 + $0x2c] sm:$0xf]
      %v360 = vld [vmem:[%s295 + $0x30] sm:$0xf]
      %v361 = vld [vmem:[%s295 + $0x34] sm:$0xf]
      %v362 = vld [vmem:[%s295 + $0x38] sm:$0xf]
      %v363 = vld [vmem:[%s295 + $0x3c] sm:$0xf]
      %v372 = vunpack.c.l.b16 %v332
      %v373 = vunpack.c.l.b16 %v333
      %v374 = vunpack.c.l.b16 %v334
      %v375 = vunpack.c.l.b16 %v335
      %v376 = vunpack.c.l.b16 %v336
      %v377 = vunpack.c.l.b16 %v337
      %v378 = vunpack.c.l.b16 %v338
      %v379 = vunpack.c.l.b16 %v339
      %v380 = vpack.c.b16 %v373, %v372
      %v381 = vpack.c.b16 %v375, %v374
      %v382 = vpack.c.b16 %v377, %v376
      %v383 = vpack.c.b16 %v379, %v378
      %v404 = vunpack.c.l.b16 %v348
      %v405 = vunpack.c.l.b16 %v349
      %v406 = vunpack.c.l.b16 %v350
      %v407 = vunpack.c.l.b16 %v351
      %v408 = vunpack.c.l.b16 %v352
      %v409 = vunpack.c.l.b16 %v353
      %v410 = vunpack.c.l.b16 %v354
      %v411 = vunpack.c.l.b16 %v355
      %v412 = vunpack.c.l.b16 %v356
      %v413 = vunpack.c.l.b16 %v357
      %v414 = vunpack.c.l.b16 %v358
      %v415 = vunpack.c.l.b16 %v359
      %v416 = vunpack.c.l.b16 %v360
      %v417 = vunpack.c.l.b16 %v361
      %v418 = vunpack.c.l.b16 %v362
      %v419 = vunpack.c.l.b16 %v363
      %v420 = vpack.c.b16 %v405, %v404
      %v421 = vpack.c.b16 %v407, %v406
      %v422 = vpack.c.b16 %v409, %v408
      %v423 = vpack.c.b16 %v411, %v410
      %v424 = vpack.c.b16 %v413, %v412
      %v425 = vpack.c.b16 %v415, %v414
      %v426 = vpack.c.b16 %v417, %v416
      %v427 = vpack.c.b16 %v419, %v418
      %436 = vmatprep.subr.bf16.mxu0 0
      %437 = vmatpush1.bf16.msra.mxu0 %v427
      %438 = vmatprep.subr.bf16.mxu0 0
      %439 = vmatpush1.bf16.msra.mxu0 %v426
      %440 = vmatprep.subr.bf16.mxu0 0
      %441 = vmatpush1.bf16.msra.mxu0 %v425
      %442 = vmatprep.subr.bf16.mxu0 0
      %443 = vmatpush1.bf16.msra.mxu0 %v424
      %444 = vmatprep.subr.bf16.mxu0 0
      %445 = vmatpush1.bf16.msra.mxu0 %v423
      %446 = vmatprep.subr.bf16.mxu0 0
      %447 = vmatpush1.bf16.msra.mxu0 %v422
      %448 = vmatprep.subr.bf16.mxu0 0
      %449 = vmatpush1.bf16.msra.mxu0 %v421
      %450 = vmatprep.subr.bf16.mxu0 0
      %451 = vmatpush1.bf16.msra.mxu0 %v420
      %452 = vmatprep.subr.bf16.mxu0 0
      %453 = vmatpush2.bf16.msra.mxu0 0
      %454 = vmatprep.subr.bf16.mxu0 0
      %455 = vmatpush2.bf16.msra.mxu0 0
      %456 = vmatprep.subr.bf16.mxu0 0
      %457 = vmatpush2.bf16.msra.mxu0 0
      %458 = vmatprep.subr.bf16.mxu0 0
      %459 = vmatpush2.bf16.msra.mxu0 0
      %460 = vmatprep.subr.bf16.mxu0 0
      %461 = vmatpush2.bf16.msra.mxu0 0
      %462 = vmatprep.subr.bf16.mxu0 0
      %463 = vmatpush2.bf16.msra.mxu0 0
      %464 = vmatprep.subr.bf16.mxu0 0
      %465 = vmatpush2.bf16.msra.mxu0 0
      %466 = vmatprep.subr.bf16.mxu0 0
      %467 = vmatpush2.bf16.msra.mxu0 0
      %468 = vmatprep.mubr.bf16.mxu0 0
      %469 = vmatmul.mubr.bf16.gmra.mxu0 %v380
      %v470 = vpop.f32.mrf.mxu0
      %v471 = vadd.f32 0.0, %v470
      %v472 = vpop.f32.mrf.mxu0
      %v473 = vpop.f32.mrf.mxu0
      %v474 = vadd.f32 0.0, %v473
      %v475 = vpop.f32.mrf.mxu0
      %476 = vmatprep.mubr.bf16.mxu0 0
      %477 = vmatmul.mubr.bf16.gmra.mxu0 %v381
      %v478 = vpop.f32.mrf.mxu0
      %v479 = vadd.f32 0.0, %v478
      %v480 = vpop.f32.mrf.mxu0
      %v481 = vpop.f32.mrf.mxu0
      %v482 = vadd.f32 0.0, %v481
      %v483 = vpop.f32.mrf.mxu0
      %484 = vmatprep.mubr.bf16.mxu0 0
      %485 = vmatmul.mubr.bf16.gmra.mxu0 %v382
      %v486 = vpop.f32.mrf.mxu0
      %v487 = vadd.f32 0.0, %v486
      %v488 = vpop.f32.mrf.mxu0
      %v489 = vpop.f32.mrf.mxu0
      %v490 = vadd.f32 0.0, %v489
      %v491 = vpop.f32.mrf.mxu0
      %492 = vmatprep.mubr.bf16.mxu0 0
      %493 = vmatmul.mubr.bf16.gmra.mxu0 %v383
      %v494 = vpop.f32.mrf.mxu0
      %v495 = vadd.f32 0.0, %v494
      %v496 = vpop.f32.mrf.mxu0
      %v497 = vpop.f32.mrf.mxu0
      %v498 = vadd.f32 0.0, %v497
      %v499 = vpop.f32.mrf.mxu0
      %500 = vdwg.mxu0
      %v501 = vadd.f32 %v340, %v471
      %v502 = vadd.f32 %v341, %v474
      %v503 = vadd.f32 %v342, %v479
      %v504 = vadd.f32 %v343, %v482
      %v505 = vadd.f32 %v344, %v487
      %v506 = vadd.f32 %v345, %v490
      %v507 = vadd.f32 %v346, %v495
      %v508 = vadd.f32 %v347, %v498
      %509 = vst [vmem:[#allocation2] sm:$0xff] %v501
      %510 = vst [vmem:[#allocation2 + $0x8] sm:$0xff] %v502
      %511 = vst [vmem:[#allocation2 + $0x10] sm:$0xff] %v503
      %512 = vst [vmem:[#allocation2 + $0x18] sm:$0xff] %v504
      %513 = vst [vmem:[#allocation2 + $0x20] sm:$0xff] %v505
      %514 = vst [vmem:[#allocation2 + $0x28] sm:$0xff] %v506
      %515 = vst [vmem:[#allocation2 + $0x30] sm:$0xff] %v507
      %516 = vst [vmem:[#allocation2 + $0x38] sm:$0xff] %v508
      %s517 = scalar_lea.vmem %s290, 72
      %v518 = vld [vmem:[%s517] sm:$0xf]
      %v519 = vld [vmem:[%s517 + $0x8] sm:$0xf]
      %v520 = vld [vmem:[%s517 + $0x10] sm:$0xf]
      %v521 = vld [vmem:[%s517 + $0x18] sm:$0xf]
      %v522 = vld [vmem:[%s517 + $0x20] sm:$0xf]
      %v523 = vld [vmem:[%s517 + $0x28] sm:$0xf]
      %v524 = vld [vmem:[%s517 + $0x30] sm:$0xf]
      %v525 = vld [vmem:[%s517 + $0x38] sm:$0xf]
      %v526 = vld [vmem:[#allocation2] sm:$0xff]
      %v527 = vld [vmem:[#allocation2 + $0x8] sm:$0xff]
      %v528 = vld [vmem:[#allocation2 + $0x10] sm:$0xff]
      %v529 = vld [vmem:[#allocation2 + $0x18] sm:$0xff]
      %v530 = vld [vmem:[#allocation2 + $0x20] sm:$0xff]
      %v531 = vld [vmem:[#allocation2 + $0x28] sm:$0xff]
      %v532 = vld [vmem:[#allocation2 + $0x30] sm:$0xff]
      %v533 = vld [vmem:[#allocation2 + $0x38] sm:$0xff]
      %s534 = scalar_lea.vmem %s295, 64
      %v535 = vld [vmem:[%s534] sm:$0xf]
      %v536 = vld [vmem:[%s534 + $0x4] sm:$0xf]
      %v537 = vld [vmem:[%s534 + $0x8] sm:$0xf]
      %v538 = vld [vmem:[%s534 + $0xc] sm:$0xf]
      %v539 = vld [vmem:[%s534 + $0x10] sm:$0xf]
      %v540 = vld [vmem:[%s534 + $0x14] sm:$0xf]
      %v541 = vld [vmem:[%s534 + $0x18] sm:$0xf]
      %v542 = vld [vmem:[%s534 + $0x1c] sm:$0xf]
      %v543 = vld [vmem:[%s534 + $0x20] sm:$0xf]
      %v544 = vld [vmem:[%s534 + $0x24] sm:$0xf]
      %v545 = vld [vmem:[%s534 + $0x28] sm:$0xf]
      %v546 = vld [vmem:[%s534 + $0x2c] sm:$0xf]
      %v547 = vld [vmem:[%s534 + $0x30] sm:$0xf]
      %v548 = vld [vmem:[%s534 + $0x34] sm:$0xf]
      %v549 = vld [vmem:[%s534 + $0x38] sm:$0xf]
      %v550 = vld [vmem:[%s534 + $0x3c] sm:$0xf]
      %v559 = vunpack.c.l.b16 %v518
      %v560 = vunpack.c.l.b16 %v519
      %v561 = vunpack.c.l.b16 %v520
      %v562 = vunpack.c.l.b16 %v521
      %v563 = vunpack.c.l.b16 %v522
      %v564 = vunpack.c.l.b16 %v523
      %v565 = vunpack.c.l.b16 %v524
      %v566 = vunpack.c.l.b16 %v525
      %v567 = vpack.c.b16 %v560, %v559
      %v568 = vpack.c.b16 %v562, %v561
      %v569 = vpack.c.b16 %v564, %v563
      %v570 = vpack.c.b16 %v566, %v565
      %v591 = vunpack.c.l.b16 %v535
      %v592 = vunpack.c.l.b16 %v536
      %v593 = vunpack.c.l.b16 %v537
      %v594 = vunpack.c.l.b16 %v538
      %v595 = vunpack.c.l.b16 %v539
      %v596 = vunpack.c.l.b16 %v540
      %v597 = vunpack.c.l.b16 %v541
      %v598 = vunpack.c.l.b16 %v542
      %v599 = vunpack.c.l.b16 %v543
      %v600 = vunpack.c.l.b16 %v544
      %v601 = vunpack.c.l.b16 %v545
      %v602 = vunpack.c.l.b16 %v546
      %v603 = vunpack.c.l.b16 %v547
      %v604 = vunpack.c.l.b16 %v548
      %v605 = vunpack.c.l.b16 %v549
      %v606 = vunpack.c.l.b16 %v550
      %v607 = vpack.c.b16 %v592, %v591
      %v608 = vpack.c.b16 %v594, %v593
      %v609 = vpack.c.b16 %v596, %v595
      %v610 = vpack.c.b16 %v598, %v597
      %v611 = vpack.c.b16 %v600, %v599
      %v612 = vpack.c.b16 %v602, %v601
      %v613 = vpack.c.b16 %v604, %v603
      %v614 = vpack.c.b16 %v606, %v605
      %623 = vmatprep.subr.bf16.mxu0 0
      %624 = vmatpush1.bf16.msra.mxu0 %v614
      %625 = vmatprep.subr.bf16.mxu0 0
      %626 = vmatpush1.bf16.msra.mxu0 %v613
      %627 = vmatprep.subr.bf16.mxu0 0
      %628 = vmatpush1.bf16.msra.mxu0 %v612
      %629 = vmatprep.subr.bf16.mxu0 0
      %630 = vmatpush1.bf16.msra.mxu0 %v611
      %631 = vmatprep.subr.bf16.mxu0 0
      %632 = vmatpush1.bf16.msra.mxu0 %v610
      %633 = vmatprep.subr.bf16.mxu0 0
      %634 = vmatpush1.bf16.msra.mxu0 %v609
      %635 = vmatprep.subr.bf16.mxu0 0
      %636 = vmatpush1.bf16.msra.mxu0 %v608
      %637 = vmatprep.subr.bf16.mxu0 0
      %638 = vmatpush1.bf16.msra.mxu0 %v607
      %639 = vmatprep.subr.bf16.mxu0 0
      %640 = vmatpush2.bf16.msra.mxu0 0
      %641 = vmatprep.subr.bf16.mxu0 0
      %642 = vmatpush2.bf16.msra.mxu0 0
      %643 = vmatprep.subr.bf16.mxu0 0
      %644 = vmatpush2.bf16.msra.mxu0 0
      %645 = vmatprep.subr.bf16.mxu0 0
      %646 = vmatpush2.bf16.msra.mxu0 0
      %647 = vmatprep.subr.bf16.mxu0 0
      %648 = vmatpush2.bf16.msra.mxu0 0
      %649 = vmatprep.subr.bf16.mxu0 0
      %650 = vmatpush2.bf16.msra.mxu0 0
      %651 = vmatprep.subr.bf16.mxu0 0
      %652 = vmatpush2.bf16.msra.mxu0 0
      %653 = vmatprep.subr.bf16.mxu0 0
      %654 = vmatpush2.bf16.msra.mxu0 0
      %655 = vmatprep.mubr.bf16.mxu0 0
      %656 = vmatmul.mubr.bf16.gmra.mxu0 %v567
      %v657 = vpop.f32.mrf.mxu0
      %v658 = vadd.f32 0.0, %v657
      %v659 = vpop.f32.mrf.mxu0
      %v660 = vpop.f32.mrf.mxu0
      %v661 = vadd.f32 0.0, %v660
      %v662 = vpop.f32.mrf.mxu0
      %663 = vmatprep.mubr.bf16.mxu0 0
      %664 = vmatmul.mubr.bf16.gmra.mxu0 %v568
      %v665 = vpop.f32.mrf.mxu0
      %v666 = vadd.f32 0.0, %v665
      %v667 = vpop.f32.mrf.mxu0
      %v668 = vpop.f32.mrf.mxu0
      %v669 = vadd.f32 0.0, %v668
      %v670 = vpop.f32.mrf.mxu0
      %671 = vmatprep.mubr.bf16.mxu0 0
      %672 = vmatmul.mubr.bf16.gmra.mxu0 %v569
      %v673 = vpop.f32.mrf.mxu0
      %v674 = vadd.f32 0.0, %v673
      %v675 = vpop.f32.mrf.mxu0
      %v676 = vpop.f32.mrf.mxu0
      %v677 = vadd.f32 0.0, %v676
      %v678 = vpop.f32.mrf.mxu0
      %679 = vmatprep.mubr.bf16.mxu0 0
      %680 = vmatmul.mubr.bf16.gmra.mxu0 %v570
      %v681 = vpop.f32.mrf.mxu0
      %v682 = vadd.f32 0.0, %v681
      %v683 = vpop.f32.mrf.mxu0
      %v684 = vpop.f32.mrf.mxu0
      %v685 = vadd.f32 0.0, %v684
      %v686 = vpop.f32.mrf.mxu0
      %687 = vdwg.mxu0
      %v688 = vadd.f32 %v526, %v658
      %v689 = vadd.f32 %v527, %v661
      %v690 = vadd.f32 %v528, %v666
      %v691 = vadd.f32 %v529, %v669
      %v692 = vadd.f32 %v530, %v674
      %v693 = vadd.f32 %v531, %v677
      %v694 = vadd.f32 %v532, %v682
      %v695 = vadd.f32 %v533, %v685
      %696 = vst [vmem:[#allocation2] sm:$0xff] %v688
      %697 = vst [vmem:[#allocation2 + $0x8] sm:$0xff] %v689
      %698 = vst [vmem:[#allocation2 + $0x10] sm:$0xff] %v690
      %699 = vst [vmem:[#allocation2 + $0x18] sm:$0xff] %v691
      %700 = vst [vmem:[#allocation2 + $0x20] sm:$0xff] %v692
      %701 = vst [vmem:[#allocation2 + $0x28] sm:$0xff] %v693
      %702 = vst [vmem:[#allocation2 + $0x30] sm:$0xff] %v694
      %703 = vst [vmem:[#allocation2 + $0x38] sm:$0xff] %v695
      %v704 = vld [vmem:[%s290] sm:$0xf]
      %v705 = vld [vmem:[%s290 + $0x4] sm:$0x1]
      %v706 = vld [vmem:[%s290 + $0x8] sm:$0xf]
      %v707 = vld [vmem:[%s290 + $0xc] sm:$0x1]
      %v708 = vld [vmem:[%s290 + $0x10] sm:$0xf]
      %v709 = vld [vmem:[%s290 + $0x14] sm:$0x1]
      %v710 = vld [vmem:[%s290 + $0x18] sm:$0xf]
      %v711 = vld [vmem:[%s290 + $0x1c] sm:$0x1]
      %v712 = vld [vmem:[%s290 + $0x20] sm:$0xf]
      %v713 = vld [vmem:[%s290 + $0x24] sm:$0x1]
      %v714 = vld [vmem:[%s290 + $0x28] sm:$0xf]
      %v715 = vld [vmem:[%s290 + $0x2c] sm:$0x1]
      %v716 = vld [vmem:[%s290 + $0x30] sm:$0xf]
      %v717 = vld [vmem:[%s290 + $0x34] sm:$0x1]
      %v718 = vld [vmem:[%s290 + $0x38] sm:$0xf]
      %v719 = vld [vmem:[%s290 + $0x3c] sm:$0x1]
      %vm720 = vsmask.f32 3328
      %vm721 = vsmask.f32 7440
      %vm722 = vmor %vm720, %vm721
      %v724 = vshrl.u32 %v704, 16
      %v726 = vrot.slane %v724, 4
      %v727 = vshll.u32 %v704, 16
      %v729 = vrot.slane %v727, 5
      %v730 = vor.u32 %v726, %v729
      %v731 = vrot.slane %v730, 4
      %v733 = vshll.u32 %v705, 16
      %v735 = vrot.slane %v733, 5
      %v736 = vsel %vm722, %v731, %v735
      %v738 = vshrl.u32 %v706, 16
      %v740 = vrot.slane %v738, 4
      %v741 = vshll.u32 %v706, 16
      %v743 = vrot.slane %v741, 5
      %v744 = vor.u32 %v740, %v743
      %v745 = vrot.slane %v744, 4
      %v747 = vshll.u32 %v707, 16
      %v749 = vrot.slane %v747, 5
      %v750 = vsel %vm722, %v745, %v749
      %v752 = vshrl.u32 %v708, 16
      %v754 = vrot.slane %v752, 4
      %v755 = vshll.u32 %v708, 16
      %v757 = vrot.slane %v755, 5
      %v758 = vor.u32 %v754, %v757
      %v759 = vrot.slane %v758, 4
      %v761 = vshll.u32 %v709, 16
      %v763 = vrot.slane %v761, 5
      %v764 = vsel %vm722, %v759, %v763
      %v766 = vshrl.u32 %v710, 16
      %v768 = vrot.slane %v766, 4
      %v769 = vshll.u32 %v710, 16
      %v771 = vrot.slane %v769, 5
      %v772 = vor.u32 %v768, %v771
      %v773 = vrot.slane %v772, 4
      %v775 = vshll.u32 %v711, 16
      %v777 = vrot.slane %v775, 5
      %v778 = vsel %vm722, %v773, %v777
      %v780 = vshrl.u32 %v712, 16
      %v782 = vrot.slane %v780, 4
      %v783 = vshll.u32 %v712, 16
      %v785 = vrot.slane %v783, 5
      %v786 = vor.u32 %v782, %v785
      %v787 = vrot.slane %v786, 4
      %v789 = vshll.u32 %v713, 16
      %v791 = vrot.slane %v789, 5
      %v792 = vsel %vm722, %v787, %v791
      %v794 = vshrl.u32 %v714, 16
      %v796 = vrot.slane %v794, 4
      %v797 = vshll.u32 %v714, 16
      %v799 = vrot.slane %v797, 5
      %v800 = vor.u32 %v796, %v799
      %v801 = vrot.slane %v800, 4
      %v803 = vshll.u32 %v715, 16
      %v805 = vrot.slane %v803, 5
      %v806 = vsel %vm722, %v801, %v805
      %v808 = vshrl.u32 %v716, 16
      %v810 = vrot.slane %v808, 4
      %v811 = vshll.u32 %v716, 16
      %v813 = vrot.slane %v811, 5
      %v814 = vor.u32 %v810, %v813
      %v815 = vrot.slane %v814, 4
      %v817 = vshll.u32 %v717, 16
      %v819 = vrot.slane %v817, 5
      %v820 = vsel %vm722, %v815, %v819
      %v822 = vshrl.u32 %v718, 16
      %v824 = vrot.slane %v822, 4
      %v825 = vshll.u32 %v718, 16
      %v827 = vrot.slane %v825, 5
      %v828 = vor.u32 %v824, %v827
      %v829 = vrot.slane %v828, 4
      %v831 = vshll.u32 %v719, 16
      %v833 = vrot.slane %v831, 5
      %v834 = vsel %vm722, %v829, %v833
      %v835 = vld [vmem:[#allocation2] sm:$0xff]
      %v836 = vld [vmem:[#allocation2 + $0x8] sm:$0xff]
      %v837 = vld [vmem:[#allocation2 + $0x10] sm:$0xff]
      %v838 = vld [vmem:[#allocation2 + $0x18] sm:$0xff]
      %v839 = vld [vmem:[#allocation2 + $0x20] sm:$0xff]
      %v840 = vld [vmem:[#allocation2 + $0x28] sm:$0xff]
      %v841 = vld [vmem:[#allocation2 + $0x30] sm:$0xff]
      %v842 = vld [vmem:[#allocation2 + $0x38] sm:$0xff]
      %s843 = scalar_lea.vmem %s295, 128
      %v844 = vld [vmem:[%s843] sm:$0xf]
      %v845 = vld [vmem:[%s843 + $0x4] sm:$0xf]
      %v846 = vld [vmem:[%s843 + $0x8] sm:$0xf]
      %v847 = vld [vmem:[%s843 + $0xc] sm:$0xf]
      %v848 = vld [vmem:[%s843 + $0x10] sm:$0xf]
      %v849 = vld [vmem:[%s843 + $0x14] sm:$0xf]
      %v850 = vld [vmem:[%s843 + $0x18] sm:$0xf]
      %v851 = vld [vmem:[%s843 + $0x1c] sm:$0xf]
      %v852 = vld [vmem:[%s843 + $0x20] sm:$0xf]
      %v853 = vld [vmem:[%s843 + $0x24] sm:$0xf]
      %v854 = vld [vmem:[%s843 + $0x28] sm:$0xf]
      %v855 = vld [vmem:[%s843 + $0x2c] sm:$0xf]
      %v856 = vld [vmem:[%s843 + $0x30] sm:$0xf]
      %v857 = vld [vmem:[%s843 + $0x34] sm:$0xf]
      %v858 = vld [vmem:[%s843 + $0x38] sm:$0xf]
      %v859 = vld [vmem:[%s843 + $0x3c] sm:$0xf]
      %v860 = vunpack.c.l.b16 %v736
      %v861 = vunpack.c.l.b16 %v750
      %v862 = vunpack.c.l.b16 %v764
      %v863 = vunpack.c.l.b16 %v778
      %v864 = vunpack.c.l.b16 %v792
      %v865 = vunpack.c.l.b16 %v806
      %v866 = vunpack.c.l.b16 %v820
      %v867 = vunpack.c.l.b16 %v834
      %v868 = vpack.c.b16 %v861, %v860
      %v869 = vpack.c.b16 %v863, %v862
      %v870 = vpack.c.b16 %v865, %v864
      %v871 = vpack.c.b16 %v867, %v866
      %v892 = vunpack.c.l.b16 %v844
      %v893 = vunpack.c.l.b16 %v845
      %v894 = vunpack.c.l.b16 %v846
      %v895 = vunpack.c.l.b16 %v847
      %v896 = vunpack.c.l.b16 %v848
      %v897 = vunpack.c.l.b16 %v849
      %v898 = vunpack.c.l.b16 %v850
      %v899 = vunpack.c.l.b16 %v851
      %v900 = vunpack.c.l.b16 %v852
      %v901 = vunpack.c.l.b16 %v853
      %v902 = vunpack.c.l.b16 %v854
      %v903 = vunpack.c.l.b16 %v855
      %v904 = vunpack.c.l.b16 %v856
      %v905 = vunpack.c.l.b16 %v857
      %v906 = vunpack.c.l.b16 %v858
      %v907 = vunpack.c.l.b16 %v859
      %v908 = vpack.c.b16 %v893, %v892
      %v909 = vpack.c.b16 %v895, %v894
      %v910 = vpack.c.b16 %v897, %v896
      %v911 = vpack.c.b16 %v899, %v898
      %v912 = vpack.c.b16 %v901, %v900
      %v913 = vpack.c.b16 %v903, %v902
      %v914 = vpack.c.b16 %v905, %v904
      %v915 = vpack.c.b16 %v907, %v906
      %924 = vmatprep.subr.bf16.mxu0 0
      %925 = vmatpush1.bf16.msra.mxu0 %v915
      %926 = vmatprep.subr.bf16.mxu0 0
      %927 = vmatpush1.bf16.msra.mxu0 %v914
      %928 = vmatprep.subr.bf16.mxu0 0
      %929 = vmatpush1.bf16.msra.mxu0 %v913
      %930 = vmatprep.subr.bf16.mxu0 0
      %931 = vmatpush1.bf16.msra.mxu0 %v912
      %932 = vmatprep.subr.bf16.mxu0 0
      %933 = vmatpush1.bf16.msra.mxu0 %v911
      %934 = vmatprep.subr.bf16.mxu0 0
      %935 = vmatpush1.bf16.msra.mxu0 %v910
      %936 = vmatprep.subr.bf16.mxu0 0
      %937 = vmatpush1.bf16.msra.mxu0 %v909
      %938 = vmatprep.subr.bf16.mxu0 0
      %939 = vmatpush1.bf16.msra.mxu0 %v908
      %940 = vmatprep.subr.bf16.mxu0 0
      %941 = vmatpush2.bf16.msra.mxu0 0
      %942 = vmatprep.subr.bf16.mxu0 0
      %943 = vmatpush2.bf16.msra.mxu0 0
      %944 = vmatprep.subr.bf16.mxu0 0
      %945 = vmatpush2.bf16.msra.mxu0 0
      %946 = vmatprep.subr.bf16.mxu0 0
      %947 = vmatpush2.bf16.msra.mxu0 0
      %948 = vmatprep.subr.bf16.mxu0 0
      %949 = vmatpush2.bf16.msra.mxu0 0
      %950 = vmatprep.subr.bf16.mxu0 0
      %951 = vmatpush2.bf16.msra.mxu0 0
      %952 = vmatprep.subr.bf16.mxu0 0
      %953 = vmatpush2.bf16.msra.mxu0 0
      %954 = vmatprep.subr.bf16.mxu0 0
      %955 = vmatpush2.bf16.msra.mxu0 0
      %956 = vmatprep.mubr.bf16.mxu0 0
      %957 = vmatmul.mubr.bf16.gmra.mxu0 %v868
      %v958 = vpop.f32.mrf.mxu0
      %v959 = vadd.f32 0.0, %v958
      %v960 = vpop.f32.mrf.mxu0
      %v961 = vpop.f32.mrf.mxu0
      %v962 = vadd.f32 0.0, %v961
      %v963 = vpop.f32.mrf.mxu0
      %964 = vmatprep.mubr.bf16.mxu0 0
      %965 = vmatmul.mubr.bf16.gmra.mxu0 %v869
      %v966 = vpop.f32.mrf.mxu0
      %v967 = vadd.f32 0.0, %v966
      %v968 = vpop.f32.mrf.mxu0
      %v969 = vpop.f32.mrf.mxu0
      %v970 = vadd.f32 0.0, %v969
      %v971 = vpop.f32.mrf.mxu0
      %972 = vmatprep.mubr.bf16.mxu0 0
      %973 = vmatmul.mubr.bf16.gmra.mxu0 %v870
      %v974 = vpop.f32.mrf.mxu0
      %v975 = vadd.f32 0.0, %v974
      %v976 = vpop.f32.mrf.mxu0
      %v977 = vpop.f32.mrf.mxu0
      %v978 = vadd.f32 0.0, %v977
      %v979 = vpop.f32.mrf.mxu0
      %980 = vmatprep.mubr.bf16.mxu0 0
      %981 = vmatmul.mubr.bf16.gmra.mxu0 %v871
      %v982 = vpop.f32.mrf.mxu0
      %v983 = vadd.f32 0.0, %v982
      %v984 = vpop.f32.mrf.mxu0
      %v985 = vpop.f32.mrf.mxu0
      %v986 = vadd.f32 0.0, %v985
      %v987 = vpop.f32.mrf.mxu0
      %988 = vdwg.mxu0
      %v989 = vadd.f32 %v835, %v959
      %v990 = vadd.f32 %v836, %v962
      %v991 = vadd.f32 %v837, %v967
      %v992 = vadd.f32 %v838, %v970
      %v993 = vadd.f32 %v839, %v975
      %v994 = vadd.f32 %v840, %v978
      %v995 = vadd.f32 %v841, %v983
      %v996 = vadd.f32 %v842, %v986
      %997 = vst [vmem:[#allocation2] sm:$0xff] %v989
      %998 = vst [vmem:[#allocation2 + $0x8] sm:$0xff] %v990
      %999 = vst [vmem:[#allocation2 + $0x10] sm:$0xff] %v991
      %1000 = vst [vmem:[#allocation2 + $0x18] sm:$0xff] %v992
      %1001 = vst [vmem:[#allocation2 + $0x20] sm:$0xff] %v993
      %1002 = vst [vmem:[#allocation2 + $0x28] sm:$0xff] %v994
      %1003 = vst [vmem:[#allocation2 + $0x30] sm:$0xff] %v995
      %1004 = vst [vmem:[#allocation2 + $0x38] sm:$0xff] %v996
      %s1005 = scalar_lea.vmem %s290, 144
      %v1006 = vld [vmem:[%s1005] sm:$0xf]
      %v1007 = vld [vmem:[%s1005 + $0x8] sm:$0xf]
      %v1008 = vld [vmem:[%s1005 + $0x10] sm:$0xf]
      %v1009 = vld [vmem:[%s1005 + $0x18] sm:$0xf]
      %v1010 = vld [vmem:[%s1005 + $0x20] sm:$0xf]
      %v1011 = vld [vmem:[%s1005 + $0x28] sm:$0xf]
      %v1012 = vld [vmem:[%s1005 + $0x30] sm:$0xf]
      %v1013 = vld [vmem:[%s1005 + $0x38] sm:$0xf]
      %v1014 = vld [vmem:[#allocation2] sm:$0xff]
      %v1015 = vld [vmem:[#allocation2 + $0x8] sm:$0xff]
      %v1016 = vld [vmem:[#allocation2 + $0x10] sm:$0xff]
      %v1017 = vld [vmem:[#allocation2 + $0x18] sm:$0xff]
      %v1018 = vld [vmem:[#allocation2 + $0x20] sm:$0xff]
      %v1019 = vld [vmem:[#allocation2 + $0x28] sm:$0xff]
      %v1020 = vld [vmem:[#allocation2 + $0x30] sm:$0xff]
      %v1021 = vld [vmem:[#allocation2 + $0x38] sm:$0xff]
      %s1022 = scalar_lea.vmem %s295, 192
      %v1023 = vld [vmem:[%s1022] sm:$0xf]
      %v1024 = vld [vmem:[%s1022 + $0x4] sm:$0xf]
      %v1025 = vld [vmem:[%s1022 + $0x8] sm:$0xf]
      %v1026 = vld [vmem:[%s1022 + $0xc] sm:$0xf]
      %v1027 = vld [vmem:[%s1022 + $0x10] sm:$0xf]
      %v1028 = vld [vmem:[%s1022 + $0x14] sm:$0xf]
      %v1029 = vld [vmem:[%s1022 + $0x18] sm:$0xf]
      %v1030 = vld [vmem:[%s1022 + $0x1c] sm:$0xf]
      %v1031 = vld [vmem:[%s1022 + $0x20] sm:$0xf]
      %v1032 = vld [vmem:[%s1022 + $0x24] sm:$0xf]
      %v1033 = vld [vmem:[%s1022 + $0x28] sm:$0xf]
      %v1034 = vld [vmem:[%s1022 + $0x2c] sm:$0xf]
      %v1035 = vld [vmem:[%s1022 + $0x30] sm:$0xf]
      %v1036 = vld [vmem:[%s1022 + $0x34] sm:$0xf]
      %v1037 = vld [vmem:[%s1022 + $0x38] sm:$0xf]
      %v1038 = vld [vmem:[%s1022 + $0x3c] sm:$0xf]
      %v1047 = vunpack.c.l.b16 %v1006
      %v1048 = vunpack.c.l.b16 %v1007
      %v1049 = vunpack.c.l.b16 %v1008
      %v1050 = vunpack.c.l.b16 %v1009
      %v1051 = vunpack.c.l.b16 %v1010
      %v1052 = vunpack.c.l.b16 %v1011
      %v1053 = vunpack.c.l.b16 %v1012
      %v1054 = vunpack.c.l.b16 %v1013
      %v1055 = vpack.c.b16 %v1048, %v1047
      %v1056 = vpack.c.b16 %v1050, %v1049
      %v1057 = vpack.c.b16 %v1052, %v1051
      %v1058 = vpack.c.b16 %v1054, %v1053
      %v1079 = vunpack.c.l.b16 %v1023
      %v1080 = vunpack.c.l.b16 %v1024
      %v1081 = vunpack.c.l.b16 %v1025
      %v1082 = vunpack.c.l.b16 %v1026
      %v1083 = vunpack.c.l.b16 %v1027
      %v1084 = vunpack.c.l.b16 %v1028
      %v1085 = vunpack.c.l.b16 %v1029
      %v1086 = vunpack.c.l.b16 %v1030
      %v1087 = vunpack.c.l.b16 %v1031
      %v1088 = vunpack.c.l.b16 %v1032
      %v1089 = vunpack.c.l.b16 %v1033
      %v1090 = vunpack.c.l.b16 %v1034
      %v1091 = vunpack.c.l.b16 %v1035
      %v1092 = vunpack.c.l.b16 %v1036
      %v1093 = vunpack.c.l.b16 %v1037
      %v1094 = vunpack.c.l.b16 %v1038
      %v1095 = vpack.c.b16 %v1080, %v1079
      %v1096 = vpack.c.b16 %v1082, %v1081
      %v1097 = vpack.c.b16 %v1084, %v1083
      %v1098 = vpack.c.b16 %v1086, %v1085
      %v1099 = vpack.c.b16 %v1088, %v1087
      %v1100 = vpack.c.b16 %v1090, %v1089
      %v1101 = vpack.c.b16 %v1092, %v1091
      %v1102 = vpack.c.b16 %v1094, %v1093
      %1111 = vmatprep.subr.bf16.mxu0 0
      %1112 = vmatpush1.bf16.msra.mxu0 %v1102
      %1113 = vmatprep.subr.bf16.mxu0 0
      %1114 = vmatpush1.bf16.msra.mxu0 %v1101
      %1115 = vmatprep.subr.bf16.mxu0 0
      %1116 = vmatpush1.bf16.msra.mxu0 %v1100
      %1117 = vmatprep.subr.bf16.mxu0 0
      %1118 = vmatpush1.bf16.msra.mxu0 %v1099
      %1119 = vmatprep.subr.bf16.mxu0 0
      %1120 = vmatpush1.bf16.msra.mxu0 %v1098
      %1121 = vmatprep.subr.bf16.mxu0 0
      %1122 = vmatpush1.bf16.msra.mxu0 %v1097
      %1123 = vmatprep.subr.bf16.mxu0 0
      %1124 = vmatpush1.bf16.msra.mxu0 %v1096
      %1125 = vmatprep.subr.bf16.mxu0 0
      %1126 = vmatpush1.bf16.msra.mxu0 %v1095
      %1127 = vmatprep.subr.bf16.mxu0 0
      %1128 = vmatpush2.bf16.msra.mxu0 0
      %1129 = vmatprep.subr.bf16.mxu0 0
      %1130 = vmatpush2.bf16.msra.mxu0 0
      %1131 = vmatprep.subr.bf16.mxu0 0
      %1132 = vmatpush2.bf16.msra.mxu0 0
      %1133 = vmatprep.subr.bf16.mxu0 0
      %1134 = vmatpush2.bf16.msra.mxu0 0
      %1135 = vmatprep.subr.bf16.mxu0 0
      %1136 = vmatpush2.bf16.msra.mxu0 0
      %1137 = vmatprep.subr.bf16.mxu0 0
      %1138 = vmatpush2.bf16.msra.mxu0 0
      %1139 = vmatprep.subr.bf16.mxu0 0
      %1140 = vmatpush2.bf16.msra.mxu0 0
      %1141 = vmatprep.subr.bf16.mxu0 0
      %1142 = vmatpush2.bf16.msra.mxu0 0
      %1143 = vmatprep.mubr.bf16.mxu0 0
      %1144 = vmatmul.mubr.bf16.gmra.mxu0 %v1055
      %v1145 = vpop.f32.mrf.mxu0
      %v1146 = vadd.f32 0.0, %v1145
      %v1147 = vpop.f32.mrf.mxu0
      %v1148 = vpop.f32.mrf.mxu0
      %v1149 = vadd.f32 0.0, %v1148
      %v1150 = vpop.f32.mrf.mxu0
      %1151 = vmatprep.mubr.bf16.mxu0 0
      %1152 = vmatmul.mubr.bf16.gmra.mxu0 %v1056
      %v1153 = vpop.f32.mrf.mxu0
      %v1154 = vadd.f32 0.0, %v1153
      %v1155 = vpop.f32.mrf.mxu0
      %v1156 = vpop.f32.mrf.mxu0
      %v1157 = vadd.f32 0.0, %v1156
      %v1158 = vpop.f32.mrf.mxu0
      %1159 = vmatprep.mubr.bf16.mxu0 0
      %1160 = vmatmul.mubr.bf16.gmra.mxu0 %v1057
      %v1161 = vpop.f32.mrf.mxu0
      %v1162 = vadd.f32 0.0, %v1161
      %v1163 = vpop.f32.mrf.mxu0
      %v1164 = vpop.f32.mrf.mxu0
      %v1165 = vadd.f32 0.0, %v1164
      %v1166 = vpop.f32.mrf.mxu0
      %1167 = vmatprep.mubr.bf16.mxu0 0
      %1168 = vmatmul.mubr.bf16.gmra.mxu0 %v1058
      %v1169 = vpop.f32.mrf.mxu0
      %v1170 = vadd.f32 0.0, %v1169
      %v1171 = vpop.f32.mrf.mxu0
      %v1172 = vpop.f32.mrf.mxu0
      %v1173 = vadd.f32 0.0, %v1172
      %v1174 = vpop.f32.mrf.mxu0
      %1175 = vdwg.mxu0
      %v1176 = vadd.f32 %v1014, %v1146
      %v1177 = vadd.f32 %v1015, %v1149
      %v1178 = vadd.f32 %v1016, %v1154
      %v1179 = vadd.f32 %v1017, %v1157
      %v1180 = vadd.f32 %v1018, %v1162
      %v1181 = vadd.f32 %v1019, %v1165
      %v1182 = vadd.f32 %v1020, %v1170
      %v1183 = vadd.f32 %v1021, %v1173
      %1184 = vst [vmem:[#allocation2] sm:$0xff] %v1176
      %1185 = vst [vmem:[#allocation2 + $0x8] sm:$0xff] %v1177
      %1186 = vst [vmem:[#allocation2 + $0x10] sm:$0xff] %v1178
      %1187 = vst [vmem:[#allocation2 + $0x18] sm:$0xff] %v1179
      %1188 = vst [vmem:[#allocation2 + $0x20] sm:$0xff] %v1180
      %1189 = vst [vmem:[#allocation2 + $0x28] sm:$0xff] %v1181
      %1190 = vst [vmem:[#allocation2 + $0x30] sm:$0xff] %v1182
      %1191 = vst [vmem:[#allocation2 + $0x38] sm:$0xff] %v1183
      %s1192 = scalar_lea.vmem %s290, 216
      %v1193 = vld [vmem:[%s1192] sm:$0xf]
      %v1194 = vld [vmem:[%s1192 + $0x8] sm:$0xf]
      %v1195 = vld [vmem:[%s1192 + $0x10] sm:$0xf]
      %v1196 = vld [vmem:[%s1192 + $0x18] sm:$0xf]
      %v1197 = vld [vmem:[%s1192 + $0x20] sm:$0xf]
      %v1198 = vld [vmem:[%s1192 + $0x28] sm:$0xf]
      %v1199 = vld [vmem:[%s1192 + $0x30] sm:$0xf]
      %v1200 = vld [vmem:[%s1192 + $0x38] sm:$0xf]
      %v1201 = vld [vmem:[#allocation2] sm:$0xff]
      %v1202 = vld [vmem:[#allocation2 + $0x8] sm:$0xff]
      %v1203 = vld [vmem:[#allocation2 + $0x10] sm:$0xff]
      %v1204 = vld [vmem:[#allocation2 + $0x18] sm:$0xff]
      %v1205 = vld [vmem:[#allocation2 + $0x20] sm:$0xff]
      %v1206 = vld [vmem:[#allocation2 + $0x28] sm:$0xff]
      %v1207 = vld [vmem:[#allocation2 + $0x30] sm:$0xff]
      %v1208 = vld [vmem:[#allocation2 + $0x38] sm:$0xff]
      %s1209 = scalar_lea.vmem %s295, 256
      %v1210 = vld [vmem:[%s1209] sm:$0xf]
      %v1211 = vld [vmem:[%s1209 + $0x4] sm:$0xf]
      %v1212 = vld [vmem:[%s1209 + $0x8] sm:$0xf]
      %v1213 = vld [vmem:[%s1209 + $0xc] sm:$0xf]
      %v1214 = vld [vmem:[%s1209 + $0x10] sm:$0xf]
      %v1215 = vld [vmem:[%s1209 + $0x14] sm:$0xf]
      %v1216 = vld [vmem:[%s1209 + $0x18] sm:$0xf]
      %v1217 = vld [vmem:[%s1209 + $0x1c] sm:$0xf]
      %v1218 = vld [vmem:[%s1209 + $0x20] sm:$0xf]
      %v1219 = vld [vmem:[%s1209 + $0x24] sm:$0xf]
      %v1220 = vld [vmem:[%s1209 + $0x28] sm:$0xf]
      %v1221 = vld [vmem:[%s1209 + $0x2c] sm:$0xf]
      %v1222 = vld [vmem:[%s1209 + $0x30] sm:$0xf]
      %v1223 = vld [vmem:[%s1209 + $0x34] sm:$0xf]
      %v1224 = vld [vmem:[%s1209 + $0x38] sm:$0xf]
      %v1225 = vld [vmem:[%s1209 + $0x3c] sm:$0xf]
      %v1234 = vunpack.c.l.b16 %v1193
      %v1235 = vunpack.c.l.b16 %v1194
      %v1236 = vunpack.c.l.b16 %v1195
      %v1237 = vunpack.c.l.b16 %v1196
      %v1238 = vunpack.c.l.b16 %v1197
      %v1239 = vunpack.c.l.b16 %v1198
      %v1240 = vunpack.c.l.b16 %v1199
      %v1241 = vunpack.c.l.b16 %v1200
      %v1242 = vpack.c.b16 %v1235, %v1234
      %v1243 = vpack.c.b16 %v1237, %v1236
      %v1244 = vpack.c.b16 %v1239, %v1238
      %v1245 = vpack.c.b16 %v1241, %v1240
      %v1266 = vunpack.c.l.b16 %v1210
      %v1267 = vunpack.c.l.b16 %v1211
      %v1268 = vunpack.c.l.b16 %v1212
      %v1269 = vunpack.c.l.b16 %v1213
      %v1270 = vunpack.c.l.b16 %v1214
      %v1271 = vunpack.c.l.b16 %v1215
      %v1272 = vunpack.c.l.b16 %v1216
      %v1273 = vunpack.c.l.b16 %v1217
      %v1274 = vunpack.c.l.b16 %v1218
      %v1275 = vunpack.c.l.b16 %v1219
      %v1276 = vunpack.c.l.b16 %v1220
      %v1277 = vunpack.c.l.b16 %v1221
      %v1278 = vunpack.c.l.b16 %v1222
      %v1279 = vunpack.c.l.b16 %v1223
      %v1280 = vunpack.c.l.b16 %v1224
      %v1281 = vunpack.c.l.b16 %v1225
      %v1282 = vpack.c.b16 %v1267, %v1266
      %v1283 = vpack.c.b16 %v1269, %v1268
      %v1284 = vpack.c.b16 %v1271, %v1270
      %v1285 = vpack.c.b16 %v1273, %v1272
      %v1286 = vpack.c.b16 %v1275, %v1274
      %v1287 = vpack.c.b16 %v1277, %v1276
      %v1288 = vpack.c.b16 %v1279, %v1278
      %v1289 = vpack.c.b16 %v1281, %v1280
      %1298 = vmatprep.subr.bf16.mxu0 0
      %1299 = vmatpush1.bf16.msra.mxu0 %v1289
      %1300 = vmatprep.subr.bf16.mxu0 0
      %1301 = vmatpush1.bf16.msra.mxu0 %v1288
      %1302 = vmatprep.subr.bf16.mxu0 0
      %1303 = vmatpush1.bf16.msra.mxu0 %v1287
      %1304 = vmatprep.subr.bf16.mxu0 0
      %1305 = vmatpush1.bf16.msra.mxu0 %v1286
      %1306 = vmatprep.subr.bf16.mxu0 0
      %1307 = vmatpush1.bf16.msra.mxu0 %v1285
      %1308 = vmatprep.subr.bf16.mxu0 0
      %1309 = vmatpush1.bf16.msra.mxu0 %v1284
      %1310 = vmatprep.subr.bf16.mxu0 0
      %1311 = vmatpush1.bf16.msra.mxu0 %v1283
      %1312 = vmatprep.subr.bf16.mxu0 0
      %1313 = vmatpush1.bf16.msra.mxu0 %v1282
      %1314 = vmatprep.subr.bf16.mxu0 0
      %1315 = vmatpush2.bf16.msra.mxu0 0
      %1316 = vmatprep.subr.bf16.mxu0 0
      %1317 = vmatpush2.bf16.msra.mxu0 0
      %1318 = vmatprep.subr.bf16.mxu0 0
      %1319 = vmatpush2.bf16.msra.mxu0 0
      %1320 = vmatprep.subr.bf16.mxu0 0
      %1321 = vmatpush2.bf16.msra.mxu0 0
      %1322 = vmatprep.subr.bf16.mxu0 0
      %1323 = vmatpush2.bf16.msra.mxu0 0
      %1324 = vmatprep.subr.bf16.mxu0 0
      %1325 = vmatpush2.bf16.msra.mxu0 0
      %1326 = vmatprep.subr.bf16.mxu0 0
      %1327 = vmatpush2.bf16.msra.mxu0 0
      %1328 = vmatprep.subr.bf16.mxu0 0
      %1329 = vmatpush2.bf16.msra.mxu0 0
      %1330 = vmatprep.mubr.bf16.mxu0 0
      %1331 = vmatmul.mubr.bf16.gmra.mxu0 %v1242
      %v1332 = vpop.f32.mrf.mxu0
      %v1333 = vadd.f32 0.0, %v1332
      %v1334 = vpop.f32.mrf.mxu0
      %v1335 = vpop.f32.mrf.mxu0
      %v1336 = vadd.f32 0.0, %v1335
      %v1337 = vpop.f32.mrf.mxu0
      %1338 = vmatprep.mubr.bf16.mxu0 0
      %1339 = vmatmul.mubr.bf16.gmra.mxu0 %v1243
      %v1340 = vpop.f32.mrf.mxu0
      %v1341 = vadd.f32 0.0, %v1340
      %v1342 = vpop.f32.mrf.mxu0
      %v1343 = vpop.f32.mrf.mxu0
      %v1344 = vadd.f32 0.0, %v1343
      %v1345 = vpop.f32.mrf.mxu0
      %1346 = vmatprep.mubr.bf16.mxu0 0
      %1347 = vmatmul.mubr.bf16.gmra.mxu0 %v1244
      %v1348 = vpop.f32.mrf.mxu0
      %v1349 = vadd.f32 0.0, %v1348
      %v1350 = vpop.f32.mrf.mxu0
      %v1351 = vpop.f32.mrf.mxu0
      %v1352 = vadd.f32 0.0, %v1351
      %v1353 = vpop.f32.mrf.mxu0
      %1354 = vmatprep.mubr.bf16.mxu0 0
      %1355 = vmatmul.mubr.bf16.gmra.mxu0 %v1245
      %v1356 = vpop.f32.mrf.mxu0
      %v1357 = vadd.f32 0.0, %v1356
      %v1358 = vpop.f32.mrf.mxu0
      %v1359 = vpop.f32.mrf.mxu0
      %v1360 = vadd.f32 0.0, %v1359
      %v1361 = vpop.f32.mrf.mxu0
      %1362 = vdwg.mxu0
      %v1363 = vadd.f32 %v1201, %v1333
      %v1364 = vadd.f32 %v1202, %v1336
      %v1365 = vadd.f32 %v1203, %v1341
      %v1366 = vadd.f32 %v1204, %v1344
      %v1367 = vadd.f32 %v1205, %v1349
      %v1368 = vadd.f32 %v1206, %v1352
      %v1369 = vadd.f32 %v1207, %v1357
      %v1370 = vadd.f32 %v1208, %v1360
      %1371 = vst [vmem:[#allocation2] sm:$0xff] %v1363
      %1372 = vst [vmem:[#allocation2 + $0x8] sm:$0xff] %v1364
      %1373 = vst [vmem:[#allocation2 + $0x10] sm:$0xff] %v1365
      %1374 = vst [vmem:[#allocation2 + $0x18] sm:$0xff] %v1366
      %1375 = vst [vmem:[#allocation2 + $0x20] sm:$0xff] %v1367
      %1376 = vst [vmem:[#allocation2 + $0x28] sm:$0xff] %v1368
      %1377 = vst [vmem:[#allocation2 + $0x30] sm:$0xff] %v1369
      %1378 = vst [vmem:[#allocation2 + $0x38] sm:$0xff] %v1370
      %v1379 = vld [vmem:[%s1005] sm:$0xf]
      %v1380 = vld [vmem:[%s1005 + $0x4] sm:$0x1]
      %v1381 = vld [vmem:[%s1005 + $0x8] sm:$0xf]
      %v1382 = vld [vmem:[%s1005 + $0xc] sm:$0x1]
      %v1383 = vld [vmem:[%s1005 + $0x10] sm:$0xf]
      %v1384 = vld [vmem:[%s1005 + $0x14] sm:$0x1]
      %v1385 = vld [vmem:[%s1005 + $0x18] sm:$0xf]
      %v1386 = vld [vmem:[%s1005 + $0x1c] sm:$0x1]
      %v1387 = vld [vmem:[%s1005 + $0x20] sm:$0xf]
      %v1388 = vld [vmem:[%s1005 + $0x24] sm:$0x1]
      %v1389 = vld [vmem:[%s1005 + $0x28] sm:$0xf]
      %v1390 = vld [vmem:[%s1005 + $0x2c] sm:$0x1]
      %v1391 = vld [vmem:[%s1005 + $0x30] sm:$0xf]
      %v1392 = vld [vmem:[%s1005 + $0x34] sm:$0x1]
      %v1393 = vld [vmem:[%s1005 + $0x38] sm:$0xf]
      %v1394 = vld [vmem:[%s1005 + $0x3c] sm:$0x1]
      %v1396 = vshrl.u32 %v1379, 16
      %v1398 = vrot.slane %v1396, 4
      %v1399 = vshll.u32 %v1379, 16
      %v1401 = vrot.slane %v1399, 5
      %v1402 = vor.u32 %v1398, %v1401
      %v1403 = vrot.slane %v1402, 4
      %v1405 = vshll.u32 %v1380, 16
      %v1407 = vrot.slane %v1405, 5
      %v1408 = vsel %vm722, %v1403, %v1407
      %v1410 = vshrl.u32 %v1381, 16
      %v1412 = vrot.slane %v1410, 4
      %v1413 = vshll.u32 %v1381, 16
      %v1415 = vrot.slane %v1413, 5
      %v1416 = vor.u32 %v1412, %v1415
      %v1417 = vrot.slane %v1416, 4
      %v1419 = vshll.u32 %v1382, 16
      %v1421 = vrot.slane %v1419, 5
      %v1422 = vsel %vm722, %v1417, %v1421
      %v1424 = vshrl.u32 %v1383, 16
      %v1426 = vrot.slane %v1424, 4
      %v1427 = vshll.u32 %v1383, 16
      %v1429 = vrot.slane %v1427, 5
      %v1430 = vor.u32 %v1426, %v1429
      %v1431 = vrot.slane %v1430, 4
      %v1433 = vshll.u32 %v1384, 16
      %v1435 = vrot.slane %v1433, 5
      %v1436 = vsel %vm722, %v1431, %v1435
      %v1438 = vshrl.u32 %v1385, 16
      %v1440 = vrot.slane %v1438, 4
      %v1441 = vshll.u32 %v1385, 16
      %v1443 = vrot.slane %v1441, 5
      %v1444 = vor.u32 %v1440, %v1443
      %v1445 = vrot.slane %v1444, 4
      %v1447 = vshll.u32 %v1386, 16
      %v1449 = vrot.slane %v1447, 5
      %v1450 = vsel %vm722, %v1445, %v1449
      %v1452 = vshrl.u32 %v1387, 16
      %v1454 = vrot.slane %v1452, 4
      %v1455 = vshll.u32 %v1387, 16
      %v1457 = vrot.slane %v1455, 5
      %v1458 = vor.u32 %v1454, %v1457
      %v1459 = vrot.slane %v1458, 4
      %v1461 = vshll.u32 %v1388, 16
      %v1463 = vrot.slane %v1461, 5
      %v1464 = vsel %vm722, %v1459, %v1463
      %v1466 = vshrl.u32 %v1389, 16
      %v1468 = vrot.slane %v1466, 4
      %v1469 = vshll.u32 %v1389, 16
      %v1471 = vrot.slane %v1469, 5
      %v1472 = vor.u32 %v1468, %v1471
      %v1473 = vrot.slane %v1472, 4
      %v1475 = vshll.u32 %v1390, 16
      %v1477 = vrot.slane %v1475, 5
      %v1478 = vsel %vm722, %v1473, %v1477
      %v1480 = vshrl.u32 %v1391, 16
      %v1482 = vrot.slane %v1480, 4
      %v1483 = vshll.u32 %v1391, 16
      %v1485 = vrot.slane %v1483, 5
      %v1486 = vor.u32 %v1482, %v1485
      %v1487 = vrot.slane %v1486, 4
      %v1489 = vshll.u32 %v1392, 16
      %v1491 = vrot.slane %v1489, 5
      %v1492 = vsel %vm722, %v1487, %v1491
      %v1494 = vshrl.u32 %v1393, 16
      %v1496 = vrot.slane %v1494, 4
      %v1497 = vshll.u32 %v1393, 16
      %v1499 = vrot.slane %v1497, 5
      %v1500 = vor.u32 %v1496, %v1499
      %v1501 = vrot.slane %v1500, 4
      %v1503 = vshll.u32 %v1394, 16
      %v1505 = vrot.slane %v1503, 5
      %v1506 = vsel %vm722, %v1501, %v1505
      %v1507 = vld [vmem:[#allocation2] sm:$0xff]
      %v1508 = vld [vmem:[#allocation2 + $0x8] sm:$0xff]
      %v1509 = vld [vmem:[#allocation2 + $0x10] sm:$0xff]
      %v1510 = vld [vmem:[#allocation2 + $0x18] sm:$0xff]
      %v1511 = vld [vmem:[#allocation2 + $0x20] sm:$0xff]
      %v1512 = vld [vmem:[#allocation2 + $0x28] sm:$0xff]
      %v1513 = vld [vmem:[#allocation2 + $0x30] sm:$0xff]
      %v1514 = vld [vmem:[#allocation2 + $0x38] sm:$0xff]
      %s1515 = scalar_lea.vmem %s295, 320
      %v1516 = vld [vmem:[%s1515] sm:$0xf]
      %v1517 = vld [vmem:[%s1515 + $0x4] sm:$0xf]
      %v1518 = vld [vmem:[%s1515 + $0x8] sm:$0xf]
      %v1519 = vld [vmem:[%s1515 + $0xc] sm:$0xf]
      %v1520 = vld [vmem:[%s1515 + $0x10] sm:$0xf]
      %v1521 = vld [vmem:[%s1515 + $0x14] sm:$0xf]
      %v1522 = vld [vmem:[%s1515 + $0x18] sm:$0xf]
      %v1523 = vld [vmem:[%s1515 + $0x1c] sm:$0xf]
      %v1524 = vld [vmem:[%s1515 + $0x20] sm:$0xf]
      %v1525 = vld [vmem:[%s1515 + $0x24] sm:$0xf]
      %v1526 = vld [vmem:[%s1515 + $0x28] sm:$0xf]
      %v1527 = vld [vmem:[%s1515 + $0x2c] sm:$0xf]
      %v1528 = vld [vmem:[%s1515 + $0x30] sm:$0xf]
      %v1529 = vld [vmem:[%s1515 + $0x34] sm:$0xf]
      %v1530 = vld [vmem:[%s1515 + $0x38] sm:$0xf]
      %v1531 = vld [vmem:[%s1515 + $0x3c] sm:$0xf]
      %v1532 = vunpack.c.l.b16 %v1408
      %v1533 = vunpack.c.l.b16 %v1422
      %v1534 = vunpack.c.l.b16 %v1436
      %v1535 = vunpack.c.l.b16 %v1450
      %v1536 = vunpack.c.l.b16 %v1464
      %v1537 = vunpack.c.l.b16 %v1478
      %v1538 = vunpack.c.l.b16 %v1492
      %v1539 = vunpack.c.l.b16 %v1506
      %v1540 = vpack.c.b16 %v1533, %v1532
      %v1541 = vpack.c.b16 %v1535, %v1534
      %v1542 = vpack.c.b16 %v1537, %v1536
      %v1543 = vpack.c.b16 %v1539, %v1538
      %v1564 = vunpack.c.l.b16 %v1516
      %v1565 = vunpack.c.l.b16 %v1517
      %v1566 = vunpack.c.l.b16 %v1518
      %v1567 = vunpack.c.l.b16 %v1519
      %v1568 = vunpack.c.l.b16 %v1520
      %v1569 = vunpack.c.l.b16 %v1521
      %v1570 = vunpack.c.l.b16 %v1522
      %v1571 = vunpack.c.l.b16 %v1523
      %v1572 = vunpack.c.l.b16 %v1524
      %v1573 = vunpack.c.l.b16 %v1525
      %v1574 = vunpack.c.l.b16 %v1526
      %v1575 = vunpack.c.l.b16 %v1527
      %v1576 = vunpack.c.l.b16 %v1528
      %v1577 = vunpack.c.l.b16 %v1529
      %v1578 = vunpack.c.l.b16 %v1530
      %v1579 = vunpack.c.l.b16 %v1531
      %v1580 = vpack.c.b16 %v1565, %v1564
      %v1581 = vpack.c.b16 %v1567, %v1566
      %v1582 = vpack.c.b16 %v1569, %v1568
      %v1583 = vpack.c.b16 %v1571, %v1570
      %v1584 = vpack.c.b16 %v1573, %v1572
      %v1585 = vpack.c.b16 %v1575, %v1574
      %v1586 = vpack.c.b16 %v1577, %v1576
      %v1587 = vpack.c.b16 %v1579, %v1578
      %1596 = vmatprep.subr.bf16.mxu0 0
      %1597 = vmatpush1.bf16.msra.mxu0 %v1587
      %1598 = vmatprep.subr.bf16.mxu0 0
      %1599 = vmatpush1.bf16.msra.mxu0 %v1586
      %1600 = vmatprep.subr.bf16.mxu0 0
      %1601 = vmatpush1.bf16.msra.mxu0 %v1585
      %1602 = vmatprep.subr.bf16.mxu0 0
      %1603 = vmatpush1.bf16.msra.mxu0 %v1584
      %1604 = vmatprep.subr.bf16.mxu0 0
      %1605 = vmatpush1.bf16.msra.mxu0 %v1583
      %1606 = vmatprep.subr.bf16.mxu0 0
      %1607 = vmatpush1.bf16.msra.mxu0 %v1582
      %1608 = vmatprep.subr.bf16.mxu0 0
      %1609 = vmatpush1.bf16.msra.mxu0 %v1581
      %1610 = vmatprep.subr.bf16.mxu0 0
      %1611 = vmatpush1.bf16.msra.mxu0 %v1580
      %1612 = vmatprep.subr.bf16.mxu0 0
      %1613 = vmatpush2.bf16.msra.mxu0 0
      %1614 = vmatprep.subr.bf16.mxu0 0
      %1615 = vmatpush2.bf16.msra.mxu0 0
      %1616 = vmatprep.subr.bf16.mxu0 0
      %1617 = vmatpush2.bf16.msra.mxu0 0
      %1618 = vmatprep.subr.bf16.mxu0 0
      %1619 = vmatpush2.bf16.msra.mxu0 0
      %1620 = vmatprep.subr.bf16.mxu0 0
      %1621 = vmatpush2.bf16.msra.mxu0 0
      %1622 = vmatprep.subr.bf16.mxu0 0
      %1623 = vmatpush2.bf16.msra.mxu0 0
      %1624 = vmatprep.subr.bf16.mxu0 0
      %1625 = vmatpush2.bf16.msra.mxu0 0
      %1626 = vmatprep.subr.bf16.mxu0 0
      %1627 = vmatpush2.bf16.msra.mxu0 0
      %1628 = vmatprep.mubr.bf16.mxu0 0
      %1629 = vmatmul.mubr.bf16.gmra.mxu0 %v1540
      %v1630 = vpop.f32.mrf.mxu0
      %v1631 = vadd.f32 0.0, %v1630
      %v1632 = vpop.f32.mrf.mxu0
      %v1633 = vpop.f32.mrf.mxu0
      %v1634 = vadd.f32 0.0, %v1633
      %v1635 = vpop.f32.mrf.mxu0
      %1636 = vmatprep.mubr.bf16.mxu0 0
      %1637 = vmatmul.mubr.bf16.gmra.mxu0 %v1541
      %v1638 = vpop.f32.mrf.mxu0
      %v1639 = vadd.f32 0.0, %v1638
      %v1640 = vpop.f32.mrf.mxu0
      %v1641 = vpop.f32.mrf.mxu0
      %v1642 = vadd.f32 0.0, %v1641
      %v1643 = vpop.f32.mrf.mxu0
      %1644 = vmatprep.mubr.bf16.mxu0 0
      %1645 = vmatmul.mubr.bf16.gmra.mxu0 %v1542
      %v1646 = vpop.f32.mrf.mxu0
      %v1647 = vadd.f32 0.0, %v1646
      %v1648 = vpop.f32.mrf.mxu0
      %v1649 = vpop.f32.mrf.mxu0
      %v1650 = vadd.f32 0.0, %v1649
      %v1651 = vpop.f32.mrf.mxu0
      %1652 = vmatprep.mubr.bf16.mxu0 0
      %1653 = vmatmul.mubr.bf16.gmra.mxu0 %v1543
      %v1654 = vpop.f32.mrf.mxu0
      %v1655 = vadd.f32 0.0, %v1654
      %v1656 = vpop.f32.mrf.mxu0
      %v1657 = vpop.f32.mrf.mxu0
      %v1658 = vadd.f32 0.0, %v1657
      %v1659 = vpop.f32.mrf.mxu0
      %1660 = vdwg.mxu0
      %v1661 = vadd.f32 %v1507, %v1631
      %v1662 = vadd.f32 %v1508, %v1634
      %v1663 = vadd.f32 %v1509, %v1639
      %v1664 = vadd.f32 %v1510, %v1642
      %v1665 = vadd.f32 %v1511, %v1647
      %v1666 = vadd.f32 %v1512, %v1650
      %v1667 = vadd.f32 %v1513, %v1655
      %v1668 = vadd.f32 %v1514, %v1658
      %1669 = vst [vmem:[#allocation2] sm:$0xff] %v1661
      %1670 = vst [vmem:[#allocation2 + $0x8] sm:$0xff] %v1662
      %1671 = vst [vmem:[#allocation2 + $0x10] sm:$0xff] %v1663
      %1672 = vst [vmem:[#allocation2 + $0x18] sm:$0xff] %v1664
      %1673 = vst [vmem:[#allocation2 + $0x20] sm:$0xff] %v1665
      %1674 = vst [vmem:[#allocation2 + $0x28] sm:$0xff] %v1666
      %1675 = vst [vmem:[#allocation2 + $0x30] sm:$0xff] %v1667
      %1676 = vst [vmem:[#allocation2 + $0x38] sm:$0xff] %v1668
      %s1677 = scalar_lea.vmem %s290, 8
      %v1678 = vld [vmem:[%s1677] sm:$0xf]
      %v1679 = vld [vmem:[%s1677 + $0x8] sm:$0xf]
      %v1680 = vld [vmem:[%s1677 + $0x10] sm:$0xf]
      %v1681 = vld [vmem:[%s1677 + $0x18] sm:$0xf]
      %v1682 = vld [vmem:[%s1677 + $0x20] sm:$0xf]
      %v1683 = vld [vmem:[%s1677 + $0x28] sm:$0xf]
      %v1684 = vld [vmem:[%s1677 + $0x30] sm:$0xf]
      %v1685 = vld [vmem:[%s1677 + $0x38] sm:$0xf]
      %v1686 = vld [vmem:[#allocation2] sm:$0xff]
      %v1687 = vld [vmem:[#allocation2 + $0x8] sm:$0xff]
      %v1688 = vld [vmem:[#allocation2 + $0x10] sm:$0xff]
      %v1689 = vld [vmem:[#allocation2 + $0x18] sm:$0xff]
      %v1690 = vld [vmem:[#allocation2 + $0x20] sm:$0xff]
      %v1691 = vld [vmem:[#allocation2 + $0x28] sm:$0xff]
      %v1692 = vld [vmem:[#allocation2 + $0x30] sm:$0xff]
      %v1693 = vld [vmem:[#allocation2 + $0x38] sm:$0xff]
      %s1694 = scalar_lea.vmem %s295, 384
      %v1695 = vld [vmem:[%s1694] sm:$0xf]
      %v1696 = vld [vmem:[%s1694 + $0x4] sm:$0xf]
      %v1697 = vld [vmem:[%s1694 + $0x8] sm:$0xf]
      %v1698 = vld [vmem:[%s1694 + $0xc] sm:$0xf]
      %v1699 = vld [vmem:[%s1694 + $0x10] sm:$0xf]
      %v1700 = vld [vmem:[%s1694 + $0x14] sm:$0xf]
      %v1701 = vld [vmem:[%s1694 + $0x18] sm:$0xf]
      %v1702 = vld [vmem:[%s1694 + $0x1c] sm:$0xf]
      %v1703 = vld [vmem:[%s1694 + $0x20] sm:$0xf]
      %v1704 = vld [vmem:[%s1694 + $0x24] sm:$0xf]
      %v1705 = vld [vmem:[%s1694 + $0x28] sm:$0xf]
      %v1706 = vld [vmem:[%s1694 + $0x2c] sm:$0xf]
      %v1707 = vld [vmem:[%s1694 + $0x30] sm:$0xf]
      %v1708 = vld [vmem:[%s1694 + $0x34] sm:$0xf]
      %v1709 = vld [vmem:[%s1694 + $0x38] sm:$0xf]
      %v1710 = vld [vmem:[%s1694 + $0x3c] sm:$0xf]
      %v1719 = vunpack.c.l.b16 %v1678
      %v1720 = vunpack.c.l.b16 %v1679
      %v1721 = vunpack.c.l.b16 %v1680
      %v1722 = vunpack.c.l.b16 %v1681
      %v1723 = vunpack.c.l.b16 %v1682
      %v1724 = vunpack.c.l.b16 %v1683
      %v1725 = vunpack.c.l.b16 %v1684
      %v1726 = vunpack.c.l.b16 %v1685
      %v1727 = vpack.c.b16 %v1720, %v1719
      %v1728 = vpack.c.b16 %v1722, %v1721
      %v1729 = vpack.c.b16 %v1724, %v1723
      %v1730 = vpack.c.b16 %v1726, %v1725
      %v1751 = vunpack.c.l.b16 %v1695
      %v1752 = vunpack.c.l.b16 %v1696
      %v1753 = vunpack.c.l.b16 %v1697
      %v1754 = vunpack.c.l.b16 %v1698
      %v1755 = vunpack.c.l.b16 %v1699
      %v1756 = vunpack.c.l.b16 %v1700
      %v1757 = vunpack.c.l.b16 %v1701
      %v1758 = vunpack.c.l.b16 %v1702
      %v1759 = vunpack.c.l.b16 %v1703
      %v1760 = vunpack.c.l.b16 %v1704
      %v1761 = vunpack.c.l.b16 %v1705
      %v1762 = vunpack.c.l.b16 %v1706
      %v1763 = vunpack.c.l.b16 %v1707
      %v1764 = vunpack.c.l.b16 %v1708
      %v1765 = vunpack.c.l.b16 %v1709
      %v1766 = vunpack.c.l.b16 %v1710
      %v1767 = vpack.c.b16 %v1752, %v1751
      %v1768 = vpack.c.b16 %v1754, %v1753
      %v1769 = vpack.c.b16 %v1756, %v1755
      %v1770 = vpack.c.b16 %v1758, %v1757
      %v1771 = vpack.c.b16 %v1760, %v1759
      %v1772 = vpack.c.b16 %v1762, %v1761
      %v1773 = vpack.c.b16 %v1764, %v1763
      %v1774 = vpack.c.b16 %v1766, %v1765
      %1783 = vmatprep.subr.bf16.mxu0 0
      %1784 = vmatpush1.bf16.msra.mxu0 %v1774
      %1785 = vmatprep.subr.bf16.mxu0 0
      %1786 = vmatpush1.bf16.msra.mxu0 %v1773
      %1787 = vmatprep.subr.bf16.mxu0 0
      %1788 = vmatpush1.bf16.msra.mxu0 %v1772
      %1789 = vmatprep.subr.bf16.mxu0 0
      %1790 = vmatpush1.bf16.msra.mxu0 %v1771
      %1791 = vmatprep.subr.bf16.mxu0 0
      %1792 = vmatpush1.bf16.msra.mxu0 %v1770
      %1793 = vmatprep.subr.bf16.mxu0 0
      %1794 = vmatpush1.bf16.msra.mxu0 %v1769
      %1795 = vmatprep.subr.bf16.mxu0 0
      %1796 = vmatpush1.bf16.msra.mxu0 %v1768
      %1797 = vmatprep.subr.bf16.mxu0 0
      %1798 = vmatpush1.bf16.msra.mxu0 %v1767
      %1799 = vmatprep.subr.bf16.mxu0 0
      %1800 = vmatpush2.bf16.msra.mxu0 0
      %1801 = vmatprep.subr.bf16.mxu0 0
      %1802 = vmatpush2.bf16.msra.mxu0 0
      %1803 = vmatprep.subr.bf16.mxu0 0
      %1804 = vmatpush2.bf16.msra.mxu0 0
      %1805 = vmatprep.subr.bf16.mxu0 0
      %1806 = vmatpush2.bf16.msra.mxu0 0
      %1807 = vmatprep.subr.bf16.mxu0 0
      %1808 = vmatpush2.bf16.msra.mxu0 0
      %1809 = vmatprep.subr.bf16.mxu0 0
      %1810 = vmatpush2.bf16.msra.mxu0 0
      %1811 = vmatprep.subr.bf16.mxu0 0
      %1812 = vmatpush2.bf16.msra.mxu0 0
      %1813 = vmatprep.subr.bf16.mxu0 0
      %1814 = vmatpush2.bf16.msra.mxu0 0
      %1815 = vmatprep.mubr.bf16.mxu0 0
      %1816 = vmatmul.mubr.bf16.gmra.mxu0 %v1727
      %v1817 = vpop.f32.mrf.mxu0
      %v1818 = vadd.f32 0.0, %v1817
      %v1819 = vpop.f32.mrf.mxu0
      %v1820 = vpop.f32.mrf.mxu0
      %v1821 = vadd.f32 0.0, %v1820
      %v1822 = vpop.f32.mrf.mxu0
      %1823 = vmatprep.mubr.bf16.mxu0 0
      %1824 = vmatmul.mubr.bf16.gmra.mxu0 %v1728
      %v1825 = vpop.f32.mrf.mxu0
      %v1826 = vadd.f32 0.0, %v1825
      %v1827 = vpop.f32.mrf.mxu0
      %v1828 = vpop.f32.mrf.mxu0
      %v1829 = vadd.f32 0.0, %v1828
      %v1830 = vpop.f32.mrf.mxu0
      %1831 = vmatprep.mubr.bf16.mxu0 0
      %1832 = vmatmul.mubr.bf16.gmra.mxu0 %v1729
      %v1833 = vpop.f32.mrf.mxu0
      %v1834 = vadd.f32 0.0, %v1833
      %v1835 = vpop.f32.mrf.mxu0
      %v1836 = vpop.f32.mrf.mxu0
      %v1837 = vadd.f32 0.0, %v1836
      %v1838 = vpop.f32.mrf.mxu0
      %1839 = vmatprep.mubr.bf16.mxu0 0
      %1840 = vmatmul.mubr.bf16.gmra.mxu0 %v1730
      %v1841 = vpop.f32.mrf.mxu0
      %v1842 = vadd.f32 0.0, %v1841
      %v1843 = vpop.f32.mrf.mxu0
      %v1844 = vpop.f32.mrf.mxu0
      %v1845 = vadd.f32 0.0, %v1844
      %v1846 = vpop.f32.mrf.mxu0
      %1847 = vdwg.mxu0
      %v1848 = vadd.f32 %v1686, %v1818
      %v1849 = vadd.f32 %v1687, %v1821
      %v1850 = vadd.f32 %v1688, %v1826
      %v1851 = vadd.f32 %v1689, %v1829
      %v1852 = vadd.f32 %v1690, %v1834
      %v1853 = vadd.f32 %v1691, %v1837
      %v1854 = vadd.f32 %v1692, %v1842
      %v1855 = vadd.f32 %v1693, %v1845
      %1856 = vst [vmem:[#allocation2] sm:$0xff] %v1848
      %1857 = vst [vmem:[#allocation2 + $0x8] sm:$0xff] %v1849
      %1858 = vst [vmem:[#allocation2 + $0x10] sm:$0xff] %v1850
      %1859 = vst [vmem:[#allocation2 + $0x18] sm:$0xff] %v1851
      %1860 = vst [vmem:[#allocation2 + $0x20] sm:$0xff] %v1852
      %1861 = vst [vmem:[#allocation2 + $0x28] sm:$0xff] %v1853
      %1862 = vst [vmem:[#allocation2 + $0x30] sm:$0xff] %v1854
      %1863 = vst [vmem:[#allocation2 + $0x38] sm:$0xff] %v1855
      %s1864 = scalar_lea.vmem %s290, 80
      %v1865 = vld [vmem:[%s1864] sm:$0xf]
      %v1866 = vld [vmem:[%s1864 + $0x8] sm:$0xf]
      %v1867 = vld [vmem:[%s1864 + $0x10] sm:$0xf]
      %v1868 = vld [vmem:[%s1864 + $0x18] sm:$0xf]
      %v1869 = vld [vmem:[%s1864 + $0x20] sm:$0xf]
      %v1870 = vld [vmem:[%s1864 + $0x28] sm:$0xf]
      %v1871 = vld [vmem:[%s1864 + $0x30] sm:$0xf]
      %v1872 = vld [vmem:[%s1864 + $0x38] sm:$0xf]
      %v1873 = vld [vmem:[#allocation2] sm:$0xff]
      %v1874 = vld [vmem:[#allocation2 + $0x8] sm:$0xff]
      %v1875 = vld [vmem:[#allocation2 + $0x10] sm:$0xff]
      %v1876 = vld [vmem:[#allocation2 + $0x18] sm:$0xff]
      %v1877 = vld [vmem:[#allocation2 + $0x20] sm:$0xff]
      %v1878 = vld [vmem:[#allocation2 + $0x28] sm:$0xff]
      %v1879 = vld [vmem:[#allocation2 + $0x30] sm:$0xff]
      %v1880 = vld [vmem:[#allocation2 + $0x38] sm:$0xff]
      %s1881 = scalar_lea.vmem %s295, 448
      %v1882 = vld [vmem:[%s1881] sm:$0xf]
      %v1883 = vld [vmem:[%s1881 + $0x4] sm:$0xf]
      %v1884 = vld [vmem:[%s1881 + $0x8] sm:$0xf]
      %v1885 = vld [vmem:[%s1881 + $0xc] sm:$0xf]
      %v1886 = vld [vmem:[%s1881 + $0x10] sm:$0xf]
      %v1887 = vld [vmem:[%s1881 + $0x14] sm:$0xf]
      %v1888 = vld [vmem:[%s1881 + $0x18] sm:$0xf]
      %v1889 = vld [vmem:[%s1881 + $0x1c] sm:$0xf]
      %v1890 = vld [vmem:[%s1881 + $0x20] sm:$0xf]
      %v1891 = vld [vmem:[%s1881 + $0x24] sm:$0xf]
      %v1892 = vld [vmem:[%s1881 + $0x28] sm:$0xf]
      %v1893 = vld [vmem:[%s1881 + $0x2c] sm:$0xf]
      %v1894 = vld [vmem:[%s1881 + $0x30] sm:$0xf]
      %v1895 = vld [vmem:[%s1881 + $0x34] sm:$0xf]
      %v1896 = vld [vmem:[%s1881 + $0x38] sm:$0xf]
      %v1897 = vld [vmem:[%s1881 + $0x3c] sm:$0xf]
      %v1906 = vunpack.c.l.b16 %v1865
      %v1907 = vunpack.c.l.b16 %v1866
      %v1908 = vunpack.c.l.b16 %v1867
      %v1909 = vunpack.c.l.b16 %v1868
      %v1910 = vunpack.c.l.b16 %v1869
      %v1911 = vunpack.c.l.b16 %v1870
      %v1912 = vunpack.c.l.b16 %v1871
      %v1913 = vunpack.c.l.b16 %v1872
      %v1914 = vpack.c.b16 %v1907, %v1906
      %v1915 = vpack.c.b16 %v1909, %v1908
      %v1916 = vpack.c.b16 %v1911, %v1910
      %v1917 = vpack.c.b16 %v1913, %v1912
      %v1938 = vunpack.c.l.b16 %v1882
      %v1939 = vunpack.c.l.b16 %v1883
      %v1940 = vunpack.c.l.b16 %v1884
      %v1941 = vunpack.c.l.b16 %v1885
      %v1942 = vunpack.c.l.b16 %v1886
      %v1943 = vunpack.c.l.b16 %v1887
      %v1944 = vunpack.c.l.b16 %v1888
      %v1945 = vunpack.c.l.b16 %v1889
      %v1946 = vunpack.c.l.b16 %v1890
      %v1947 = vunpack.c.l.b16 %v1891
      %v1948 = vunpack.c.l.b16 %v1892
      %v1949 = vunpack.c.l.b16 %v1893
      %v1950 = vunpack.c.l.b16 %v1894
      %v1951 = vunpack.c.l.b16 %v1895
      %v1952 = vunpack.c.l.b16 %v1896
      %v1953 = vunpack.c.l.b16 %v1897
      %v1954 = vpack.c.b16 %v1939, %v1938
      %v1955 = vpack.c.b16 %v1941, %v1940
      %v1956 = vpack.c.b16 %v1943, %v1942
      %v1957 = vpack.c.b16 %v1945, %v1944
      %v1958 = vpack.c.b16 %v1947, %v1946
      %v1959 = vpack.c.b16 %v1949, %v1948
      %v1960 = vpack.c.b16 %v1951, %v1950
      %v1961 = vpack.c.b16 %v1953, %v1952
      %1970 = vmatprep.subr.bf16.mxu0 0
      %1971 = vmatpush1.bf16.msra.mxu0 %v1961
      %1972 = vmatprep.subr.bf16.mxu0 0
      %1973 = vmatpush1.bf16.msra.mxu0 %v1960
      %1974 = vmatprep.subr.bf16.mxu0 0
      %1975 = vmatpush1.bf16.msra.mxu0 %v1959
      %1976 = vmatprep.subr.bf16.mxu0 0
      %1977 = vmatpush1.bf16.msra.mxu0 %v1958
      %1978 = vmatprep.subr.bf16.mxu0 0
      %1979 = vmatpush1.bf16.msra.mxu0 %v1957
      %1980 = vmatprep.subr.bf16.mxu0 0
      %1981 = vmatpush1.bf16.msra.mxu0 %v1956
      %1982 = vmatprep.subr.bf16.mxu0 0
      %1983 = vmatpush1.bf16.msra.mxu0 %v1955
      %1984 = vmatprep.subr.bf16.mxu0 0
      %1985 = vmatpush1.bf16.msra.mxu0 %v1954
      %1986 = vmatprep.subr.bf16.mxu0 0
      %1987 = vmatpush2.bf16.msra.mxu0 0
      %1988 = vmatprep.subr.bf16.mxu0 0
      %1989 = vmatpush2.bf16.msra.mxu0 0
      %1990 = vmatprep.subr.bf16.mxu0 0
      %1991 = vmatpush2.bf16.msra.mxu0 0
      %1992 = vmatprep.subr.bf16.mxu0 0
      %1993 = vmatpush2.bf16.msra.mxu0 0
      %1994 = vmatprep.subr.bf16.mxu0 0
      %1995 = vmatpush2.bf16.msra.mxu0 0
      %1996 = vmatprep.subr.bf16.mxu0 0
      %1997 = vmatpush2.bf16.msra.mxu0 0
      %1998 = vmatprep.subr.bf16.mxu0 0
      %1999 = vmatpush2.bf16.msra.mxu0 0
      %2000 = vmatprep.subr.bf16.mxu0 0
      %2001 = vmatpush2.bf16.msra.mxu0 0
      %2002 = vmatprep.mubr.bf16.mxu0 0
      %2003 = vmatmul.mubr.bf16.gmra.mxu0 %v1914
      %v2004 = vpop.f32.mrf.mxu0
      %v2005 = vadd.f32 0.0, %v2004
      %v2006 = vpop.f32.mrf.mxu0
      %v2007 = vpop.f32.mrf.mxu0
      %v2008 = vadd.f32 0.0, %v2007
      %v2009 = vpop.f32.mrf.mxu0
      %2010 = vmatprep.mubr.bf16.mxu0 0
      %2011 = vmatmul.mubr.bf16.gmra.mxu0 %v1915
      %v2012 = vpop.f32.mrf.mxu0
      %v2013 = vadd.f32 0.0, %v2012
      %v2014 = vpop.f32.mrf.mxu0
      %v2015 = vpop.f32.mrf.mxu0
      %v2016 = vadd.f32 0.0, %v2015
      %v2017 = vpop.f32.mrf.mxu0
      %2018 = vmatprep.mubr.bf16.mxu0 0
      %2019 = vmatmul.mubr.bf16.gmra.mxu0 %v1916
      %v2020 = vpop.f32.mrf.mxu0
      %v2021 = vadd.f32 0.0, %v2020
      %v2022 = vpop.f32.mrf.mxu0
      %v2023 = vpop.f32.mrf.mxu0
      %v2024 = vadd.f32 0.0, %v2023
      %v2025 = vpop.f32.mrf.mxu0
      %2026 = vmatprep.mubr.bf16.mxu0 0
      %2027 = vmatmul.mubr.bf16.gmra.mxu0 %v1917
      %v2028 = vpop.f32.mrf.mxu0
      %v2029 = vadd.f32 0.0, %v2028
      %v2030 = vpop.f32.mrf.mxu0
      %v2031 = vpop.f32.mrf.mxu0
      %v2032 = vadd.f32 0.0, %v2031
      %v2033 = vpop.f32.mrf.mxu0
      %2034 = vdwg.mxu0
      %v2035 = vadd.f32 %v1873, %v2005
      %v2036 = vadd.f32 %v1874, %v2008
      %v2037 = vadd.f32 %v1875, %v2013
      %v2038 = vadd.f32 %v1876, %v2016
      %v2039 = vadd.f32 %v1877, %v2021
      %v2040 = vadd.f32 %v1878, %v2024
      %v2041 = vadd.f32 %v1879, %v2029
      %v2042 = vadd.f32 %v1880, %v2032
      %2043 = vst [vmem:[#allocation2] sm:$0xff] %v2035
      %2044 = vst [vmem:[#allocation2 + $0x8] sm:$0xff] %v2036
      %2045 = vst [vmem:[#allocation2 + $0x10] sm:$0xff] %v2037
      %2046 = vst [vmem:[#allocation2 + $0x18] sm:$0xff] %v2038
      %2047 = vst [vmem:[#allocation2 + $0x20] sm:$0xff] %v2039
      %2048 = vst [vmem:[#allocation2 + $0x28] sm:$0xff] %v2040
      %2049 = vst [vmem:[#allocation2 + $0x30] sm:$0xff] %v2041
      %2050 = vst [vmem:[#allocation2 + $0x38] sm:$0xff] %v2042
      %v2051 = vld [vmem:[%s1677] sm:$0xf]
      %v2052 = vld [vmem:[%s1677 + $0x4] sm:$0x1]
      %v2053 = vld [vmem:[%s1677 + $0x8] sm:$0xf]
      %v2054 = vld [vmem:[%s1677 + $0xc] sm:$0x1]
      %v2055 = vld [vmem:[%s1677 + $0x10] sm:$0xf]
      %v2056 = vld [vmem:[%s1677 + $0x14] sm:$0x1]
      %v2057 = vld [vmem:[%s1677 + $0x18] sm:$0xf]
      %v2058 = vld [vmem:[%s1677 + $0x1c] sm:$0x1]
      %v2059 = vld [vmem:[%s1677 + $0x20] sm:$0xf]
      %v2060 = vld [vmem:[%s1677 + $0x24] sm:$0x1]
      %v2061 = vld [vmem:[%s1677 + $0x28] sm:$0xf]
      %v2062 = vld [vmem:[%s1677 + $0x2c] sm:$0x1]
      %v2063 = vld [vmem:[%s1677 + $0x30] sm:$0xf]
      %v2064 = vld [vmem:[%s1677 + $0x34] sm:$0x1]
      %v2065 = vld [vmem:[%s1677 + $0x38] sm:$0xf]
      %v2066 = vld [vmem:[%s1677 + $0x3c] sm:$0x1]
      %v2068 = vshrl.u32 %v2051, 16
      %v2070 = vrot.slane %v2068, 4
      %v2071 = vshll.u32 %v2051, 16
      %v2073 = vrot.slane %v2071, 5
      %v2074 = vor.u32 %v2070, %v2073
      %v2075 = vrot.slane %v2074, 4
      %v2077 = vshll.u32 %v2052, 16
      %v2079 = vrot.slane %v2077, 5
      %v2080 = vsel %vm722, %v2075, %v2079
      %v2082 = vshrl.u32 %v2053, 16
      %v2084 = vrot.slane %v2082, 4
      %v2085 = vshll.u32 %v2053, 16
      %v2087 = vrot.slane %v2085, 5
      %v2088 = vor.u32 %v2084, %v2087
      %v2089 = vrot.slane %v2088, 4
      %v2091 = vshll.u32 %v2054, 16
      %v2093 = vrot.slane %v2091, 5
      %v2094 = vsel %vm722, %v2089, %v2093
      %v2096 = vshrl.u32 %v2055, 16
      %v2098 = vrot.slane %v2096, 4
      %v2099 = vshll.u32 %v2055, 16
      %v2101 = vrot.slane %v2099, 5
      %v2102 = vor.u32 %v2098, %v2101
      %v2103 = vrot.slane %v2102, 4
      %v2105 = vshll.u32 %v2056, 16
      %v2107 = vrot.slane %v2105, 5
      %v2108 = vsel %vm722, %v2103, %v2107
      %v2110 = vshrl.u32 %v2057, 16
      %v2112 = vrot.slane %v2110, 4
      %v2113 = vshll.u32 %v2057, 16
      %v2115 = vrot.slane %v2113, 5
      %v2116 = vor.u32 %v2112, %v2115
      %v2117 = vrot.slane %v2116, 4
      %v2119 = vshll.u32 %v2058, 16
      %v2121 = vrot.slane %v2119, 5
      %v2122 = vsel %vm722, %v2117, %v2121
      %v2124 = vshrl.u32 %v2059, 16
      %v2126 = vrot.slane %v2124, 4
      %v2127 = vshll.u32 %v2059, 16
      %v2129 = vrot.slane %v2127, 5
      %v2130 = vor.u32 %v2126, %v2129
      %v2131 = vrot.slane %v2130, 4
      %v2133 = vshll.u32 %v2060, 16
      %v2135 = vrot.slane %v2133, 5
      %v2136 = vsel %vm722, %v2131, %v2135
      %v2138 = vshrl.u32 %v2061, 16
      %v2140 = vrot.slane %v2138, 4
      %v2141 = vshll.u32 %v2061, 16
      %v2143 = vrot.slane %v2141, 5
      %v2144 = vor.u32 %v2140, %v2143
      %v2145 = vrot.slane %v2144, 4
      %v2147 = vshll.u32 %v2062, 16
      %v2149 = vrot.slane %v2147, 5
      %v2150 = vsel %vm722, %v2145, %v2149
      %v2152 = vshrl.u32 %v2063, 16
      %v2154 = vrot.slane %v2152, 4
      %v2155 = vshll.u32 %v2063, 16
      %v2157 = vrot.slane %v2155, 5
      %v2158 = vor.u32 %v2154, %v2157
      %v2159 = vrot.slane %v2158, 4
      %v2161 = vshll.u32 %v2064, 16
      %v2163 = vrot.slane %v2161, 5
      %v2164 = vsel %vm722, %v2159, %v2163
      %v2166 = vshrl.u32 %v2065, 16
      %v2168 = vrot.slane %v2166, 4
      %v2169 = vshll.u32 %v2065, 16
      %v2171 = vrot.slane %v2169, 5
      %v2172 = vor.u32 %v2168, %v2171
      %v2173 = vrot.slane %v2172, 4
      %v2175 = vshll.u32 %v2066, 16
      %v2177 = vrot.slane %v2175, 5
      %v2178 = vsel %vm722, %v2173, %v2177
      %v2179 = vld [vmem:[#allocation2] sm:$0xff]
      %v2180 = vld [vmem:[#allocation2 + $0x8] sm:$0xff]
      %v2181 = vld [vmem:[#allocation2 + $0x10] sm:$0xff]
      %v2182 = vld [vmem:[#allocation2 + $0x18] sm:$0xff]
      %v2183 = vld [vmem:[#allocation2 + $0x20] sm:$0xff]
      %v2184 = vld [vmem:[#allocation2 + $0x28] sm:$0xff]
      %v2185 = vld [vmem:[#allocation2 + $0x30] sm:$0xff]
      %v2186 = vld [vmem:[#allocation2 + $0x38] sm:$0xff]
      %s2187 = scalar_lea.vmem %s295, 512
      %v2188 = vld [vmem:[%s2187] sm:$0xf]
      %v2189 = vld [vmem:[%s2187 + $0x4] sm:$0xf]
      %v2190 = vld [vmem:[%s2187 + $0x8] sm:$0xf]
      %v2191 = vld [vmem:[%s2187 + $0xc] sm:$0xf]
      %v2192 = vld [vmem:[%s2187 + $0x10] sm:$0xf]
      %v2193 = vld [vmem:[%s2187 + $0x14] sm:$0xf]
      %v2194 = vld [vmem:[%s2187 + $0x18] sm:$0xf]
      %v2195 = vld [vmem:[%s2187 + $0x1c] sm:$0xf]
      %v2196 = vld [vmem:[%s2187 + $0x20] sm:$0xf]
      %v2197 = vld [vmem:[%s2187 + $0x24] sm:$0xf]
      %v2198 = vld [vmem:[%s2187 + $0x28] sm:$0xf]
      %v2199 = vld [vmem:[%s2187 + $0x2c] sm:$0xf]
      %v2200 = vld [vmem:[%s2187 + $0x30] sm:$0xf]
      %v2201 = vld [vmem:[%s2187 + $0x34] sm:$0xf]
      %v2202 = vld [vmem:[%s2187 + $0x38] sm:$0xf]
      %v2203 = vld [vmem:[%s2187 + $0x3c] sm:$0xf]
      %v2204 = vunpack.c.l.b16 %v2080
      %v2205 = vunpack.c.l.b16 %v2094
      %v2206 = vunpack.c.l.b16 %v2108
      %v2207 = vunpack.c.l.b16 %v2122
      %v2208 = vunpack.c.l.b16 %v2136
      %v2209 = vunpack.c.l.b16 %v2150
      %v2210 = vunpack.c.l.b16 %v2164
      %v2211 = vunpack.c.l.b16 %v2178
      %v2212 = vpack.c.b16 %v2205, %v2204
      %v2213 = vpack.c.b16 %v2207, %v2206
      %v2214 = vpack.c.b16 %v2209, %v2208
      %v2215 = vpack.c.b16 %v2211, %v2210
      %v2236 = vunpack.c.l.b16 %v2188
      %v2237 = vunpack.c.l.b16 %v2189
      %v2238 = vunpack.c.l.b16 %v2190
      %v2239 = vunpack.c.l.b16 %v2191
      %v2240 = vunpack.c.l.b16 %v2192
      %v2241 = vunpack.c.l.b16 %v2193
      %v2242 = vunpack.c.l.b16 %v2194
      %v2243 = vunpack.c.l.b16 %v2195
      %v2244 = vunpack.c.l.b16 %v2196
      %v2245 = vunpack.c.l.b16 %v2197
      %v2246 = vunpack.c.l.b16 %v2198
      %v2247 = vunpack.c.l.b16 %v2199
      %v2248 = vunpack.c.l.b16 %v2200
      %v2249 = vunpack.c.l.b16 %v2201
      %v2250 = vunpack.c.l.b16 %v2202
      %v2251 = vunpack.c.l.b16 %v2203
      %v2252 = vpack.c.b16 %v2237, %v2236
      %v2253 = vpack.c.b16 %v2239, %v2238
      %v2254 = vpack.c.b16 %v2241, %v2240
      %v2255 = vpack.c.b16 %v2243, %v2242
      %v2256 = vpack.c.b16 %v2245, %v2244
      %v2257 = vpack.c.b16 %v2247, %v2246
      %v2258 = vpack.c.b16 %v2249, %v2248
      %v2259 = vpack.c.b16 %v2251, %v2250
      %2268 = vmatprep.subr.bf16.mxu0 0
      %2269 = vmatpush1.bf16.msra.mxu0 %v2259
      %2270 = vmatprep.subr.bf16.mxu0 0
      %2271 = vmatpush1.bf16.msra.mxu0 %v2258
      %2272 = vmatprep.subr.bf16.mxu0 0
      %2273 = vmatpush1.bf16.msra.mxu0 %v2257
      %2274 = vmatprep.subr.bf16.mxu0 0
      %2275 = vmatpush1.bf16.msra.mxu0 %v2256
      %2276 = vmatprep.subr.bf16.mxu0 0
      %2277 = vmatpush1.bf16.msra.mxu0 %v2255
      %2278 = vmatprep.subr.bf16.mxu0 0
      %2279 = vmatpush1.bf16.msra.mxu0 %v2254
      %2280 = vmatprep.subr.bf16.mxu0 0
      %2281 = vmatpush1.bf16.msra.mxu0 %v2253
      %2282 = vmatprep.subr.bf16.mxu0 0
      %2283 = vmatpush1.bf16.msra.mxu0 %v2252
      %2284 = vmatprep.subr.bf16.mxu0 0
      %2285 = vmatpush2.bf16.msra.mxu0 0
      %2286 = vmatprep.subr.bf16.mxu0 0
      %2287 = vmatpush2.bf16.msra.mxu0 0
      %2288 = vmatprep.subr.bf16.mxu0 0
      %2289 = vmatpush2.bf16.msra.mxu0 0
      %2290 = vmatprep.subr.bf16.mxu0 0
      %2291 = vmatpush2.bf16.msra.mxu0 0
      %2292 = vmatprep.subr.bf16.mxu0 0
      %2293 = vmatpush2.bf16.msra.mxu0 0
      %2294 = vmatprep.subr.bf16.mxu0 0
      %2295 = vmatpush2.bf16.msra.mxu0 0
      %2296 = vmatprep.subr.bf16.mxu0 0
      %2297 = vmatpush2.bf16.msra.mxu0 0
      %2298 = vmatprep.subr.bf16.mxu0 0
      %2299 = vmatpush2.bf16.msra.mxu0 0
      %2300 = vmatprep.mubr.bf16.mxu0 0
      %2301 = vmatmul.mubr.bf16.gmra.mxu0 %v2212
      %v2302 = vpop.f32.mrf.mxu0
      %v2303 = vadd.f32 0.0, %v2302
      %v2304 = vpop.f32.mrf.mxu0
      %v2305 = vpop.f32.mrf.mxu0
      %v2306 = vadd.f32 0.0, %v2305
      %v2307 = vpop.f32.mrf.mxu0
      %2308 = vmatprep.mubr.bf16.mxu0 0
      %2309 = vmatmul.mubr.bf16.gmra.mxu0 %v2213
      %v2310 = vpop.f32.mrf.mxu0
      %v2311 = vadd.f32 0.0, %v2310
      %v2312 = vpop.f32.mrf.mxu0
      %v2313 = vpop.f32.mrf.mxu0
      %v2314 = vadd.f32 0.0, %v2313
      %v2315 = vpop.f32.mrf.mxu0
      %2316 = vmatprep.mubr.bf16.mxu0 0
      %2317 = vmatmul.mubr.bf16.gmra.mxu0 %v2214
      %v2318 = vpop.f32.mrf.mxu0
      %v2319 = vadd.f32 0.0, %v2318
      %v2320 = vpop.f32.mrf.mxu0
      %v2321 = vpop.f32.mrf.mxu0
      %v2322 = vadd.f32 0.0, %v2321
      %v2323 = vpop.f32.mrf.mxu0
      %2324 = vmatprep.mubr.bf16.mxu0 0
      %2325 = vmatmul.mubr.bf16.gmra.mxu0 %v2215
      %v2326 = vpop.f32.mrf.mxu0
      %v2327 = vadd.f32 0.0, %v2326
      %v2328 = vpop.f32.mrf.mxu0
      %v2329 = vpop.f32.mrf.mxu0
      %v2330 = vadd.f32 0.0, %v2329
      %v2331 = vpop.f32.mrf.mxu0
      %2332 = vdwg.mxu0
      %v2333 = vadd.f32 %v2179, %v2303
      %v2334 = vadd.f32 %v2180, %v2306
      %v2335 = vadd.f32 %v2181, %v2311
      %v2336 = vadd.f32 %v2182, %v2314
      %v2337 = vadd.f32 %v2183, %v2319
      %v2338 = vadd.f32 %v2184, %v2322
      %v2339 = vadd.f32 %v2185, %v2327
      %v2340 = vadd.f32 %v2186, %v2330
      %2341 = vst [vmem:[#allocation2] sm:$0xff] %v2333
      %2342 = vst [vmem:[#allocation2 + $0x8] sm:$0xff] %v2334
      %2343 = vst [vmem:[#allocation2 + $0x10] sm:$0xff] %v2335
      %2344 = vst [vmem:[#allocation2 + $0x18] sm:$0xff] %v2336
      %2345 = vst [vmem:[#allocation2 + $0x20] sm:$0xff] %v2337
      %2346 = vst [vmem:[#allocation2 + $0x28] sm:$0xff] %v2338
      %2347 = vst [vmem:[#allocation2 + $0x30] sm:$0xff] %v2339
      %2348 = vst [vmem:[#allocation2 + $0x38] sm:$0xff] %v2340
      %v2349 = vld [vmem:[#allocation2] sm:$0xff]
      %v2350 = vld [vmem:[#allocation2 + $0x8] sm:$0xff]
      %v2351 = vld [vmem:[#allocation2 + $0x10] sm:$0xff]
      %v2352 = vld [vmem:[#allocation2 + $0x18] sm:$0xff]
      %v2353 = vld [vmem:[#allocation2 + $0x20] sm:$0xff]
      %v2354 = vld [vmem:[#allocation2 + $0x28] sm:$0xff]
      %v2355 = vld [vmem:[#allocation2 + $0x30] sm:$0xff]
      %v2356 = vld [vmem:[#allocation2 + $0x38] sm:$0xff]
      %v2357 = vpack.c.bf16 %v2350, %v2349
      %v2358 = vpack.c.bf16 %v2352, %v2351
      %v2359 = vpack.c.bf16 %v2354, %v2353
      %v2360 = vpack.c.bf16 %v2356, %v2355
      %v2365 = vunpack.c.l.b16 %v2357
      %v2366 = vunpack.c.h.b16 %v2357
      %v2367 = vunpack.c.l.b16 %v2358
      %v2368 = vunpack.c.h.b16 %v2358
      %v2369 = vunpack.c.l.b16 %v2359
      %v2370 = vunpack.c.h.b16 %v2359
      %v2371 = vunpack.c.l.b16 %v2360
      %v2372 = vunpack.c.h.b16 %v2360
      %v2373 = vpack.c.b16 %v2365, %v2365
      %v2374 = vpack.c.b16 %v2366, %v2366
      %v2375 = vpack.c.b16 %v2367, %v2367
      %v2376 = vpack.c.b16 %v2368, %v2368
      %v2377 = vpack.c.b16 %v2369, %v2369
      %v2378 = vpack.c.b16 %v2370, %v2370
      %v2379 = vpack.c.b16 %v2371, %v2371
      %v2380 = vpack.c.b16 %v2372, %v2372
      %2389 = vst [vmem:[%s307] sm:$0xf] %v2373
      %2390 = vst [vmem:[%s307 + $0x4] sm:$0xf] %v2374
      %2391 = vst [vmem:[%s307 + $0x8] sm:$0xf] %v2375
      %2392 = vst [vmem:[%s307 + $0xc] sm:$0xf] %v2376
      %2393 = vst [vmem:[%s307 + $0x10] sm:$0xf] %v2377
      %2394 = vst [vmem:[%s307 + $0x14] sm:$0xf] %v2378
      %2395 = vst [vmem:[%s307 + $0x18] sm:$0xf] %v2379
      %2396 = vst [vmem:[%s307 + $0x1c] sm:$0xf] %v2380
      %v2397 = vadd.f32 %v2349, %v2350
      %v2398 = vadd.f32 %v2397, %v2351
      %v2399 = vadd.f32 %v2398, %v2352
      %v2400 = vadd.f32 %v2399, %v2353
      %v2401 = vadd.f32 %v2400, %v2354
      %v2402 = vadd.f32 %v2401, %v2355
      %v2403 = vadd.f32 %v2402, %v2356
      %v2404 = vrot.slane %v2403, 4
      %v2405 = vadd.f32 %v2403, %v2404
      %v2406 = vrot.slane %v2405, 2
      %v2407 = vadd.f32 %v2405, %v2406
      %v2408 = vrot.slane %v2407, 1
      %v2409 = vadd.f32 %v2407, %v2408
      %2410 = vst [vmem:[%s322] sm:$0x1] %v2409
      %v2411 = vmul.f32 %v2349, %v2349
      %v2412 = vmul.f32 %v2350, %v2350
      %v2413 = vmul.f32 %v2351, %v2351
      %v2414 = vmul.f32 %v2352, %v2352
      %v2415 = vmul.f32 %v2353, %v2353
      %v2416 = vmul.f32 %v2354, %v2354
      %v2417 = vmul.f32 %v2355, %v2355
      %v2418 = vmul.f32 %v2356, %v2356
      %v2419 = vadd.f32 %v2411, %v2412
      %v2420 = vadd.f32 %v2419, %v2413
      %v2421 = vadd.f32 %v2420, %v2414
      %v2422 = vadd.f32 %v2421, %v2415
      %v2423 = vadd.f32 %v2422, %v2416
      %v2424 = vadd.f32 %v2423, %v2417
      %v2425 = vadd.f32 %v2424, %v2418
      %v2426 = vrot.slane %v2425, 4
      %v2427 = vadd.f32 %v2425, %v2426
      %v2428 = vrot.slane %v2427, 2
      %v2429 = vadd.f32 %v2427, %v2428
      %v2430 = vrot.slane %v2429, 1
      %v2431 = vadd.f32 %v2429, %v2430
      %2432 = vst [vmem:[%s322 + $0x1] sm:$0x1] %v2431
      %v2433 = vld [vmem:[%s299] sm:$0xf]
      %v2434 = vld [vmem:[%s299 + $0x4] sm:$0xf]
      %v2435 = vld [vmem:[%s299 + $0x8] sm:$0xf]
      %v2436 = vld [vmem:[%s299 + $0xc] sm:$0xf]
      %v2437 = vld [vmem:[%s299 + $0x10] sm:$0xf]
      %v2438 = vld [vmem:[%s299 + $0x14] sm:$0xf]
      %v2439 = vld [vmem:[%s299 + $0x18] sm:$0xf]
      %v2440 = vld [vmem:[%s299 + $0x1c] sm:$0xf]
      %v2441 = vld [vmem:[%s299 + $0x20] sm:$0xf]
      %v2442 = vld [vmem:[%s299 + $0x24] sm:$0xf]
      %v2443 = vld [vmem:[%s299 + $0x28] sm:$0xf]
      %v2444 = vld [vmem:[%s299 + $0x2c] sm:$0xf]
      %v2445 = vld [vmem:[%s299 + $0x30] sm:$0xf]
      %v2446 = vld [vmem:[%s299 + $0x34] sm:$0xf]
      %v2447 = vld [vmem:[%s299 + $0x38] sm:$0xf]
      %v2448 = vld [vmem:[%s299 + $0x3c] sm:$0xf]
      %v2465 = vunpack.c.l.b16 %v2433
      %v2466 = vunpack.c.l.b16 %v2434
      %v2467 = vunpack.c.l.b16 %v2435
      %v2468 = vunpack.c.l.b16 %v2436
      %v2469 = vunpack.c.l.b16 %v2437
      %v2470 = vunpack.c.l.b16 %v2438
      %v2471 = vunpack.c.l.b16 %v2439
      %v2472 = vunpack.c.l.b16 %v2440
      %v2473 = vunpack.c.l.b16 %v2441
      %v2474 = vunpack.c.l.b16 %v2442
      %v2475 = vunpack.c.l.b16 %v2443
      %v2476 = vunpack.c.l.b16 %v2444
      %v2477 = vunpack.c.l.b16 %v2445
      %v2478 = vunpack.c.l.b16 %v2446
      %v2479 = vunpack.c.l.b16 %v2447
      %v2480 = vunpack.c.l.b16 %v2448
      %v2481 = vpack.c.b16 %v2466, %v2465
      %v2482 = vpack.c.b16 %v2468, %v2467
      %v2483 = vpack.c.b16 %v2470, %v2469
      %v2484 = vpack.c.b16 %v2472, %v2471
      %v2485 = vpack.c.b16 %v2474, %v2473
      %v2486 = vpack.c.b16 %v2476, %v2475
      %v2487 = vpack.c.b16 %v2478, %v2477
      %v2488 = vpack.c.b16 %v2480, %v2479
      %2497 = vmatprep.subr.bf16.mxu0 0
      %2498 = vmatpush1.bf16.msra.mxu0 %v2488
      %2499 = vmatprep.subr.bf16.mxu0 0
      %2500 = vmatpush1.bf16.msra.mxu0 %v2487
      %2501 = vmatprep.subr.bf16.mxu0 0
      %2502 = vmatpush1.bf16.msra.mxu0 %v2486
      %2503 = vmatprep.subr.bf16.mxu0 0
      %2504 = vmatpush1.bf16.msra.mxu0 %v2485
      %2505 = vmatprep.subr.bf16.mxu0 0
      %2506 = vmatpush1.bf16.msra.mxu0 %v2484
      %2507 = vmatprep.subr.bf16.mxu0 0
      %2508 = vmatpush1.bf16.msra.mxu0 %v2483
      %2509 = vmatprep.subr.bf16.mxu0 0
      %2510 = vmatpush1.bf16.msra.mxu0 %v2482
      %2511 = vmatprep.subr.bf16.mxu0 0
      %2512 = vmatpush1.bf16.msra.mxu0 %v2481
      %2513 = vmatprep.subr.bf16.mxu0 0
      %2514 = vmatpush2.bf16.msra.mxu0 0
      %2515 = vmatprep.subr.bf16.mxu0 0
      %2516 = vmatpush2.bf16.msra.mxu0 0
      %2517 = vmatprep.subr.bf16.mxu0 0
      %2518 = vmatpush2.bf16.msra.mxu0 0
      %2519 = vmatprep.subr.bf16.mxu0 0
      %2520 = vmatpush2.bf16.msra.mxu0 0
      %2521 = vmatprep.subr.bf16.mxu0 0
      %2522 = vmatpush2.bf16.msra.mxu0 0
      %2523 = vmatprep.subr.bf16.mxu0 0
      %2524 = vmatpush2.bf16.msra.mxu0 0
      %2525 = vmatprep.subr.bf16.mxu0 0
      %2526 = vmatpush2.bf16.msra.mxu0 0
      %2527 = vmatprep.subr.bf16.mxu0 0
      %2528 = vmatpush2.bf16.msra.mxu0 0
      %2529 = vmatprep.mubr.bf16.mxu0 0
      %2530 = vmatmul.mubr.bf16.gmra.mxu0 %v1242
      %v2531 = vpop.f32.mrf.mxu0
      %v2532 = vadd.f32 0.0, %v2531
      %v2533 = vpop.f32.mrf.mxu0
      %v2534 = vpop.f32.mrf.mxu0
      %v2535 = vadd.f32 0.0, %v2534
      %v2536 = vpop.f32.mrf.mxu0
      %2537 = vmatprep.mubr.bf16.mxu0 0
      %2538 = vmatmul.mubr.bf16.gmra.mxu0 %v1243
      %v2539 = vpop.f32.mrf.mxu0
      %v2540 = vadd.f32 0.0, %v2539
      %v2541 = vpop.f32.mrf.mxu0
      %v2542 = vpop.f32.mrf.mxu0
      %v2543 = vadd.f32 0.0, %v2542
      %v2544 = vpop.f32.mrf.mxu0
      %2545 = vmatprep.mubr.bf16.mxu0 0
      %2546 = vmatmul.mubr.bf16.gmra.mxu0 %v1244
      %v2547 = vpop.f32.mrf.mxu0
      %v2548 = vadd.f32 0.0, %v2547
      %v2549 = vpop.f32.mrf.mxu0
      %v2550 = vpop.f32.mrf.mxu0
      %v2551 = vadd.f32 0.0, %v2550
      %v2552 = vpop.f32.mrf.mxu0
      %2553 = vmatprep.mubr.bf16.mxu0 0
      %2554 = vmatmul.mubr.bf16.gmra.mxu0 %v1245
      %v2555 = vpop.f32.mrf.mxu0
      %v2556 = vadd.f32 0.0, %v2555
      %v2557 = vpop.f32.mrf.mxu0
      %v2558 = vpop.f32.mrf.mxu0
      %v2559 = vadd.f32 0.0, %v2558
      %v2560 = vpop.f32.mrf.mxu0
      %2561 = vdwg.mxu0
      %v2562 = vpack.c.bf16 %v2535, %v2532
      %v2563 = vpack.c.bf16 %v2543, %v2540
      %v2564 = vpack.c.bf16 %v2551, %v2548
      %v2565 = vpack.c.bf16 %v2559, %v2556
      %v2570 = vunpack.c.l.b16 %v2562
      %v2571 = vunpack.c.h.b16 %v2562
      %v2572 = vunpack.c.l.b16 %v2563
      %v2573 = vunpack.c.h.b16 %v2563
      %v2574 = vunpack.c.l.b16 %v2564
      %v2575 = vunpack.c.h.b16 %v2564
      %v2576 = vunpack.c.l.b16 %v2565
      %v2577 = vunpack.c.h.b16 %v2565
      %v2578 = vpack.c.b16 %v2570, %v2570
      %v2579 = vpack.c.b16 %v2571, %v2571
      %v2580 = vpack.c.b16 %v2572, %v2572
      %v2581 = vpack.c.b16 %v2573, %v2573
      %v2582 = vpack.c.b16 %v2574, %v2574
      %v2583 = vpack.c.b16 %v2575, %v2575
      %v2584 = vpack.c.b16 %v2576, %v2576
      %v2585 = vpack.c.b16 %v2577, %v2577
      %2594 = vst [vmem:[%s315] sm:$0xf] %v2578
      %2595 = vst [vmem:[%s315 + $0x4] sm:$0xf] %v2579
      %2596 = vst [vmem:[%s315 + $0x8] sm:$0xf] %v2580
      %2597 = vst [vmem:[%s315 + $0xc] sm:$0xf] %v2581
      %2598 = vst [vmem:[%s315 + $0x10] sm:$0xf] %v2582
      %2599 = vst [vmem:[%s315 + $0x14] sm:$0xf] %v2583
      %2600 = vst [vmem:[%s315 + $0x18] sm:$0xf] %v2584
      %2601 = vst [vmem:[%s315 + $0x1c] sm:$0xf] %v2585
      %v2602 = vadd.f32 %v2532, %v2535
      %v2603 = vadd.f32 %v2602, %v2540
      %v2604 = vadd.f32 %v2603, %v2543
      %v2605 = vadd.f32 %v2604, %v2548
      %v2606 = vadd.f32 %v2605, %v2551
      %v2607 = vadd.f32 %v2606, %v2556
      %v2608 = vadd.f32 %v2607, %v2559
      %v2609 = vrot.slane %v2608, 4
      %v2610 = vadd.f32 %v2608, %v2609
      %v2611 = vrot.slane %v2610, 2
      %v2612 = vadd.f32 %v2610, %v2611
      %v2613 = vrot.slane %v2612, 1
      %v2614 = vadd.f32 %v2612, %v2613
      %2615 = vst [vmem:[%s322 + $0x2] sm:$0x1] %v2614
      %v2616 = vmul.f32 %v2532, %v2532
      %v2617 = vmul.f32 %v2535, %v2535
      %v2618 = vmul.f32 %v2540, %v2540
      %v2619 = vmul.f32 %v2543, %v2543
      %v2620 = vmul.f32 %v2548, %v2548
      %v2621 = vmul.f32 %v2551, %v2551
      %v2622 = vmul.f32 %v2556, %v2556
      %v2623 = vmul.f32 %v2559, %v2559
      %v2624 = vadd.f32 %v2616, %v2617
      %v2625 = vadd.f32 %v2624, %v2618
      %v2626 = vadd.f32 %v2625, %v2619
      %v2627 = vadd.f32 %v2626, %v2620
      %v2628 = vadd.f32 %v2627, %v2621
      %v2629 = vadd.f32 %v2628, %v2622
      %v2630 = vadd.f32 %v2629, %v2623
      %v2631 = vrot.slane %v2630, 4
      %v2632 = vadd.f32 %v2630, %v2631
      %v2633 = vrot.slane %v2632, 2
      %v2634 = vadd.f32 %v2632, %v2633
      %v2635 = vrot.slane %v2634, 1
      %v2636 = vadd.f32 %v2634, %v2635
      %2637 = vst [vmem:[%s322 + $0x3] sm:$0x1] %v2636
      %p2638 = scmp.lt.s32.totalorder %s21, 1
      %s2639 = scalar_select %p2638, %s21, 1
      %p2640 = scmp.lt.s32.totalorder %s22, 0
      %s2641 = scalar_select %p2640, %s22, 0
      %s2642 = smul.addr %s2639, 8
      %s2643 = sadd.s32 %s2641, %s2642
      %s2644 = smul.addr %s2643, 4
      %s2645 = scalar_lea.vmem %s3, %s2644
      %p2646 = scmp.lt.s32.totalorder %s21, 1
      %s2647 = scalar_select %p2646, %s21, 1
      %p2648 = scmp.lt.s32.totalorder %s22, 0
      %s2649 = scalar_select %p2648, %s22, 0
      %s2650 = smul.addr %s2647, 8
      %s2651 = sadd.s32 %s2649, %s2650
      %s2652 = smul.addr %s2651, 4
      %s2653 = scalar_lea.vmem %s4, %s2652
      %p2654 = scmp.lt.s32.totalorder %s21, 1
      %s2655 = scalar_select %p2654, %s21, 1
      %p2656 = scmp.lt.s32.totalorder %s22, 0
      %s2657 = scalar_select %p2656, %s22, 0
      %s2658 = sadd.s32 %s2657, %s2655
      %s2659 = smul.addr %s2658, 4
      %s2660 = scalar_lea.vmem %s5, %s2659
      // Predicated region
      $region33: #{basic_block_forward.3} parent=31 // pred_check
        %p2661 = pneg %p127
      $region34: #{basic_block_forward.3} parent=31 // pred_check_branch
        %2663 = sbr.rel (%p2661) target = $region36
      $region35: #{basic_block_forward.3} parent=31 // pred_region
        _
      $region36: #{basic_block_forward.3} parent=31 // pred_fallthru
        _
      // Predicated region
      $region37: #{basic_block_forward.3} parent=31 // pred_check
        %p2664 = pneg %p155
      $region38: #{basic_block_forward.3} parent=31 // pred_check_branch
        %2666 = sbr.rel (%p2664) target = $region40
      $region39: #{basic_block_forward.3} parent=31 // pred_region
        _
      $region40: #{basic_block_forward.3} parent=31 // pred_fallthru
        _
      // Predicated region
      $region41: #{basic_block_forward.3} parent=31 // pred_check
        %p2667 = pneg %p183
      $region42: #{basic_block_forward.3} parent=31 // pred_check_branch
        %2669 = sbr.rel (%p2667) target = $region44
      $region43: #{basic_block_forward.3} parent=31 // pred_region
        _
      $region44: #{basic_block_forward.3} parent=31 // pred_fallthru
        _
    $region32: #{basic_block_forward.3} parent=5 // pred_fallthru
      _
    %p2670 = scmp.le.s32.totalorder 2, %s12
    // Predicated region
    $region45: #{basic_block_forward.3} parent=5 // pred_check
      %p2671 = pneg %p2670
    $region46: #{basic_block_forward.3} parent=5 // pred_check_branch
      %2673 = sbr.rel (%p2671) target = $region48
    $region47: #{basic_block_forward.3} parent=5 // pred_region
      %s2674 = ssub.s32 %s12, 2
      // Predicated region
      $region49: #{basic_block_forward.3} parent=47 // pred_check
        %p2675 = pneg %p133
      $region50: #{basic_block_forward.3} parent=47 // pred_check_branch
        %2677 = sbr.rel (%p2675) target = $region52
      $region51: #{basic_block_forward.3} parent=47 // pred_region
        %p2678 = scmp.lt.s32.totalorder %s23, 1
        %s2679 = scalar_select %p2678, %s23, 1
        %p2680 = scmp.lt.s32.totalorder %s24, 0
        %s2681 = scalar_select %p2680, %s24, 0
        %s2682 = smul.addr %s2679, 8
        %s2683 = sadd.s32 %s2681, %s2682
        %s2684 = smul.addr %s2683, 4
        %s2685 = scalar_lea.vmem %s3, %s2684
      $region52: #{basic_block_forward.3} parent=47 // pred_fallthru
        _
      // Predicated region
      $region53: #{basic_block_forward.3} parent=47 // pred_check
        %p2686 = pneg %p161
      $region54: #{basic_block_forward.3} parent=47 // pred_check_branch
        %2688 = sbr.rel (%p2686) target = $region56
      $region55: #{basic_block_forward.3} parent=47 // pred_region
        %p2689 = scmp.lt.s32.totalorder %s23, 1
        %s2690 = scalar_select %p2689, %s23, 1
        %p2691 = scmp.lt.s32.totalorder %s24, 0
        %s2692 = scalar_select %p2691, %s24, 0
        %s2693 = smul.addr %s2690, 8
        %s2694 = sadd.s32 %s2692, %s2693
        %s2695 = smul.addr %s2694, 4
        %s2696 = scalar_lea.vmem %s4, %s2695
      $region56: #{basic_block_forward.3} parent=47 // pred_fallthru
        _
      // Predicated region
      $region57: #{basic_block_forward.3} parent=47 // pred_check
        %p2697 = pneg %p189
      $region58: #{basic_block_forward.3} parent=47 // pred_check_branch
        %2699 = sbr.rel (%p2697) target = $region60
      $region59: #{basic_block_forward.3} parent=47 // pred_region
        %p2700 = scmp.lt.s32.totalorder %s23, 1
        %s2701 = scalar_select %p2700, %s23, 1
        %p2702 = scmp.lt.s32.totalorder %s24, 0
        %s2703 = scalar_select %p2702, %s24, 0
        %s2704 = sadd.s32 %s2703, %s2701
        %s2705 = smul.addr %s2704, 4
        %s2706 = scalar_lea.vmem %s5, %s2705
      $region60: #{basic_block_forward.3} parent=47 // pred_fallthru
        _
    $region48: #{basic_block_forward.3} parent=5 // pred_fallthru
      _
  $region6: #{basic_block_forward.3} parent=0 // loop_footer
    %s16 = sadd.s32 1, %s12
  $region7: #{basic_block_forward.3} parent=0 // loop_footer_branch
    %11 = sbr.rel target = $region3
  $region8: #{basic_block_forward.3} parent=0 // loop_exit
    _

// kernel: basic_block_forward.4
$region0: #{basic_block_forward.4}
  #allocation0 [shape = 'u32[]', space=smem, size = 0x4, offset = 0x4, fixed_abs, tag = 'smem constant byte address 0x4 - core index']
  #allocation1 [shape = 'u32[144,128]{1,0:T(1,128)}', space=vmem, size = 0x12000, scoped, tag = 'internal scratch']
  #allocation2 [shape = 'bf16[10,10,128]{2,1,0:T(8,128)(2,1)}', space=vmem, size = 0xa000, scoped, tag = 'scratch operand']
  #allocation3 [shape = 'f32[64,128]{1,0:T(8,128)}', space=vmem, size = 0x8000, scoped, tag = 'scratch operand']
  %s0 = inlined_call_operand.vmem [shape: bf16[2,8,8,128], index: 0, kind: input, shape index: {}]
  %s1 = inlined_call_operand.vmem [shape: f32[1,128], index: 1, kind: input, shape index: {}]
  %s2 = inlined_call_operand.vmem [shape: f32[1,128], index: 2, kind: input, shape index: {}]
  %s3 = inlined_call_operand.vmem [shape: bf16[9,128,128], index: 3, kind: input, shape index: {}]
  %s4 = inlined_call_operand.vmem [shape: bf16[2,64,128], index: 4, kind: output, shape index: {0}]
  %s5 = inlined_call_operand.vmem [shape: f32[2,2,128], index: 5, kind: output, shape index: {1}]
  %6 = xla_tuple %s4, %s5
  %s7 = sld [smem:[#allocation0]]
  $region57: #{basic_block_forward.4} parent=0
    _
  %s9 = ssub.s32 1, %s7
  %s10 = scalar_select 0, %s9, %s7
  loop: start=0, step=1, limit=4
  $region2: #{basic_block_forward.4} parent=0 // loop_pre_header
    _
  $region3: #{basic_block_forward.4} parent=0 // loop_header
    %s12 = sphi 0, %s16
    %p13 = scmp.ge.s32.totalorder %s12, 4
    %s19 = sphi 0, %s31
    %s20 = sphi 0, %s27
    %s21 = sphi 0, %s19
    %s22 = sphi 0, %s20
    %s23 = sphi 0, %s21
    %s24 = sphi 0, %s22
    %s34 = sphi 0, %s36
    %s37 = sphi 0, %s34
    %s38 = sphi 0, %s37
    %s54 = sphi 0, %s38
    %s58 = sphi 0, %s58
    %s60 = sphi 0, %s58
    %s61 = sphi 0, %s60
    %s75 = sphi 0, %s61
    %s79 = sphi 0, %s79
    %s81 = sphi 0, %s79
    %s82 = sphi 0, %s81
    %s96 = sphi 0, %s82
    %s102 = sphi 0, %s104
    %s105 = sphi 0, %s102
    %s106 = sphi 0, %s105
    %s122 = sphi 0, %s106
    %s130 = sphi 0, %s132
    %s133 = sphi 0, %s130
    %s134 = sphi 0, %s133
    %s150 = sphi 0, %s134
    %s158 = sphi 0, %s160
    %s161 = sphi 0, %s158
    %s162 = sphi 0, %s161
    %s178 = sphi 0, %s162
  $region4: #{basic_block_forward.4} parent=0 // loop_header_branch
    %15 = sbr.rel (%p13) target = $region8
  $region5: #{basic_block_forward.4} parent=0 // loop_body
    %s17 = ssub.s32 %s12, 1
    %s18 = ssub.s32 %s12, 2
    %s25 = sadd.s32 1, %s20
    %p26 = scmp.ge.s32.totalorder %s25, 1
    %s27 = scalar_select %p26, 0, %s25
    %s28 = sadd.s32 1, %s19
    %s29 = scalar_select %p26, %s28, %s19
    %p30 = scmp.ge.s32.totalorder %s29, 2
    %s31 = scalar_select %p30, 0, %s29
    %s32 = ssub.s32 %s19, %s31
    %p33 = scmp.eq.s32.totalorder %s32, 0
    %s35 = sadd.s32 %s34, 1
    %s36 = scalar_select %p33, %s34, %s35
    %p39 = pneg %p33
    %p40 = scmp.eq.s32.totalorder %s12, 1
    %p41 = por %p39, %p40
    %p42 = scmp.ne.s32.totalorder %s34, %s37
    %p43 = scmp.eq.s32.totalorder %s12, 0
    %p44 = por %p42, %p43
    %p45 = scmp.ne.s32.totalorder %s34, %s37
    %p46 = scmp.eq.s32.totalorder %s17, 1
    %p47 = por %p45, %p46
    %p48 = scmp.ne.s32.totalorder %s37, %s38
    %p49 = scmp.eq.s32.totalorder %s17, 0
    %p50 = por %p48, %p49
    %p51 = scmp.ne.s32.totalorder %s37, %s38
    %p52 = scmp.eq.s32.totalorder %s18, 1
    %p53 = por %p51, %p52
    %p55 = scmp.ne.s32.totalorder %s38, %s54
    %p56 = scmp.eq.s32.totalorder %s18, 0
    %p57 = por %p55, %p56
    %s59 = sadd.s32 %s58, 1
    %p62 = scmp.eq.s32.totalorder %s12, 1
    %p63 = scmp.ne.s32.totalorder %s58, %s60
    %p64 = scmp.eq.s32.totalorder %s12, 0
    %p65 = por %p63, %p64
    %p66 = scmp.ne.s32.totalorder %s58, %s60
    %p67 = scmp.eq.s32.totalorder %s17, 1
    %p68 = por %p66, %p67
    %p69 = scmp.ne.s32.totalorder %s60, %s61
    %p70 = scmp.eq.s32.totalorder %s17, 0
    %p71 = por %p69, %p70
    %p72 = scmp.ne.s32.totalorder %s60, %s61
    %p73 = scmp.eq.s32.totalorder %s18, 1
    %p74 = por %p72, %p73
    %p76 = scmp.ne.s32.totalorder %s61, %s75
    %p77 = scmp.eq.s32.totalorder %s18, 0
    %p78 = por %p76, %p77
    %s80 = sadd.s32 %s79, 1
    %p83 = scmp.eq.s32.totalorder %s12, 1
    %p84 = scmp.ne.s32.totalorder %s79, %s81
    %p85 = scmp.eq.s32.totalorder %s12, 0
    %p86 = por %p84, %p85
    %p87 = scmp.ne.s32.totalorder %s79, %s81
    %p88 = scmp.eq.s32.totalorder %s17, 1
    %p89 = por %p87, %p88
    %p90 = scmp.ne.s32.totalorder %s81, %s82
    %p91 = scmp.eq.s32.totalorder %s17, 0
    %p92 = por %p90, %p91
    %p93 = scmp.ne.s32.totalorder %s81, %s82
    %p94 = scmp.eq.s32.totalorder %s18, 1
    %p95 = por %p93, %p94
    %p97 = scmp.ne.s32.totalorder %s82, %s96
    %p98 = scmp.eq.s32.totalorder %s18, 0
    %p99 = por %p97, %p98
    %s100 = ssub.s32 %s20, %s27
    %p101 = scmp.eq.s32.totalorder %s100, 0
    %s103 = sadd.s32 %s102, 1
    %s104 = scalar_select %p101, %s102, %s103
    %p107 = pneg %p101
    %p108 = scmp.eq.s32.totalorder %s12, 1
    %p109 = por %p107, %p108
    %p110 = scmp.ne.s32.totalorder %s102, %s105
    %p111 = scmp.eq.s32.totalorder %s12, 0
    %p112 = por %p110, %p111
    %p113 = scmp.ne.s32.totalorder %s102, %s105
    %p114 = scmp.eq.s32.totalorder %s17, 1
    %p115 = por %p113, %p114
    %p116 = scmp.ne.s32.totalorder %s105, %s106
    %p117 = scmp.eq.s32.totalorder %s17, 0
    %p118 = por %p116, %p117
    %p119 = scmp.ne.s32.totalorder %s105, %s106
    %p120 = scmp.eq.s32.totalorder %s18, 1
    %p121 = por %p119, %p120
    %p123 = scmp.ne.s32.totalorder %s106, %s122
    %p124 = scmp.eq.s32.totalorder %s18, 0
    %p125 = por %p123, %p124
    %s126 = ssub.s32 %s19, %s31
    %s127 = ssub.s32 %s20, %s27
    %s128 = sor.u32 %s126, %s127
    %p129 = scmp.eq.s32.totalorder %s128, 0
    %s131 = sadd.s32 %s130, 1
    %s132 = scalar_select %p129, %s130, %s131
    %p135 = pneg %p129
    %p136 = scmp.eq.s32.totalorder %s12, 1
    %p137 = por %p135, %p136
    %p138 = scmp.ne.s32.totalorder %s130, %s133
    %p139 = scmp.eq.s32.totalorder %s12, 0
    %p140 = por %p138, %p139
    %p141 = scmp.ne.s32.totalorder %s130, %s133
    %p142 = scmp.eq.s32.totalorder %s17, 1
    %p143 = por %p141, %p142
    %p144 = scmp.ne.s32.totalorder %s133, %s134
    %p145 = scmp.eq.s32.totalorder %s17, 0
    %p146 = por %p144, %p145
    %p147 = scmp.ne.s32.totalorder %s133, %s134
    %p148 = scmp.eq.s32.totalorder %s18, 1
    %p149 = por %p147, %p148
    %p151 = scmp.ne.s32.totalorder %s134, %s150
    %p152 = scmp.eq.s32.totalorder %s18, 0
    %p153 = por %p151, %p152
    %s154 = ssub.s32 %s19, %s31
    %s155 = ssub.s32 %s20, %s27
    %s156 = sor.u32 %s154, %s155
    %p157 = scmp.eq.s32.totalorder %s156, 0
    %s159 = sadd.s32 %s158, 1
    %s160 = scalar_select %p157, %s158, %s159
    %p163 = pneg %p157
    %p164 = scmp.eq.s32.totalorder %s12, 1
    %p165 = por %p163, %p164
    %p166 = scmp.ne.s32.totalorder %s158, %s161
    %p167 = scmp.eq.s32.totalorder %s12, 0
    %p168 = por %p166, %p167
    %p169 = scmp.ne.s32.totalorder %s158, %s161
    %p170 = scmp.eq.s32.totalorder %s17, 1
    %p171 = por %p169, %p170
    %p172 = scmp.ne.s32.totalorder %s161, %s162
    %p173 = scmp.eq.s32.totalorder %s17, 0
    %p174 = por %p172, %p173
    %p175 = scmp.ne.s32.totalorder %s161, %s162
    %p176 = scmp.eq.s32.totalorder %s18, 1
    %p177 = por %p175, %p176
    %p179 = scmp.ne.s32.totalorder %s162, %s178
    %p180 = scmp.eq.s32.totalorder %s18, 0
    %p181 = por %p179, %p180
    %p182 = scmp.le.s32.totalorder 1, %s12
    %p183 = scmp.lt.s32.totalorder %s12, 3
    %p184 = pnand %p182, %p183
    %p185 = pneg %p184
    // Predicated region
    $region9: #{basic_block_forward.4} parent=5 // pred_check
      _
    $region10: #{basic_block_forward.4} parent=5 // pred_check_branch
      %187 = sbr.rel (%p184) target = $region12
    $region11: #{basic_block_forward.4} parent=5 // pred_region
      %s188 = ssub.s32 %s12, 1
      // Predicated region
      $region13: #{basic_block_forward.4} parent=11 // pred_check
        %p189 = pneg %p71
      $region14: #{basic_block_forward.4} parent=11 // pred_check_branch
        %191 = sbr.rel (%p189) target = $region16
      $region15: #{basic_block_forward.4} parent=11 // pred_region
        _
      $region16: #{basic_block_forward.4} parent=11 // pred_fallthru
        _
      // Predicated region
      $region17: #{basic_block_forward.4} parent=11 // pred_check
        %p192 = pneg %p92
      $region18: #{basic_block_forward.4} parent=11 // pred_check_branch
        %194 = sbr.rel (%p192) target = $region20
      $region19: #{basic_block_forward.4} parent=11 // pred_region
        _
      $region20: #{basic_block_forward.4} parent=11 // pred_fallthru
        _
      // Predicated region
      $region21: #{basic_block_forward.4} parent=11 // pred_check
        %p195 = pneg %p118
      $region22: #{basic_block_forward.4} parent=11 // pred_check_branch
        %197 = sbr.rel (%p195) target = $region24
      $region23: #{basic_block_forward.4} parent=11 // pred_region
        %p198 = scmp.lt.s32.totalorder %s22, 0
        %s199 = scalar_select %p198, %s22, 0
        %s200 = smul.addr %s199, 4
        %s201 = scalar_lea.vmem %s3, %s200
      $region24: #{basic_block_forward.4} parent=11 // pred_fallthru
        _
    $region12: #{basic_block_forward.4} parent=5 // pred_fallthru
      _
    %p202 = scmp.lt.s32.totalorder %s12, 2
    // Predicated region
    $region25: #{basic_block_forward.4} parent=5 // pred_check
      %p203 = pneg %p202
    $region26: #{basic_block_forward.4} parent=5 // pred_check_branch
      %205 = sbr.rel (%p203) target = $region28
    $region27: #{basic_block_forward.4} parent=5 // pred_region
      // Predicated region
      $region29: #{basic_block_forward.4} parent=27 // pred_check
        %p206 = pneg %p44
      $region30: #{basic_block_forward.4} parent=27 // pred_check_branch
        %208 = sbr.rel (%p206) target = $region32
      $region31: #{basic_block_forward.4} parent=27 // pred_region
        %p209 = scmp.lt.s32.totalorder %s19, 1
        %s210 = scalar_select %p209, %s19, 1
        %s211 = smul.addr %s210, 8
        %s212 = smul.addr %s211, 4
        %s213 = scalar_lea.vmem %s0, %s212
      $region32: #{basic_block_forward.4} parent=27 // pred_fallthru
        _
    $region28: #{basic_block_forward.4} parent=5 // pred_fallthru
      _
    %p214 = scmp.le.s32.totalorder 1, %s12
    %p215 = scmp.lt.s32.totalorder %s12, 3
    %p216 = pnand %p214, %p215
    %p217 = pneg %p216
    // Predicated region
    $region33: #{basic_block_forward.4} parent=5 // pred_check
      _
    $region34: #{basic_block_forward.4} parent=5 // pred_check_branch
      %219 = sbr.rel (%p216) target = $region36
    $region35: #{basic_block_forward.4} parent=5 // pred_region
      %s220 = ssub.s32 %s12, 1
      %p221 = scmp.lt.s32.totalorder %s21, 1
      %s222 = scalar_select %p221, %s21, 1
      %s223 = smul.addr %s222, 8
      %s224 = smul.addr %s223, 4
      %s225 = scalar_lea.vmem %s0, %s224
      %p226 = pneg %p50
      %p227 = pneg %p47
      %p228 = pneg %p71
      %p229 = pneg %p68
      %p230 = pneg %p92
      %p231 = pneg %p89
      %p232 = scmp.lt.s32.totalorder %s22, 0
      %s233 = scalar_select %p232, %s22, 0
      %s234 = smul.addr %s233, 4
      %s235 = scalar_lea.vmem %s3, %s234
      %p236 = pneg %p118
      %p237 = pneg %p115
      %p238 = pneg %p146
      %p239 = pneg %p143
      %p240 = scmp.lt.s32.totalorder %s21, 1
      %s241 = scalar_select %p240, %s21, 1
      %p242 = scmp.lt.s32.totalorder %s22, 0
      %s243 = scalar_select %p242, %s22, 0
      %s244 = smul.addr %s241, 8
      %s245 = sadd.s32 %s243, %s244
      %s246 = smul.addr %s245, 4
      %s247 = scalar_lea.vmem %s4, %s246
      %p248 = pneg %p174
      %p249 = pneg %p171
      %p250 = scmp.lt.s32.totalorder %s21, 1
      %s251 = scalar_select %p250, %s21, 1
      %p252 = scmp.lt.s32.totalorder %s22, 0
      %s253 = scalar_select %p252, %s22, 0
      %s254 = sadd.s32 %s253, %s251
      %s255 = smul.addr %s254, 2
      %s256 = scalar_lea.vmem %s5, %s255
      %p257 = scmp.lt.s32.totalorder %s21, 1
      %s258 = scalar_select %p257, %s21, 1
      %s259 = smul.addr %s258, 8
      %s260 = smul.addr %s259, 4
      %s261 = scalar_lea.vmem %s0, %s260
      %p262 = scmp.lt.s32.totalorder %s22, 0
      %s263 = scalar_select %p262, %s22, 0
      %s264 = smul.addr %s263, 4
      %s265 = scalar_lea.vmem %s3, %s264
      %p266 = scmp.lt.s32.totalorder %s21, 1
      %s267 = scalar_select %p266, %s21, 1
      %p268 = scmp.lt.s32.totalorder %s22, 0
      %s269 = scalar_select %p268, %s22, 0
      %s270 = smul.addr %s267, 8
      %s271 = sadd.s32 %s269, %s270
      %s272 = smul.addr %s271, 4
      %s273 = scalar_lea.vmem %s4, %s272
      %p274 = scmp.lt.s32.totalorder %s21, 1
      %s275 = scalar_select %p274, %s21, 1
      %p276 = scmp.lt.s32.totalorder %s22, 0
      %s277 = scalar_select %p276, %s22, 0
      %s278 = sadd.s32 %s277, %s275
      %s279 = smul.addr %s278, 2
      %s280 = scalar_lea.vmem %s5, %s279
      %v282 = vld [vmem:[%s261] sm:$0xf]
      %v283 = vld [vmem:[%s261 + $0x4] sm:$0xf]
      %v284 = vld [vmem:[%s261 + $0x8] sm:$0xf]
      %v285 = vld [vmem:[%s261 + $0xc] sm:$0xf]
      %v286 = vld [vmem:[%s261 + $0x10] sm:$0xf]
      %v287 = vld [vmem:[%s261 + $0x14] sm:$0xf]
      %v288 = vld [vmem:[%s261 + $0x18] sm:$0xf]
      %v289 = vld [vmem:[%s261 + $0x1c] sm:$0xf]
      %v290 = vunpack.c.l.bf16 %v282
      %v291 = vunpack.c.l.bf16 %v283
      %v292 = vunpack.c.l.bf16 %v284
      %v293 = vunpack.c.l.bf16 %v285
      %v294 = vunpack.c.l.bf16 %v286
      %v295 = vunpack.c.l.bf16 %v287
      %v296 = vunpack.c.l.bf16 %v288
      %v297 = vunpack.c.l.bf16 %v289
      %v298 = vld [vmem:[%s1] sm:$0x1]
      %v300 = vlaneseq
      %v301 = vshrl.u32 %v300, 7
      %v302 = vsub.s32 0, %v301
      %v303 = vrot.slane %v298, %v302
      %v305 = vmul.f32 %v290, %v303
      %v306 = vmul.f32 %v291, %v303
      %v307 = vmul.f32 %v292, %v303
      %v308 = vmul.f32 %v293, %v303
      %v309 = vmul.f32 %v294, %v303
      %v310 = vmul.f32 %v295, %v303
      %v311 = vmul.f32 %v296, %v303
      %v312 = vmul.f32 %v297, %v303
      %v313 = vld [vmem:[%s2] sm:$0x1]
      %v315 = vlaneseq
      %v316 = vshrl.u32 %v315, 7
      %v317 = vsub.s32 0, %v316
      %v318 = vrot.slane %v313, %v317
      %v320 = vadd.f32 %v305, %v318
      %v321 = vadd.f32 %v306, %v318
      %v322 = vadd.f32 %v307, %v318
      %v323 = vadd.f32 %v308, %v318
      %v324 = vadd.f32 %v309, %v318
      %v325 = vadd.f32 %v310, %v318
      %v326 = vadd.f32 %v311, %v318
      %v327 = vadd.f32 %v312, %v318
      %v328 = vmax.f32 %v320, 0.0
      %v329 = vmax.f32 %v321, 0.0
      %v330 = vmax.f32 %v322, 0.0
      %v331 = vmax.f32 %v323, 0.0
      %v332 = vmax.f32 %v324, 0.0
      %v333 = vmax.f32 %v325, 0.0
      %v334 = vmax.f32 %v326, 0.0
      %v335 = vmax.f32 %v327, 0.0
      %v336 = vpack.c.bf16 %v328, %v328
      %v337 = vpack.c.bf16 %v329, %v329
      %v338 = vpack.c.bf16 %v330, %v330
      %v339 = vpack.c.bf16 %v331, %v331
      %v340 = vpack.c.bf16 %v332, %v332
      %v341 = vpack.c.bf16 %v333, %v333
      %v342 = vpack.c.bf16 %v334, %v334
      %v343 = vpack.c.bf16 %v335, %v335
      %344 = vst [vmem:[#allocation2] sm:$0xf] 0
      %345 = vst [vmem:[#allocation2 + $0x4] sm:$0x1] 0
      %s346 = scalar_lea.vmem [#allocation2], 72
      %347 = vst [vmem:[%s346] sm:$0xf] 0
      %348 = vst [vmem:[%s346 + $0x4] sm:$0x1] 0
      %s349 = scalar_lea.vmem [#allocation2], 8
      %vm350 = vcmask 1040384
      %vm351 = vsmask.f32 256
      %vm352 = vmand %vm350, %vm351
      %v353 = vld [vmem:[%s349] sm:$0x1]
      %v354 = vsel %vm352, 0, %v353
      %355 = vst [vmem:[%s349] sm:$0x1] %v354
      %v356 = vld [vmem:[%s349 + $0x8] sm:$0x1]
      %v357 = vsel %vm352, 0, %v356
      %358 = vst [vmem:[%s349 + $0x8] sm:$0x1] %v357
      %v359 = vld [vmem:[%s349 + $0x10] sm:$0x1]
      %v360 = vsel %vm352, 0, %v359
      %361 = vst [vmem:[%s349 + $0x10] sm:$0x1] %v360
      %v362 = vld [vmem:[%s349 + $0x18] sm:$0x1]
      %v363 = vsel %vm352, 0, %v362
      %364 = vst [vmem:[%s349 + $0x18] sm:$0x1] %v363
      %v365 = vld [vmem:[%s349 + $0x20] sm:$0x1]
      %v366 = vsel %vm352, 0, %v365
      %367 = vst [vmem:[%s349 + $0x20] sm:$0x1] %v366
      %v368 = vld [vmem:[%s349 + $0x28] sm:$0x1]
      %v369 = vsel %vm352, 0, %v368
      %370 = vst [vmem:[%s349 + $0x28] sm:$0x1] %v369
      %v371 = vld [vmem:[%s349 + $0x30] sm:$0x1]
      %v372 = vsel %vm352, 0, %v371
      %373 = vst [vmem:[%s349 + $0x30] sm:$0x1] %v372
      %v374 = vld [vmem:[%s349 + $0x38] sm:$0x1]
      %v375 = vsel %vm352, 0, %v374
      %376 = vst [vmem:[%s349 + $0x38] sm:$0x1] %v375
      %vm377 = vsmask.f32 7938
      %vm378 = vmand %vm350, %vm377
      %v379 = vld [vmem:[%s349 + $0x4] sm:$0x1]
      %v380 = vsel %vm378, 0, %v379
      %381 = vst [vmem:[%s349 + $0x4] sm:$0x1] %v380
      %v382 = vld [vmem:[%s349 + $0xc] sm:$0x1]
      %v383 = vsel %vm378, 0, %v382
      %384 = vst [vmem:[%s349 + $0xc] sm:$0x1] %v383
      %v385 = vld [vmem:[%s349 + $0x14] sm:$0x1]
      %v386 = vsel %vm378, 0, %v385
      %387 = vst [vmem:[%s349 + $0x14] sm:$0x1] %v386
      %v388 = vld [vmem:[%s349 + $0x1c] sm:$0x1]
      %v389 = vsel %vm378, 0, %v388
      %390 = vst [vmem:[%s349 + $0x1c] sm:$0x1] %v389
      %v391 = vld [vmem:[%s349 + $0x24] sm:$0x1]
      %v392 = vsel %vm378, 0, %v391
      %393 = vst [vmem:[%s349 + $0x24] sm:$0x1] %v392
      %v394 = vld [vmem:[%s349 + $0x2c] sm:$0x1]
      %v395 = vsel %vm378, 0, %v394
      %396 = vst [vmem:[%s349 + $0x2c] sm:$0x1] %v395
      %v397 = vld [vmem:[%s349 + $0x34] sm:$0x1]
      %v398 = vsel %vm378, 0, %v397
      %399 = vst [vmem:[%s349 + $0x34] sm:$0x1] %v398
      %v400 = vld [vmem:[%s349 + $0x3c] sm:$0x1]
      %v401 = vsel %vm378, 0, %v400
      %402 = vst [vmem:[%s349 + $0x3c] sm:$0x1] %v401
      %v411 = vunpack.c.l.b16 %v336
      %v412 = vunpack.c.l.b16 %v337
      %v413 = vunpack.c.l.b16 %v338
      %v414 = vunpack.c.l.b16 %v339
      %v415 = vunpack.c.l.b16 %v340
      %v416 = vunpack.c.l.b16 %v341
      %v417 = vunpack.c.l.b16 %v342
      %v418 = vunpack.c.l.b16 %v343
      %v419 = vpack.c.b16 %v411, %v411
      %v420 = vpack.c.b16 %v412, %v412
      %v421 = vpack.c.b16 %v413, %v413
      %v422 = vpack.c.b16 %v414, %v414
      %v423 = vpack.c.b16 %v415, %v415
      %v424 = vpack.c.b16 %v416, %v416
      %v425 = vpack.c.b16 %v417, %v417
      %v426 = vpack.c.b16 %v418, %v418
      %v428 = vshrl.u32 %v419, 16
      %v430 = vrot.slane %v428, 7
      %v431 = vshll.u32 %v419, 16
      %v433 = vor.u32 %v430, %v431
      %v434 = vrot.slane %v430, 4
      %v436 = vshrl.u32 %v420, 16
      %v438 = vrot.slane %v436, 7
      %v439 = vshll.u32 %v420, 16
      %v441 = vor.u32 %v438, %v439
      %v442 = vrot.slane %v438, 4
      %v444 = vshrl.u32 %v421, 16
      %v446 = vrot.slane %v444, 7
      %v447 = vshll.u32 %v421, 16
      %v449 = vor.u32 %v446, %v447
      %v450 = vrot.slane %v446, 4
      %v452 = vshrl.u32 %v422, 16
      %v454 = vrot.slane %v452, 7
      %v455 = vshll.u32 %v422, 16
      %v457 = vor.u32 %v454, %v455
      %v458 = vrot.slane %v454, 4
      %v460 = vshrl.u32 %v423, 16
      %v462 = vrot.slane %v460, 7
      %v463 = vshll.u32 %v423, 16
      %v465 = vor.u32 %v462, %v463
      %v466 = vrot.slane %v462, 4
      %v468 = vshrl.u32 %v424, 16
      %v470 = vrot.slane %v468, 7
      %v471 = vshll.u32 %v424, 16
      %v473 = vor.u32 %v470, %v471
      %v474 = vrot.slane %v470, 4
      %v476 = vshrl.u32 %v425, 16
      %v478 = vrot.slane %v476, 7
      %v479 = vshll.u32 %v425, 16
      %v481 = vor.u32 %v478, %v479
      %v482 = vrot.slane %v478, 4
      %v484 = vshrl.u32 %v426, 16
      %v486 = vrot.slane %v484, 7
      %v487 = vshll.u32 %v426, 16
      %v489 = vor.u32 %v486, %v487
      %v490 = vrot.slane %v486, 4
      %vm507 = vcmask 1043456
      %vm508 = vmand %vm507, %vm377
      %v509 = vld [vmem:[%s349] sm:$0xf]
      %v510 = vsel %vm508, %v433, %v509
      %511 = vst [vmem:[%s349] sm:$0xf] %v510
      %v512 = vld [vmem:[%s349 + $0x4] sm:$0x1]
      %v513 = vsel %vm352, %v434, %v512
      %514 = vst [vmem:[%s349 + $0x4] sm:$0x1] %v513
      %v515 = vld [vmem:[%s349 + $0x8] sm:$0xf]
      %v516 = vsel %vm508, %v441, %v515
      %517 = vst [vmem:[%s349 + $0x8] sm:$0xf] %v516
      %v518 = vld [vmem:[%s349 + $0xc] sm:$0x1]
      %v519 = vsel %vm352, %v442, %v518
      %520 = vst [vmem:[%s349 + $0xc] sm:$0x1] %v519
      %v521 = vld [vmem:[%s349 + $0x10] sm:$0xf]
      %v522 = vsel %vm508, %v449, %v521
      %523 = vst [vmem:[%s349 + $0x10] sm:$0xf] %v522
      %v524 = vld [vmem:[%s349 + $0x14] sm:$0x1]
      %v525 = vsel %vm352, %v450, %v524
      %526 = vst [vmem:[%s349 + $0x14] sm:$0x1] %v525
      %v527 = vld [vmem:[%s349 + $0x18] sm:$0xf]
      %v528 = vsel %vm508, %v457, %v527
      %529 = vst [vmem:[%s349 + $0x18] sm:$0xf] %v528
      %v530 = vld [vmem:[%s349 + $0x1c] sm:$0x1]
      %v531 = vsel %vm352, %v458, %v530
      %532 = vst [vmem:[%s349 + $0x1c] sm:$0x1] %v531
      %v533 = vld [vmem:[%s349 + $0x20] sm:$0xf]
      %v534 = vsel %vm508, %v465, %v533
      %535 = vst [vmem:[%s349 + $0x20] sm:$0xf] %v534
      %v536 = vld [vmem:[%s349 + $0x24] sm:$0x1]
      %v537 = vsel %vm352, %v466, %v536
      %538 = vst [vmem:[%s349 + $0x24] sm:$0x1] %v537
      %v539 = vld [vmem:[%s349 + $0x28] sm:$0xf]
      %v540 = vsel %vm508, %v473, %v539
      %541 = vst [vmem:[%s349 + $0x28] sm:$0xf] %v540
      %v542 = vld [vmem:[%s349 + $0x2c] sm:$0x1]
      %v543 = vsel %vm352, %v474, %v542
      %544 = vst [vmem:[%s349 + $0x2c] sm:$0x1] %v543
      %v545 = vld [vmem:[%s349 + $0x30] sm:$0xf]
      %v546 = vsel %vm508, %v481, %v545
      %547 = vst [vmem:[%s349 + $0x30] sm:$0xf] %v546
      %v548 = vld [vmem:[%s349 + $0x34] sm:$0x1]
      %v549 = vsel %vm352, %v482, %v548
      %550 = vst [vmem:[%s349 + $0x34] sm:$0x1] %v549
      %v551 = vld [vmem:[%s349 + $0x38] sm:$0xf]
      %v552 = vsel %vm508, %v489, %v551
      %553 = vst [vmem:[%s349 + $0x38] sm:$0xf] %v552
      %v554 = vld [vmem:[%s349 + $0x3c] sm:$0x1]
      %v555 = vsel %vm352, %v490, %v554
      %556 = vst [vmem:[%s349 + $0x3c] sm:$0x1] %v555
      %557 = vst [vmem:[#allocation3] sm:$0xff] 0.0
      %558 = vst [vmem:[#allocation3 + $0x8] sm:$0xff] 0.0
      %559 = vst [vmem:[#allocation3 + $0x10] sm:$0xff] 0.0
      %560 = vst [vmem:[#allocation3 + $0x18] sm:$0xff] 0.0
      %561 = vst [vmem:[#allocation3 + $0x20] sm:$0xff] 0.0
      %562 = vst [vmem:[#allocation3 + $0x28] sm:$0xff] 0.0
      %563 = vst [vmem:[#allocation3 + $0x30] sm:$0xff] 0.0
      %564 = vst [vmem:[#allocation3 + $0x38] sm:$0xff] 0.0
      %v565 = vld [vmem:[#allocation2] sm:$0xf]
      %v566 = vld [vmem:[#allocation2 + $0x8] sm:$0xf]
      %v567 = vld [vmem:[#allocation2 + $0x10] sm:$0xf]
      %v568 = vld [vmem:[#allocation2 + $0x18] sm:$0xf]
      %v569 = vld [vmem:[#allocation2 + $0x20] sm:$0xf]
      %v570 = vld [vmem:[#allocation2 + $0x28] sm:$0xf]
      %v571 = vld [vmem:[#allocation2 + $0x30] sm:$0xf]
      %v572 = vld [vmem:[#allocation2 + $0x38] sm:$0xf]
      %v573 = vld [vmem:[#allocation3] sm:$0xff]
      %v574 = vld [vmem:[#allocation3 + $0x8] sm:$0xff]
      %v575 = vld [vmem:[#allocation3 + $0x10] sm:$0xff]
      %v576 = vld [vmem:[#allocation3 + $0x18] sm:$0xff]
      %v577 = vld [vmem:[#allocation3 + $0x20] sm:$0xff]
      %v578 = vld [vmem:[#allocation3 + $0x28] sm:$0xff]
      %v579 = vld [vmem:[#allocation3 + $0x30] sm:$0xff]
      %v580 = vld [vmem:[#allocation3 + $0x38] sm:$0xff]
      %v581 = vld [vmem:[%s265] sm:$0xf]
      %v582 = vld [vmem:[%s265 + $0x4] sm:$0xf]
      %v583 = vld [vmem:[%s265 + $0x8] sm:$0xf]
      %v584 = vld [vmem:[%s265 + $0xc] sm:$0xf]
      %v585 = vld [vmem:[%s265 + $0x10] sm:$0xf]
      %v586 = vld [vmem:[%s265 + $0x14] sm:$0xf]
      %v587 = vld [vmem:[%s265 + $0x18] sm:$0xf]
      %v588 = vld [vmem:[%s265 + $0x1c] sm:$0xf]
      %v589 = vld [vmem:[%s265 + $0x20] sm:$0xf]
      %v590 = vld [vmem:[%s265 + $0x24] sm:$0xf]
      %v591 = vld [vmem:[%s265 + $0x28] sm:$0xf]
      %v592 = vld [vmem:[%s265 + $0x2c] sm:$0xf]
      %v593 = vld [vmem:[%s265 + $0x30] sm:$0xf]
      %v594 = vld [vmem:[%s265 + $0x34] sm:$0xf]
      %v595 = vld [vmem:[%s265 + $0x38] sm:$0xf]
      %v596 = vld [vmem:[%s265 + $0x3c] sm:$0xf]
      %v605 = vunpack.c.l.b16 %v565
      %v606 = vunpack.c.l.b16 %v566
      %v607 = vunpack.c.l.b16 %v567
      %v608 = vunpack.c.l.b16 %v568
      %v609 = vunpack.c.l.b16 %v569
      %v610 = vunpack.c.l.b16 %v570
      %v611 = vunpack.c.l.b16 %v571
      %v612 = vunpack.c.l.b16 %v572
      %v613 = vpack.c.b16 %v606, %v605
      %v614 = vpack.c.b16 %v608, %v607
      %v615 = vpack.c.b16 %v610, %v609
      %v616 = vpack.c.b16 %v612, %v611
      %v637 = vunpack.c.l.b16 %v581
      %v638 = vunpack.c.l.b16 %v582
      %v639 = vunpack.c.l.b16 %v583
      %v640 = vunpack.c.l.b16 %v584
      %v641 = vunpack.c.l.b16 %v585
      %v642 = vunpack.c.l.b16 %v586
      %v643 = vunpack.c.l.b16 %v587
      %v644 = vunpack.c.l.b16 %v588
      %v645 = vunpack.c.l.b16 %v589
      %v646 = vunpack.c.l.b16 %v590
      %v647 = vunpack.c.l.b16 %v591
      %v648 = vunpack.c.l.b16 %v592
      %v649 = vunpack.c.l.b16 %v593
      %v650 = vunpack.c.l.b16 %v594
      %v651 = vunpack.c.l.b16 %v595
      %v652 = vunpack.c.l.b16 %v596
      %v653 = vpack.c.b16 %v638, %v637
      %v654 = vpack.c.b16 %v640, %v639
      %v655 = vpack.c.b16 %v642, %v641
      %v656 = vpack.c.b16 %v644, %v643
      %v657 = vpack.c.b16 %v646, %v645
      %v658 = vpack.c.b16 %v648, %v647
      %v659 = vpack.c.b16 %v650, %v649
      %v660 = vpack.c.b16 %v652, %v651
      %669 = vmatprep.subr.bf16.mxu0 0
      %670 = vmatpush1.bf16.msra.mxu0 %v660
      %671 = vmatprep.subr.bf16.mxu0 0
      %672 = vmatpush1.bf16.msra.mxu0 %v659
      %673 = vmatprep.subr.bf16.mxu0 0
      %674 = vmatpush1.bf16.msra.mxu0 %v658
      %675 = vmatprep.subr.bf16.mxu0 0
      %676 = vmatpush1.bf16.msra.mxu0 %v657
      %677 = vmatprep.subr.bf16.mxu0 0
      %678 = vmatpush1.bf16.msra.mxu0 %v656
      %679 = vmatprep.subr.bf16.mxu0 0
      %680 = vmatpush1.bf16.msra.mxu0 %v655
      %681 = vmatprep.subr.bf16.mxu0 0
      %682 = vmatpush1.bf16.msra.mxu0 %v654
      %683 = vmatprep.subr.bf16.mxu0 0
      %684 = vmatpush1.bf16.msra.mxu0 %v653
      %685 = vmatprep.subr.bf16.mxu0 0
      %686 = vmatpush2.bf16.msra.mxu0 0
      %687 = vmatprep.subr.bf16.mxu0 0
      %688 = vmatpush2.bf16.msra.mxu0 0
      %689 = vmatprep.subr.bf16.mxu0 0
      %690 = vmatpush2.bf16.msra.mxu0 0
      %691 = vmatprep.subr.bf16.mxu0 0
      %692 = vmatpush2.bf16.msra.mxu0 0
      %693 = vmatprep.subr.bf16.mxu0 0
      %694 = vmatpush2.bf16.msra.mxu0 0
      %695 = vmatprep.subr.bf16.mxu0 0
      %696 = vmatpush2.bf16.msra.mxu0 0
      %697 = vmatprep.subr.bf16.mxu0 0
      %698 = vmatpush2.bf16.msra.mxu0 0
      %699 = vmatprep.subr.bf16.mxu0 0
      %700 = vmatpush2.bf16.msra.mxu0 0
      %701 = vmatprep.mubr.bf16.mxu0 0
      %702 = vmatmul.mubr.bf16.gmra.mxu0 %v613
      %v703 = vpop.f32.mrf.mxu0
      %v704 = vadd.f32 0.0, %v703
      %v705 = vpop.f32.mrf.mxu0
      %v706 = vpop.f32.mrf.mxu0
      %v707 = vadd.f32 0.0, %v706
      %v708 = vpop.f32.mrf.mxu0
      %709 = vmatprep.mubr.bf16.mxu0 0
      %710 = vmatmul.mubr.bf16.gmra.mxu0 %v614
      %v711 = vpop.f32.mrf.mxu0
      %v712 = vadd.f32 0.0, %v711
      %v713 = vpop.f32.mrf.mxu0
      %v714 = vpop.f32.mrf.mxu0
      %v715 = vadd.f32 0.0, %v714
      %v716 = vpop.f32.mrf.mxu0
      %717 = vmatprep.mubr.bf16.mxu0 0
      %718 = vmatmul.mubr.bf16.gmra.mxu0 %v615
      %v719 = vpop.f32.mrf.mxu0
      %v720 = vadd.f32 0.0, %v719
      %v721 = vpop.f32.mrf.mxu0
      %v722 = vpop.f32.mrf.mxu0
      %v723 = vadd.f32 0.0, %v722
      %v724 = vpop.f32.mrf.mxu0
      %725 = vmatprep.mubr.bf16.mxu0 0
      %726 = vmatmul.mubr.bf16.gmra.mxu0 %v616
      %v727 = vpop.f32.mrf.mxu0
      %v728 = vadd.f32 0.0, %v727
      %v729 = vpop.f32.mrf.mxu0
      %v730 = vpop.f32.mrf.mxu0
      %v731 = vadd.f32 0.0, %v730
      %v732 = vpop.f32.mrf.mxu0
      %733 = vdwg.mxu0
      %v734 = vadd.f32 %v573, %v704
      %v735 = vadd.f32 %v574, %v707
      %v736 = vadd.f32 %v575, %v712
      %v737 = vadd.f32 %v576, %v715
      %v738 = vadd.f32 %v577, %v720
      %v739 = vadd.f32 %v578, %v723
      %v740 = vadd.f32 %v579, %v728
      %v741 = vadd.f32 %v580, %v731
      %742 = vst [vmem:[#allocation3] sm:$0xff] %v734
      %743 = vst [vmem:[#allocation3 + $0x8] sm:$0xff] %v735
      %744 = vst [vmem:[#allocation3 + $0x10] sm:$0xff] %v736
      %745 = vst [vmem:[#allocation3 + $0x18] sm:$0xff] %v737
      %746 = vst [vmem:[#allocation3 + $0x20] sm:$0xff] %v738
      %747 = vst [vmem:[#allocation3 + $0x28] sm:$0xff] %v739
      %748 = vst [vmem:[#allocation3 + $0x30] sm:$0xff] %v740
      %749 = vst [vmem:[#allocation3 + $0x38] sm:$0xff] %v741
      %v750 = vld [vmem:[#allocation2] sm:$0xf]
      %v751 = vld [vmem:[#allocation2 + $0x4] sm:$0x1]
      %v752 = vld [vmem:[#allocation2 + $0x8] sm:$0xf]
      %v753 = vld [vmem:[#allocation2 + $0xc] sm:$0x1]
      %v754 = vld [vmem:[#allocation2 + $0x10] sm:$0xf]
      %v755 = vld [vmem:[#allocation2 + $0x14] sm:$0x1]
      %v756 = vld [vmem:[#allocation2 + $0x18] sm:$0xf]
      %v757 = vld [vmem:[#allocation2 + $0x1c] sm:$0x1]
      %v758 = vld [vmem:[#allocation2 + $0x20] sm:$0xf]
      %v759 = vld [vmem:[#allocation2 + $0x24] sm:$0x1]
      %v760 = vld [vmem:[#allocation2 + $0x28] sm:$0xf]
      %v761 = vld [vmem:[#allocation2 + $0x2c] sm:$0x1]
      %v762 = vld [vmem:[#allocation2 + $0x30] sm:$0xf]
      %v763 = vld [vmem:[#allocation2 + $0x34] sm:$0x1]
      %v764 = vld [vmem:[#allocation2 + $0x38] sm:$0xf]
      %v765 = vld [vmem:[#allocation2 + $0x3c] sm:$0x1]
      %vm766 = vsmask.f32 3328
      %vm767 = vsmask.f32 7440
      %vm768 = vmor %vm766, %vm767
      %v770 = vshrl.u32 %v750, 16
      %v772 = vrot.slane %v770, 4
      %v773 = vshll.u32 %v750, 16
      %v775 = vrot.slane %v773, 5
      %v776 = vor.u32 %v772, %v775
      %v777 = vrot.slane %v776, 4
      %v779 = vshll.u32 %v751, 16
      %v781 = vrot.slane %v779, 5
      %v782 = vsel %vm768, %v777, %v781
      %v784 = vshrl.u32 %v752, 16
      %v786 = vrot.slane %v784, 4
      %v787 = vshll.u32 %v752, 16
      %v789 = vrot.slane %v787, 5
      %v790 = vor.u32 %v786, %v789
      %v791 = vrot.slane %v790, 4
      %v793 = vshll.u32 %v753, 16
      %v795 = vrot.slane %v793, 5
      %v796 = vsel %vm768, %v791, %v795
      %v798 = vshrl.u32 %v754, 16
      %v800 = vrot.slane %v798, 4
      %v801 = vshll.u32 %v754, 16
      %v803 = vrot.slane %v801, 5
      %v804 = vor.u32 %v800, %v803
      %v805 = vrot.slane %v804, 4
      %v807 = vshll.u32 %v755, 16
      %v809 = vrot.slane %v807, 5
      %v810 = vsel %vm768, %v805, %v809
      %v812 = vshrl.u32 %v756, 16
      %v814 = vrot.slane %v812, 4
      %v815 = vshll.u32 %v756, 16
      %v817 = vrot.slane %v815, 5
      %v818 = vor.u32 %v814, %v817
      %v819 = vrot.slane %v818, 4
      %v821 = vshll.u32 %v757, 16
      %v823 = vrot.slane %v821, 5
      %v824 = vsel %vm768, %v819, %v823
      %v826 = vshrl.u32 %v758, 16
      %v828 = vrot.slane %v826, 4
      %v829 = vshll.u32 %v758, 16
      %v831 = vrot.slane %v829, 5
      %v832 = vor.u32 %v828, %v831
      %v833 = vrot.slane %v832, 4
      %v835 = vshll.u32 %v759, 16
      %v837 = vrot.slane %v835, 5
      %v838 = vsel %vm768, %v833, %v837
      %v840 = vshrl.u32 %v760, 16
      %v842 = vrot.slane %v840, 4
      %v843 = vshll.u32 %v760, 16
      %v845 = vrot.slane %v843, 5
      %v846 = vor.u32 %v842, %v845
      %v847 = vrot.slane %v846, 4
      %v849 = vshll.u32 %v761, 16
      %v851 = vrot.slane %v849, 5
      %v852 = vsel %vm768, %v847, %v851
      %v854 = vshrl.u32 %v762, 16
      %v856 = vrot.slane %v854, 4
      %v857 = vshll.u32 %v762, 16
      %v859 = vrot.slane %v857, 5
      %v860 = vor.u32 %v856, %v859
      %v861 = vrot.slane %v860, 4
      %v863 = vshll.u32 %v763, 16
      %v865 = vrot.slane %v863, 5
      %v866 = vsel %vm768, %v861, %v865
      %v868 = vshrl.u32 %v764, 16
      %v870 = vrot.slane %v868, 4
      %v871 = vshll.u32 %v764, 16
      %v873 = vrot.slane %v871, 5
      %v874 = vor.u32 %v870, %v873
      %v875 = vrot.slane %v874, 4
      %v877 = vshll.u32 %v765, 16
      %v879 = vrot.slane %v877, 5
      %v880 = vsel %vm768, %v875, %v879
      %v881 = vld [vmem:[#allocation3] sm:$0xff]
      %v882 = vld [vmem:[#allocation3 + $0x8] sm:$0xff]
      %v883 = vld [vmem:[#allocation3 + $0x10] sm:$0xff]
      %v884 = vld [vmem:[#allocation3 + $0x18] sm:$0xff]
      %v885 = vld [vmem:[#allocation3 + $0x20] sm:$0xff]
      %v886 = vld [vmem:[#allocation3 + $0x28] sm:$0xff]
      %v887 = vld [vmem:[#allocation3 + $0x30] sm:$0xff]
      %v888 = vld [vmem:[#allocation3 + $0x38] sm:$0xff]
      %s889 = scalar_lea.vmem %s265, 64
      %v890 = vld [vmem:[%s889] sm:$0xf]
      %v891 = vld [vmem:[%s889 + $0x4] sm:$0xf]
      %v892 = vld [vmem:[%s889 + $0x8] sm:$0xf]
      %v893 = vld [vmem:[%s889 + $0xc] sm:$0xf]
      %v894 = vld [vmem:[%s889 + $0x10] sm:$0xf]
      %v895 = vld [vmem:[%s889 + $0x14] sm:$0xf]
      %v896 = vld [vmem:[%s889 + $0x18] sm:$0xf]
      %v897 = vld [vmem:[%s889 + $0x1c] sm:$0xf]
      %v898 = vld [vmem:[%s889 + $0x20] sm:$0xf]
      %v899 = vld [vmem:[%s889 + $0x24] sm:$0xf]
      %v900 = vld [vmem:[%s889 + $0x28] sm:$0xf]
      %v901 = vld [vmem:[%s889 + $0x2c] sm:$0xf]
      %v902 = vld [vmem:[%s889 + $0x30] sm:$0xf]
      %v903 = vld [vmem:[%s889 + $0x34] sm:$0xf]
      %v904 = vld [vmem:[%s889 + $0x38] sm:$0xf]
      %v905 = vld [vmem:[%s889 + $0x3c] sm:$0xf]
      %v906 = vunpack.c.l.b16 %v782
      %v907 = vunpack.c.l.b16 %v796
      %v908 = vunpack.c.l.b16 %v810
      %v909 = vunpack.c.l.b16 %v824
      %v910 = vunpack.c.l.b16 %v838
      %v911 = vunpack.c.l.b16 %v852
      %v912 = vunpack.c.l.b16 %v866
      %v913 = vunpack.c.l.b16 %v880
      %v914 = vpack.c.b16 %v907, %v906
      %v915 = vpack.c.b16 %v909, %v908
      %v916 = vpack.c.b16 %v911, %v910
      %v917 = vpack.c.b16 %v913, %v912
      %v938 = vunpack.c.l.b16 %v890
      %v939 = vunpack.c.l.b16 %v891
      %v940 = vunpack.c.l.b16 %v892
      %v941 = vunpack.c.l.b16 %v893
      %v942 = vunpack.c.l.b16 %v894
      %v943 = vunpack.c.l.b16 %v895
      %v944 = vunpack.c.l.b16 %v896
      %v945 = vunpack.c.l.b16 %v897
      %v946 = vunpack.c.l.b16 %v898
      %v947 = vunpack.c.l.b16 %v899
      %v948 = vunpack.c.l.b16 %v900
      %v949 = vunpack.c.l.b16 %v901
      %v950 = vunpack.c.l.b16 %v902
      %v951 = vunpack.c.l.b16 %v903
      %v952 = vunpack.c.l.b16 %v904
      %v953 = vunpack.c.l.b16 %v905
      %v954 = vpack.c.b16 %v939, %v938
      %v955 = vpack.c.b16 %v941, %v940
      %v956 = vpack.c.b16 %v943, %v942
      %v957 = vpack.c.b16 %v945, %v944
      %v958 = vpack.c.b16 %v947, %v946
      %v959 = vpack.c.b16 %v949, %v948
      %v960 = vpack.c.b16 %v951, %v950
      %v961 = vpack.c.b16 %v953, %v952
      %970 = vmatprep.subr.bf16.mxu0 0
      %971 = vmatpush1.bf16.msra.mxu0 %v961
      %972 = vmatprep.subr.bf16.mxu0 0
      %973 = vmatpush1.bf16.msra.mxu0 %v960
      %974 = vmatprep.subr.bf16.mxu0 0
      %975 = vmatpush1.bf16.msra.mxu0 %v959
      %976 = vmatprep.subr.bf16.mxu0 0
      %977 = vmatpush1.bf16.msra.mxu0 %v958
      %978 = vmatprep.subr.bf16.mxu0 0
      %979 = vmatpush1.bf16.msra.mxu0 %v957
      %980 = vmatprep.subr.bf16.mxu0 0
      %981 = vmatpush1.bf16.msra.mxu0 %v956
      %982 = vmatprep.subr.bf16.mxu0 0
      %983 = vmatpush1.bf16.msra.mxu0 %v955
      %984 = vmatprep.subr.bf16.mxu0 0
      %985 = vmatpush1.bf16.msra.mxu0 %v954
      %986 = vmatprep.subr.bf16.mxu0 0
      %987 = vmatpush2.bf16.msra.mxu0 0
      %988 = vmatprep.subr.bf16.mxu0 0
      %989 = vmatpush2.bf16.msra.mxu0 0
      %990 = vmatprep.subr.bf16.mxu0 0
      %991 = vmatpush2.bf16.msra.mxu0 0
      %992 = vmatprep.subr.bf16.mxu0 0
      %993 = vmatpush2.bf16.msra.mxu0 0
      %994 = vmatprep.subr.bf16.mxu0 0
      %995 = vmatpush2.bf16.msra.mxu0 0
      %996 = vmatprep.subr.bf16.mxu0 0
      %997 = vmatpush2.bf16.msra.mxu0 0
      %998 = vmatprep.subr.bf16.mxu0 0
      %999 = vmatpush2.bf16.msra.mxu0 0
      %1000 = vmatprep.subr.bf16.mxu0 0
      %1001 = vmatpush2.bf16.msra.mxu0 0
      %1002 = vmatprep.mubr.bf16.mxu0 0
      %1003 = vmatmul.mubr.bf16.gmra.mxu0 %v914
      %v1004 = vpop.f32.mrf.mxu0
      %v1005 = vadd.f32 0.0, %v1004
      %v1006 = vpop.f32.mrf.mxu0
      %v1007 = vpop.f32.mrf.mxu0
      %v1008 = vadd.f32 0.0, %v1007
      %v1009 = vpop.f32.mrf.mxu0
      %1010 = vmatprep.mubr.bf16.mxu0 0
      %1011 = vmatmul.mubr.bf16.gmra.mxu0 %v915
      %v1012 = vpop.f32.mrf.mxu0
      %v1013 = vadd.f32 0.0, %v1012
      %v1014 = vpop.f32.mrf.mxu0
      %v1015 = vpop.f32.mrf.mxu0
      %v1016 = vadd.f32 0.0, %v1015
      %v1017 = vpop.f32.mrf.mxu0
      %1018 = vmatprep.mubr.bf16.mxu0 0
      %1019 = vmatmul.mubr.bf16.gmra.mxu0 %v916
      %v1020 = vpop.f32.mrf.mxu0
      %v1021 = vadd.f32 0.0, %v1020
      %v1022 = vpop.f32.mrf.mxu0
      %v1023 = vpop.f32.mrf.mxu0
      %v1024 = vadd.f32 0.0, %v1023
      %v1025 = vpop.f32.mrf.mxu0
      %1026 = vmatprep.mubr.bf16.mxu0 0
      %1027 = vmatmul.mubr.bf16.gmra.mxu0 %v917
      %v1028 = vpop.f32.mrf.mxu0
      %v1029 = vadd.f32 0.0, %v1028
      %v1030 = vpop.f32.mrf.mxu0
      %v1031 = vpop.f32.mrf.mxu0
      %v1032 = vadd.f32 0.0, %v1031
      %v1033 = vpop.f32.mrf.mxu0
      %1034 = vdwg.mxu0
      %v1035 = vadd.f32 %v881, %v1005
      %v1036 = vadd.f32 %v882, %v1008
      %v1037 = vadd.f32 %v883, %v1013
      %v1038 = vadd.f32 %v884, %v1016
      %v1039 = vadd.f32 %v885, %v1021
      %v1040 = vadd.f32 %v886, %v1024
      %v1041 = vadd.f32 %v887, %v1029
      %v1042 = vadd.f32 %v888, %v1032
      %1043 = vst [vmem:[#allocation3] sm:$0xff] %v1035
      %1044 = vst [vmem:[#allocation3 + $0x8] sm:$0xff] %v1036
      %1045 = vst [vmem:[#allocation3 + $0x10] sm:$0xff] %v1037
      %1046 = vst [vmem:[#allocation3 + $0x18] sm:$0xff] %v1038
      %1047 = vst [vmem:[#allocation3 + $0x20] sm:$0xff] %v1039
      %1048 = vst [vmem:[#allocation3 + $0x28] sm:$0xff] %v1040
      %1049 = vst [vmem:[#allocation3 + $0x30] sm:$0xff] %v1041
      %1050 = vst [vmem:[#allocation3 + $0x38] sm:$0xff] %v1042
      %v1051 = vld [vmem:[#allocation2] sm:$0xe]
      %v1052 = vld [vmem:[#allocation2 + $0x4] sm:$0x1]
      %v1053 = vld [vmem:[#allocation2 + $0x8] sm:$0xe]
      %v1054 = vld [vmem:[#allocation2 + $0xc] sm:$0x1]
      %v1055 = vld [vmem:[#allocation2 + $0x10] sm:$0xe]
      %v1056 = vld [vmem:[#allocation2 + $0x14] sm:$0x1]
      %v1057 = vld [vmem:[#allocation2 + $0x18] sm:$0xe]
      %v1058 = vld [vmem:[#allocation2 + $0x1c] sm:$0x1]
      %v1059 = vld [vmem:[#allocation2 + $0x20] sm:$0xe]
      %v1060 = vld [vmem:[#allocation2 + $0x24] sm:$0x1]
      %v1061 = vld [vmem:[#allocation2 + $0x28] sm:$0xe]
      %v1062 = vld [vmem:[#allocation2 + $0x2c] sm:$0x1]
      %v1063 = vld [vmem:[#allocation2 + $0x30] sm:$0xe]
      %v1064 = vld [vmem:[#allocation2 + $0x34] sm:$0x1]
      %v1065 = vld [vmem:[#allocation2 + $0x38] sm:$0xe]
      %v1066 = vld [vmem:[#allocation2 + $0x3c] sm:$0x1]
      %vm1083 = vcmask 1042432
      %vm1084 = vcmask 1046532
      %vm1085 = vmor %vm1083, %vm1084
      %v1086 = vrot.slane %v1051, 5
      %v1087 = vrot.slane %v1086, 4
      %v1088 = vrot.slane %v1052, 5
      %v1089 = vsel %vm1085, %v1087, %v1088
      %v1090 = vrot.slane %v1053, 5
      %v1091 = vrot.slane %v1090, 4
      %v1092 = vrot.slane %v1054, 5
      %v1093 = vsel %vm1085, %v1091, %v1092
      %v1094 = vrot.slane %v1055, 5
      %v1095 = vrot.slane %v1094, 4
      %v1096 = vrot.slane %v1056, 5
      %v1097 = vsel %vm1085, %v1095, %v1096
      %v1098 = vrot.slane %v1057, 5
      %v1099 = vrot.slane %v1098, 4
      %v1100 = vrot.slane %v1058, 5
      %v1101 = vsel %vm1085, %v1099, %v1100
      %v1102 = vrot.slane %v1059, 5
      %v1103 = vrot.slane %v1102, 4
      %v1104 = vrot.slane %v1060, 5
      %v1105 = vsel %vm1085, %v1103, %v1104
      %v1106 = vrot.slane %v1061, 5
      %v1107 = vrot.slane %v1106, 4
      %v1108 = vrot.slane %v1062, 5
      %v1109 = vsel %vm1085, %v1107, %v1108
      %v1110 = vrot.slane %v1063, 5
      %v1111 = vrot.slane %v1110, 4
      %v1112 = vrot.slane %v1064, 5
      %v1113 = vsel %vm1085, %v1111, %v1112
      %v1114 = vrot.slane %v1065, 5
      %v1115 = vrot.slane %v1114, 4
      %v1116 = vrot.slane %v1066, 5
      %v1117 = vsel %vm1085, %v1115, %v1116
      %v1118 = vld [vmem:[#allocation3] sm:$0xff]
      %v1119 = vld [vmem:[#allocation3 + $0x8] sm:$0xff]
      %v1120 = vld [vmem:[#allocation3 + $0x10] sm:$0xff]
      %v1121 = vld [vmem:[#allocation3 + $0x18] sm:$0xff]
      %v1122 = vld [vmem:[#allocation3 + $0x20] sm:$0xff]
      %v1123 = vld [vmem:[#allocation3 + $0x28] sm:$0xff]
      %v1124 = vld [vmem:[#allocation3 + $0x30] sm:$0xff]
      %v1125 = vld [vmem:[#allocation3 + $0x38] sm:$0xff]
      %s1126 = scalar_lea.vmem %s265, 128
      %v1127 = vld [vmem:[%s1126] sm:$0xf]
      %v1128 = vld [vmem:[%s1126 + $0x4] sm:$0xf]
      %v1129 = vld [vmem:[%s1126 + $0x8] sm:$0xf]
      %v1130 = vld [vmem:[%s1126 + $0xc] sm:$0xf]
      %v1131 = vld [vmem:[%s1126 + $0x10] sm:$0xf]
      %v1132 = vld [vmem:[%s1126 + $0x14] sm:$0xf]
      %v1133 = vld [vmem:[%s1126 + $0x18] sm:$0xf]
      %v1134 = vld [vmem:[%s1126 + $0x1c] sm:$0xf]
      %v1135 = vld [vmem:[%s1126 + $0x20] sm:$0xf]
      %v1136 = vld [vmem:[%s1126 + $0x24] sm:$0xf]
      %v1137 = vld [vmem:[%s1126 + $0x28] sm:$0xf]
      %v1138 = vld [vmem:[%s1126 + $0x2c] sm:$0xf]
      %v1139 = vld [vmem:[%s1126 + $0x30] sm:$0xf]
      %v1140 = vld [vmem:[%s1126 + $0x34] sm:$0xf]
      %v1141 = vld [vmem:[%s1126 + $0x38] sm:$0xf]
      %v1142 = vld [vmem:[%s1126 + $0x3c] sm:$0xf]
      %v1143 = vunpack.c.l.b16 %v1089
      %v1144 = vunpack.c.l.b16 %v1093
      %v1145 = vunpack.c.l.b16 %v1097
      %v1146 = vunpack.c.l.b16 %v1101
      %v1147 = vunpack.c.l.b16 %v1105
      %v1148 = vunpack.c.l.b16 %v1109
      %v1149 = vunpack.c.l.b16 %v1113
      %v1150 = vunpack.c.l.b16 %v1117
      %v1151 = vpack.c.b16 %v1144, %v1143
      %v1152 = vpack.c.b16 %v1146, %v1145
      %v1153 = vpack.c.b16 %v1148, %v1147
      %v1154 = vpack.c.b16 %v1150, %v1149
      %v1175 = vunpack.c.l.b16 %v1127
      %v1176 = vunpack.c.l.b16 %v1128
      %v1177 = vunpack.c.l.b16 %v1129
      %v1178 = vunpack.c.l.b16 %v1130
      %v1179 = vunpack.c.l.b16 %v1131
      %v1180 = vunpack.c.l.b16 %v1132
      %v1181 = vunpack.c.l.b16 %v1133
      %v1182 = vunpack.c.l.b16 %v1134
      %v1183 = vunpack.c.l.b16 %v1135
      %v1184 = vunpack.c.l.b16 %v1136
      %v1185 = vunpack.c.l.b16 %v1137
      %v1186 = vunpack.c.l.b16 %v1138
      %v1187 = vunpack.c.l.b16 %v1139
      %v1188 = vunpack.c.l.b16 %v1140
      %v1189 = vunpack.c.l.b16 %v1141
      %v1190 = vunpack.c.l.b16 %v1142
      %v1191 = vpack.c.b16 %v1176, %v1175
      %v1192 = vpack.c.b16 %v1178, %v1177
      %v1193 = vpack.c.b16 %v1180, %v1179
      %v1194 = vpack.c.b16 %v1182, %v1181
      %v1195 = vpack.c.b16 %v1184, %v1183
      %v1196 = vpack.c.b16 %v1186, %v1185
      %v1197 = vpack.c.b16 %v1188, %v1187
      %v1198 = vpack.c.b16 %v1190, %v1189
      %1207 = vmatprep.subr.bf16.mxu0 0
      %1208 = vmatpush1.bf16.msra.mxu0 %v1198
      %1209 = vmatprep.subr.bf16.mxu0 0
      %1210 = vmatpush1.bf16.msra.mxu0 %v1197
      %1211 = vmatprep.subr.bf16.mxu0 0
      %1212 = vmatpush1.bf16.msra.mxu0 %v1196
      %1213 = vmatprep.subr.bf16.mxu0 0
      %1214 = vmatpush1.bf16.msra.mxu0 %v1195
      %1215 = vmatprep.subr.bf16.mxu0 0
      %1216 = vmatpush1.bf16.msra.mxu0 %v1194
      %1217 = vmatprep.subr.bf16.mxu0 0
      %1218 = vmatpush1.bf16.msra.mxu0 %v1193
      %1219 = vmatprep.subr.bf16.mxu0 0
      %1220 = vmatpush1.bf16.msra.mxu0 %v1192
      %1221 = vmatprep.subr.bf16.mxu0 0
      %1222 = vmatpush1.bf16.msra.mxu0 %v1191
      %1223 = vmatprep.subr.bf16.mxu0 0
      %1224 = vmatpush2.bf16.msra.mxu0 0
      %1225 = vmatprep.subr.bf16.mxu0 0
      %1226 = vmatpush2.bf16.msra.mxu0 0
      %1227 = vmatprep.subr.bf16.mxu0 0
      %1228 = vmatpush2.bf16.msra.mxu0 0
      %1229 = vmatprep.subr.bf16.mxu0 0
      %1230 = vmatpush2.bf16.msra.mxu0 0
      %1231 = vmatprep.subr.bf16.mxu0 0
      %1232 = vmatpush2.bf16.msra.mxu0 0
      %1233 = vmatprep.subr.bf16.mxu0 0
      %1234 = vmatpush2.bf16.msra.mxu0 0
      %1235 = vmatprep.subr.bf16.mxu0 0
      %1236 = vmatpush2.bf16.msra.mxu0 0
      %1237 = vmatprep.subr.bf16.mxu0 0
      %1238 = vmatpush2.bf16.msra.mxu0 0
      %1239 = vmatprep.mubr.bf16.mxu0 0
      %1240 = vmatmul.mubr.bf16.gmra.mxu0 %v1151
      %v1241 = vpop.f32.mrf.mxu0
      %v1242 = vadd.f32 0.0, %v1241
      %v1243 = vpop.f32.mrf.mxu0
      %v1244 = vpop.f32.mrf.mxu0
      %v1245 = vadd.f32 0.0, %v1244
      %v1246 = vpop.f32.mrf.mxu0
      %1247 = vmatprep.mubr.bf16.mxu0 0
      %1248 = vmatmul.mubr.bf16.gmra.mxu0 %v1152
      %v1249 = vpop.f32.mrf.mxu0
      %v1250 = vadd.f32 0.0, %v1249
      %v1251 = vpop.f32.mrf.mxu0
      %v1252 = vpop.f32.mrf.mxu0
      %v1253 = vadd.f32 0.0, %v1252
      %v1254 = vpop.f32.mrf.mxu0
      %1255 = vmatprep.mubr.bf16.mxu0 0
      %1256 = vmatmul.mubr.bf16.gmra.mxu0 %v1153
      %v1257 = vpop.f32.mrf.mxu0
      %v1258 = vadd.f32 0.0, %v1257
      %v1259 = vpop.f32.mrf.mxu0
      %v1260 = vpop.f32.mrf.mxu0
      %v1261 = vadd.f32 0.0, %v1260
      %v1262 = vpop.f32.mrf.mxu0
      %1263 = vmatprep.mubr.bf16.mxu0 0
      %1264 = vmatmul.mubr.bf16.gmra.mxu0 %v1154
      %v1265 = vpop.f32.mrf.mxu0
      %v1266 = vadd.f32 0.0, %v1265
      %v1267 = vpop.f32.mrf.mxu0
      %v1268 = vpop.f32.mrf.mxu0
      %v1269 = vadd.f32 0.0, %v1268
      %v1270 = vpop.f32.mrf.mxu0
      %1271 = vdwg.mxu0
      %v1272 = vadd.f32 %v1118, %v1242
      %v1273 = vadd.f32 %v1119, %v1245
      %v1274 = vadd.f32 %v1120, %v1250
      %v1275 = vadd.f32 %v1121, %v1253
      %v1276 = vadd.f32 %v1122, %v1258
      %v1277 = vadd.f32 %v1123, %v1261
      %v1278 = vadd.f32 %v1124, %v1266
      %v1279 = vadd.f32 %v1125, %v1269
      %1280 = vst [vmem:[#allocation3] sm:$0xff] %v1272
      %1281 = vst [vmem:[#allocation3 + $0x8] sm:$0xff] %v1273
      %1282 = vst [vmem:[#allocation3 + $0x10] sm:$0xff] %v1274
      %1283 = vst [vmem:[#allocation3 + $0x18] sm:$0xff] %v1275
      %1284 = vst [vmem:[#allocation3 + $0x20] sm:$0xff] %v1276
      %1285 = vst [vmem:[#allocation3 + $0x28] sm:$0xff] %v1277
      %1286 = vst [vmem:[#allocation3 + $0x30] sm:$0xff] %v1278
      %1287 = vst [vmem:[#allocation3 + $0x38] sm:$0xff] %v1279
      %v1288 = vld [vmem:[%s349] sm:$0xf]
      %v1289 = vld [vmem:[%s349 + $0x8] sm:$0xf]
      %v1290 = vld [vmem:[%s349 + $0x10] sm:$0xf]
      %v1291 = vld [vmem:[%s349 + $0x18] sm:$0xf]
      %v1292 = vld [vmem:[%s349 + $0x20] sm:$0xf]
      %v1293 = vld [vmem:[%s349 + $0x28] sm:$0xf]
      %v1294 = vld [vmem:[%s349 + $0x30] sm:$0xf]
      %v1295 = vld [vmem:[%s349 + $0x38] sm:$0xf]
      %v1296 = vld [vmem:[#allocation3] sm:$0xff]
      %v1297 = vld [vmem:[#allocation3 + $0x8] sm:$0xff]
      %v1298 = vld [vmem:[#allocation3 + $0x10] sm:$0xff]
      %v1299 = vld [vmem:[#allocation3 + $0x18] sm:$0xff]
      %v1300 = vld [vmem:[#allocation3 + $0x20] sm:$0xff]
      %v1301 = vld [vmem:[#allocation3 + $0x28] sm:$0xff]
      %v1302 = vld [vmem:[#allocation3 + $0x30] sm:$0xff]
      %v1303 = vld [vmem:[#allocation3 + $0x38] sm:$0xff]
      %s1304 = scalar_lea.vmem %s265, 192
      %v1305 = vld [vmem:[%s1304] sm:$0xf]
      %v1306 = vld [vmem:[%s1304 + $0x4] sm:$0xf]
      %v1307 = vld [vmem:[%s1304 + $0x8] sm:$0xf]
      %v1308 = vld [vmem:[%s1304 + $0xc] sm:$0xf]
      %v1309 = vld [vmem:[%s1304 + $0x10] sm:$0xf]
      %v1310 = vld [vmem:[%s1304 + $0x14] sm:$0xf]
      %v1311 = vld [vmem:[%s1304 + $0x18] sm:$0xf]
      %v1312 = vld [vmem:[%s1304 + $0x1c] sm:$0xf]
      %v1313 = vld [vmem:[%s1304 + $0x20] sm:$0xf]
      %v1314 = vld [vmem:[%s1304 + $0x24] sm:$0xf]
      %v1315 = vld [vmem:[%s1304 + $0x28] sm:$0xf]
      %v1316 = vld [vmem:[%s1304 + $0x2c] sm:$0xf]
      %v1317 = vld [vmem:[%s1304 + $0x30] sm:$0xf]
      %v1318 = vld [vmem:[%s1304 + $0x34] sm:$0xf]
      %v1319 = vld [vmem:[%s1304 + $0x38] sm:$0xf]
      %v1320 = vld [vmem:[%s1304 + $0x3c] sm:$0xf]
      %v1329 = vunpack.c.l.b16 %v1288
      %v1330 = vunpack.c.l.b16 %v1289
      %v1331 = vunpack.c.l.b16 %v1290
      %v1332 = vunpack.c.l.b16 %v1291
      %v1333 = vunpack.c.l.b16 %v1292
      %v1334 = vunpack.c.l.b16 %v1293
      %v1335 = vunpack.c.l.b16 %v1294
      %v1336 = vunpack.c.l.b16 %v1295
      %v1337 = vpack.c.b16 %v1330, %v1329
      %v1338 = vpack.c.b16 %v1332, %v1331
      %v1339 = vpack.c.b16 %v1334, %v1333
      %v1340 = vpack.c.b16 %v1336, %v1335
      %v1361 = vunpack.c.l.b16 %v1305
      %v1362 = vunpack.c.l.b16 %v1306
      %v1363 = vunpack.c.l.b16 %v1307
      %v1364 = vunpack.c.l.b16 %v1308
      %v1365 = vunpack.c.l.b16 %v1309
      %v1366 = vunpack.c.l.b16 %v1310
      %v1367 = vunpack.c.l.b16 %v1311
      %v1368 = vunpack.c.l.b16 %v1312
      %v1369 = vunpack.c.l.b16 %v1313
      %v1370 = vunpack.c.l.b16 %v1314
      %v1371 = vunpack.c.l.b16 %v1315
      %v1372 = vunpack.c.l.b16 %v1316
      %v1373 = vunpack.c.l.b16 %v1317
      %v1374 = vunpack.c.l.b16 %v1318
      %v1375 = vunpack.c.l.b16 %v1319
      %v1376 = vunpack.c.l.b16 %v1320
      %v1377 = vpack.c.b16 %v1362, %v1361
      %v1378 = vpack.c.b16 %v1364, %v1363
      %v1379 = vpack.c.b16 %v1366, %v1365
      %v1380 = vpack.c.b16 %v1368, %v1367
      %v1381 = vpack.c.b16 %v1370, %v1369
      %v1382 = vpack.c.b16 %v1372, %v1371
      %v1383 = vpack.c.b16 %v1374, %v1373
      %v1384 = vpack.c.b16 %v1376, %v1375
      %1393 = vmatprep.subr.bf16.mxu0 0
      %1394 = vmatpush1.bf16.msra.mxu0 %v1384
      %1395 = vmatprep.subr.bf16.mxu0 0
      %1396 = vmatpush1.bf16.msra.mxu0 %v1383
      %1397 = vmatprep.subr.bf16.mxu0 0
      %1398 = vmatpush1.bf16.msra.mxu0 %v1382
      %1399 = vmatprep.subr.bf16.mxu0 0
      %1400 = vmatpush1.bf16.msra.mxu0 %v1381
      %1401 = vmatprep.subr.bf16.mxu0 0
      %1402 = vmatpush1.bf16.msra.mxu0 %v1380
      %1403 = vmatprep.subr.bf16.mxu0 0
      %1404 = vmatpush1.bf16.msra.mxu0 %v1379
      %1405 = vmatprep.subr.bf16.mxu0 0
      %1406 = vmatpush1.bf16.msra.mxu0 %v1378
      %1407 = vmatprep.subr.bf16.mxu0 0
      %1408 = vmatpush1.bf16.msra.mxu0 %v1377
      %1409 = vmatprep.subr.bf16.mxu0 0
      %1410 = vmatpush2.bf16.msra.mxu0 0
      %1411 = vmatprep.subr.bf16.mxu0 0
      %1412 = vmatpush2.bf16.msra.mxu0 0
      %1413 = vmatprep.subr.bf16.mxu0 0
      %1414 = vmatpush2.bf16.msra.mxu0 0
      %1415 = vmatprep.subr.bf16.mxu0 0
      %1416 = vmatpush2.bf16.msra.mxu0 0
      %1417 = vmatprep.subr.bf16.mxu0 0
      %1418 = vmatpush2.bf16.msra.mxu0 0
      %1419 = vmatprep.subr.bf16.mxu0 0
      %1420 = vmatpush2.bf16.msra.mxu0 0
      %1421 = vmatprep.subr.bf16.mxu0 0
      %1422 = vmatpush2.bf16.msra.mxu0 0
      %1423 = vmatprep.subr.bf16.mxu0 0
      %1424 = vmatpush2.bf16.msra.mxu0 0
      %1425 = vmatprep.mubr.bf16.mxu0 0
      %1426 = vmatmul.mubr.bf16.gmra.mxu0 %v1337
      %v1427 = vpop.f32.mrf.mxu0
      %v1428 = vadd.f32 0.0, %v1427
      %v1429 = vpop.f32.mrf.mxu0
      %v1430 = vpop.f32.mrf.mxu0
      %v1431 = vadd.f32 0.0, %v1430
      %v1432 = vpop.f32.mrf.mxu0
      %1433 = vmatprep.mubr.bf16.mxu0 0
      %1434 = vmatmul.mubr.bf16.gmra.mxu0 %v1338
      %v1435 = vpop.f32.mrf.mxu0
      %v1436 = vadd.f32 0.0, %v1435
      %v1437 = vpop.f32.mrf.mxu0
      %v1438 = vpop.f32.mrf.mxu0
      %v1439 = vadd.f32 0.0, %v1438
      %v1440 = vpop.f32.mrf.mxu0
      %1441 = vmatprep.mubr.bf16.mxu0 0
      %1442 = vmatmul.mubr.bf16.gmra.mxu0 %v1339
      %v1443 = vpop.f32.mrf.mxu0
      %v1444 = vadd.f32 0.0, %v1443
      %v1445 = vpop.f32.mrf.mxu0
      %v1446 = vpop.f32.mrf.mxu0
      %v1447 = vadd.f32 0.0, %v1446
      %v1448 = vpop.f32.mrf.mxu0
      %1449 = vmatprep.mubr.bf16.mxu0 0
      %1450 = vmatmul.mubr.bf16.gmra.mxu0 %v1340
      %v1451 = vpop.f32.mrf.mxu0
      %v1452 = vadd.f32 0.0, %v1451
      %v1453 = vpop.f32.mrf.mxu0
      %v1454 = vpop.f32.mrf.mxu0
      %v1455 = vadd.f32 0.0, %v1454
      %v1456 = vpop.f32.mrf.mxu0
      %1457 = vdwg.mxu0
      %v1458 = vadd.f32 %v1296, %v1428
      %v1459 = vadd.f32 %v1297, %v1431
      %v1460 = vadd.f32 %v1298, %v1436
      %v1461 = vadd.f32 %v1299, %v1439
      %v1462 = vadd.f32 %v1300, %v1444
      %v1463 = vadd.f32 %v1301, %v1447
      %v1464 = vadd.f32 %v1302, %v1452
      %v1465 = vadd.f32 %v1303, %v1455
      %1466 = vst [vmem:[#allocation3] sm:$0xff] %v1458
      %1467 = vst [vmem:[#allocation3 + $0x8] sm:$0xff] %v1459
      %1468 = vst [vmem:[#allocation3 + $0x10] sm:$0xff] %v1460
      %1469 = vst [vmem:[#allocation3 + $0x18] sm:$0xff] %v1461
      %1470 = vst [vmem:[#allocation3 + $0x20] sm:$0xff] %v1462
      %1471 = vst [vmem:[#allocation3 + $0x28] sm:$0xff] %v1463
      %1472 = vst [vmem:[#allocation3 + $0x30] sm:$0xff] %v1464
      %1473 = vst [vmem:[#allocation3 + $0x38] sm:$0xff] %v1465
      %v1474 = vld [vmem:[%s349] sm:$0xf]
      %v1475 = vld [vmem:[%s349 + $0x4] sm:$0x1]
      %v1476 = vld [vmem:[%s349 + $0x8] sm:$0xf]
      %v1477 = vld [vmem:[%s349 + $0xc] sm:$0x1]
      %v1478 = vld [vmem:[%s349 + $0x10] sm:$0xf]
      %v1479 = vld [vmem:[%s349 + $0x14] sm:$0x1]
      %v1480 = vld [vmem:[%s349 + $0x18] sm:$0xf]
      %v1481 = vld [vmem:[%s349 + $0x1c] sm:$0x1]
      %v1482 = vld [vmem:[%s349 + $0x20] sm:$0xf]
      %v1483 = vld [vmem:[%s349 + $0x24] sm:$0x1]
      %v1484 = vld [vmem:[%s349 + $0x28] sm:$0xf]
      %v1485 = vld [vmem:[%s349 + $0x2c] sm:$0x1]
      %v1486 = vld [vmem:[%s349 + $0x30] sm:$0xf]
      %v1487 = vld [vmem:[%s349 + $0x34] sm:$0x1]
      %v1488 = vld [vmem:[%s349 + $0x38] sm:$0xf]
      %v1489 = vld [vmem:[%s349 + $0x3c] sm:$0x1]
      %v1491 = vshrl.u32 %v1474, 16
      %v1493 = vrot.slane %v1491, 4
      %v1494 = vshll.u32 %v1474, 16
      %v1496 = vrot.slane %v1494, 5
      %v1497 = vor.u32 %v1493, %v1496
      %v1498 = vrot.slane %v1497, 4
      %v1500 = vshll.u32 %v1475, 16
      %v1502 = vrot.slane %v1500, 5
      %v1503 = vsel %vm768, %v1498, %v1502
      %v1505 = vshrl.u32 %v1476, 16
      %v1507 = vrot.slane %v1505, 4
      %v1508 = vshll.u32 %v1476, 16
      %v1510 = vrot.slane %v1508, 5
      %v1511 = vor.u32 %v1507, %v1510
      %v1512 = vrot.slane %v1511, 4
      %v1514 = vshll.u32 %v1477, 16
      %v1516 = vrot.slane %v1514, 5
      %v1517 = vsel %vm768, %v1512, %v1516
      %v1519 = vshrl.u32 %v1478, 16
      %v1521 = vrot.slane %v1519, 4
      %v1522 = vshll.u32 %v1478, 16
      %v1524 = vrot.slane %v1522, 5
      %v1525 = vor.u32 %v1521, %v1524
      %v1526 = vrot.slane %v1525, 4
      %v1528 = vshll.u32 %v1479, 16
      %v1530 = vrot.slane %v1528, 5
      %v1531 = vsel %vm768, %v1526, %v1530
      %v1533 = vshrl.u32 %v1480, 16
      %v1535 = vrot.slane %v1533, 4
      %v1536 = vshll.u32 %v1480, 16
      %v1538 = vrot.slane %v1536, 5
      %v1539 = vor.u32 %v1535, %v1538
      %v1540 = vrot.slane %v1539, 4
      %v1542 = vshll.u32 %v1481, 16
      %v1544 = vrot.slane %v1542, 5
      %v1545 = vsel %vm768, %v1540, %v1544
      %v1547 = vshrl.u32 %v1482, 16
      %v1549 = vrot.slane %v1547, 4
      %v1550 = vshll.u32 %v1482, 16
      %v1552 = vrot.slane %v1550, 5
      %v1553 = vor.u32 %v1549, %v1552
      %v1554 = vrot.slane %v1553, 4
      %v1556 = vshll.u32 %v1483, 16
      %v1558 = vrot.slane %v1556, 5
      %v1559 = vsel %vm768, %v1554, %v1558
      %v1561 = vshrl.u32 %v1484, 16
      %v1563 = vrot.slane %v1561, 4
      %v1564 = vshll.u32 %v1484, 16
      %v1566 = vrot.slane %v1564, 5
      %v1567 = vor.u32 %v1563, %v1566
      %v1568 = vrot.slane %v1567, 4
      %v1570 = vshll.u32 %v1485, 16
      %v1572 = vrot.slane %v1570, 5
      %v1573 = vsel %vm768, %v1568, %v1572
      %v1575 = vshrl.u32 %v1486, 16
      %v1577 = vrot.slane %v1575, 4
      %v1578 = vshll.u32 %v1486, 16
      %v1580 = vrot.slane %v1578, 5
      %v1581 = vor.u32 %v1577, %v1580
      %v1582 = vrot.slane %v1581, 4
      %v1584 = vshll.u32 %v1487, 16
      %v1586 = vrot.slane %v1584, 5
      %v1587 = vsel %vm768, %v1582, %v1586
      %v1589 = vshrl.u32 %v1488, 16
      %v1591 = vrot.slane %v1589, 4
      %v1592 = vshll.u32 %v1488, 16
      %v1594 = vrot.slane %v1592, 5
      %v1595 = vor.u32 %v1591, %v1594
      %v1596 = vrot.slane %v1595, 4
      %v1598 = vshll.u32 %v1489, 16
      %v1600 = vrot.slane %v1598, 5
      %v1601 = vsel %vm768, %v1596, %v1600
      %v1602 = vld [vmem:[#allocation3] sm:$0xff]
      %v1603 = vld [vmem:[#allocation3 + $0x8] sm:$0xff]
      %v1604 = vld [vmem:[#allocation3 + $0x10] sm:$0xff]
      %v1605 = vld [vmem:[#allocation3 + $0x18] sm:$0xff]
      %v1606 = vld [vmem:[#allocation3 + $0x20] sm:$0xff]
      %v1607 = vld [vmem:[#allocation3 + $0x28] sm:$0xff]
      %v1608 = vld [vmem:[#allocation3 + $0x30] sm:$0xff]
      %v1609 = vld [vmem:[#allocation3 + $0x38] sm:$0xff]
      %s1610 = scalar_lea.vmem %s265, 256
      %v1611 = vld [vmem:[%s1610] sm:$0xf]
      %v1612 = vld [vmem:[%s1610 + $0x4] sm:$0xf]
      %v1613 = vld [vmem:[%s1610 + $0x8] sm:$0xf]
      %v1614 = vld [vmem:[%s1610 + $0xc] sm:$0xf]
      %v1615 = vld [vmem:[%s1610 + $0x10] sm:$0xf]
      %v1616 = vld [vmem:[%s1610 + $0x14] sm:$0xf]
      %v1617 = vld [vmem:[%s1610 + $0x18] sm:$0xf]
      %v1618 = vld [vmem:[%s1610 + $0x1c] sm:$0xf]
      %v1619 = vld [vmem:[%s1610 + $0x20] sm:$0xf]
      %v1620 = vld [vmem:[%s1610 + $0x24] sm:$0xf]
      %v1621 = vld [vmem:[%s1610 + $0x28] sm:$0xf]
      %v1622 = vld [vmem:[%s1610 + $0x2c] sm:$0xf]
      %v1623 = vld [vmem:[%s1610 + $0x30] sm:$0xf]
      %v1624 = vld [vmem:[%s1610 + $0x34] sm:$0xf]
      %v1625 = vld [vmem:[%s1610 + $0x38] sm:$0xf]
      %v1626 = vld [vmem:[%s1610 + $0x3c] sm:$0xf]
      %v1627 = vunpack.c.l.b16 %v1503
      %v1628 = vunpack.c.l.b16 %v1517
      %v1629 = vunpack.c.l.b16 %v1531
      %v1630 = vunpack.c.l.b16 %v1545
      %v1631 = vunpack.c.l.b16 %v1559
      %v1632 = vunpack.c.l.b16 %v1573
      %v1633 = vunpack.c.l.b16 %v1587
      %v1634 = vunpack.c.l.b16 %v1601
      %v1635 = vpack.c.b16 %v1628, %v1627
      %v1636 = vpack.c.b16 %v1630, %v1629
      %v1637 = vpack.c.b16 %v1632, %v1631
      %v1638 = vpack.c.b16 %v1634, %v1633
      %v1659 = vunpack.c.l.b16 %v1611
      %v1660 = vunpack.c.l.b16 %v1612
      %v1661 = vunpack.c.l.b16 %v1613
      %v1662 = vunpack.c.l.b16 %v1614
      %v1663 = vunpack.c.l.b16 %v1615
      %v1664 = vunpack.c.l.b16 %v1616
      %v1665 = vunpack.c.l.b16 %v1617
      %v1666 = vunpack.c.l.b16 %v1618
      %v1667 = vunpack.c.l.b16 %v1619
      %v1668 = vunpack.c.l.b16 %v1620
      %v1669 = vunpack.c.l.b16 %v1621
      %v1670 = vunpack.c.l.b16 %v1622
      %v1671 = vunpack.c.l.b16 %v1623
      %v1672 = vunpack.c.l.b16 %v1624
      %v1673 = vunpack.c.l.b16 %v1625
      %v1674 = vunpack.c.l.b16 %v1626
      %v1675 = vpack.c.b16 %v1660, %v1659
      %v1676 = vpack.c.b16 %v1662, %v1661
      %v1677 = vpack.c.b16 %v1664, %v1663
      %v1678 = vpack.c.b16 %v1666, %v1665
      %v1679 = vpack.c.b16 %v1668, %v1667
      %v1680 = vpack.c.b16 %v1670, %v1669
      %v1681 = vpack.c.b16 %v1672, %v1671
      %v1682 = vpack.c.b16 %v1674, %v1673
      %1691 = vmatprep.subr.bf16.mxu0 0
      %1692 = vmatpush1.bf16.msra.mxu0 %v1682
      %1693 = vmatprep.subr.bf16.mxu0 0
      %1694 = vmatpush1.bf16.msra.mxu0 %v1681
      %1695 = vmatprep.subr.bf16.mxu0 0
      %1696 = vmatpush1.bf16.msra.mxu0 %v1680
      %1697 = vmatprep.subr.bf16.mxu0 0
      %1698 = vmatpush1.bf16.msra.mxu0 %v1679
      %1699 = vmatprep.subr.bf16.mxu0 0
      %1700 = vmatpush1.bf16.msra.mxu0 %v1678
      %1701 = vmatprep.subr.bf16.mxu0 0
      %1702 = vmatpush1.bf16.msra.mxu0 %v1677
      %1703 = vmatprep.subr.bf16.mxu0 0
      %1704 = vmatpush1.bf16.msra.mxu0 %v1676
      %1705 = vmatprep.subr.bf16.mxu0 0
      %1706 = vmatpush1.bf16.msra.mxu0 %v1675
      %1707 = vmatprep.subr.bf16.mxu0 0
      %1708 = vmatpush2.bf16.msra.mxu0 0
      %1709 = vmatprep.subr.bf16.mxu0 0
      %1710 = vmatpush2.bf16.msra.mxu0 0
      %1711 = vmatprep.subr.bf16.mxu0 0
      %1712 = vmatpush2.bf16.msra.mxu0 0
      %1713 = vmatprep.subr.bf16.mxu0 0
      %1714 = vmatpush2.bf16.msra.mxu0 0
      %1715 = vmatprep.subr.bf16.mxu0 0
      %1716 = vmatpush2.bf16.msra.mxu0 0
      %1717 = vmatprep.subr.bf16.mxu0 0
      %1718 = vmatpush2.bf16.msra.mxu0 0
      %1719 = vmatprep.subr.bf16.mxu0 0
      %1720 = vmatpush2.bf16.msra.mxu0 0
      %1721 = vmatprep.subr.bf16.mxu0 0
      %1722 = vmatpush2.bf16.msra.mxu0 0
      %1723 = vmatprep.mubr.bf16.mxu0 0
      %1724 = vmatmul.mubr.bf16.gmra.mxu0 %v1635
      %v1725 = vpop.f32.mrf.mxu0
      %v1726 = vadd.f32 0.0, %v1725
      %v1727 = vpop.f32.mrf.mxu0
      %v1728 = vpop.f32.mrf.mxu0
      %v1729 = vadd.f32 0.0, %v1728
      %v1730 = vpop.f32.mrf.mxu0
      %1731 = vmatprep.mubr.bf16.mxu0 0
      %1732 = vmatmul.mubr.bf16.gmra.mxu0 %v1636
      %v1733 = vpop.f32.mrf.mxu0
      %v1734 = vadd.f32 0.0, %v1733
      %v1735 = vpop.f32.mrf.mxu0
      %v1736 = vpop.f32.mrf.mxu0
      %v1737 = vadd.f32 0.0, %v1736
      %v1738 = vpop.f32.mrf.mxu0
      %1739 = vmatprep.mubr.bf16.mxu0 0
      %1740 = vmatmul.mubr.bf16.gmra.mxu0 %v1637
      %v1741 = vpop.f32.mrf.mxu0
      %v1742 = vadd.f32 0.0, %v1741
      %v1743 = vpop.f32.mrf.mxu0
      %v1744 = vpop.f32.mrf.mxu0
      %v1745 = vadd.f32 0.0, %v1744
      %v1746 = vpop.f32.mrf.mxu0
      %1747 = vmatprep.mubr.bf16.mxu0 0
      %1748 = vmatmul.mubr.bf16.gmra.mxu0 %v1638
      %v1749 = vpop.f32.mrf.mxu0
      %v1750 = vadd.f32 0.0, %v1749
      %v1751 = vpop.f32.mrf.mxu0
      %v1752 = vpop.f32.mrf.mxu0
      %v1753 = vadd.f32 0.0, %v1752
      %v1754 = vpop.f32.mrf.mxu0
      %1755 = vdwg.mxu0
      %v1756 = vadd.f32 %v1602, %v1726
      %v1757 = vadd.f32 %v1603, %v1729
      %v1758 = vadd.f32 %v1604, %v1734
      %v1759 = vadd.f32 %v1605, %v1737
      %v1760 = vadd.f32 %v1606, %v1742
      %v1761 = vadd.f32 %v1607, %v1745
      %v1762 = vadd.f32 %v1608, %v1750
      %v1763 = vadd.f32 %v1609, %v1753
      %1764 = vst [vmem:[#allocation3] sm:$0xff] %v1756
      %1765 = vst [vmem:[#allocation3 + $0x8] sm:$0xff] %v1757
      %1766 = vst [vmem:[#allocation3 + $0x10] sm:$0xff] %v1758
      %1767 = vst [vmem:[#allocation3 + $0x18] sm:$0xff] %v1759
      %1768 = vst [vmem:[#allocation3 + $0x20] sm:$0xff] %v1760
      %1769 = vst [vmem:[#allocation3 + $0x28] sm:$0xff] %v1761
      %1770 = vst [vmem:[#allocation3 + $0x30] sm:$0xff] %v1762
      %1771 = vst [vmem:[#allocation3 + $0x38] sm:$0xff] %v1763
      %v1772 = vld [vmem:[%s349] sm:$0xe]
      %v1773 = vld [vmem:[%s349 + $0x4] sm:$0x1]
      %v1774 = vld [vmem:[%s349 + $0x8] sm:$0xe]
      %v1775 = vld [vmem:[%s349 + $0xc] sm:$0x1]
      %v1776 = vld [vmem:[%s349 + $0x10] sm:$0xe]
      %v1777 = vld [vmem:[%s349 + $0x14] sm:$0x1]
      %v1778 = vld [vmem:[%s349 + $0x18] sm:$0xe]
      %v1779 = vld [vmem:[%s349 + $0x1c] sm:$0x1]
      %v1780 = vld [vmem:[%s349 + $0x20] sm:$0xe]
      %v1781 = vld [vmem:[%s349 + $0x24] sm:$0x1]
      %v1782 = vld [vmem:[%s349 + $0x28] sm:$0xe]
      %v1783 = vld [vmem:[%s349 + $0x2c] sm:$0x1]
      %v1784 = vld [vmem:[%s349 + $0x30] sm:$0xe]
      %v1785 = vld [vmem:[%s349 + $0x34] sm:$0x1]
      %v1786 = vld [vmem:[%s349 + $0x38] sm:$0xe]
      %v1787 = vld [vmem:[%s349 + $0x3c] sm:$0x1]
      %v1804 = vrot.slane %v1772, 5
      %v1805 = vrot.slane %v1804, 4
      %v1806 = vrot.slane %v1773, 5
      %v1807 = vsel %vm1085, %v1805, %v1806
      %v1808 = vrot.slane %v1774, 5
      %v1809 = vrot.slane %v1808, 4
      %v1810 = vrot.slane %v1775, 5
      %v1811 = vsel %vm1085, %v1809, %v1810
      %v1812 = vrot.slane %v1776, 5
      %v1813 = vrot.slane %v1812, 4
      %v1814 = vrot.slane %v1777, 5
      %v1815 = vsel %vm1085, %v1813, %v1814
      %v1816 = vrot.slane %v1778, 5
      %v1817 = vrot.slane %v1816, 4
      %v1818 = vrot.slane %v1779, 5
      %v1819 = vsel %vm1085, %v1817, %v1818
      %v1820 = vrot.slane %v1780, 5
      %v1821 = vrot.slane %v1820, 4
      %v1822 = vrot.slane %v1781, 5
      %v1823 = vsel %vm1085, %v1821, %v1822
      %v1824 = vrot.slane %v1782, 5
      %v1825 = vrot.slane %v1824, 4
      %v1826 = vrot.slane %v1783, 5
      %v1827 = vsel %vm1085, %v1825, %v1826
      %v1828 = vrot.slane %v1784, 5
      %v1829 = vrot.slane %v1828, 4
      %v1830 = vrot.slane %v1785, 5
      %v1831 = vsel %vm1085, %v1829, %v1830
      %v1832 = vrot.slane %v1786, 5
      %v1833 = vrot.slane %v1832, 4
      %v1834 = vrot.slane %v1787, 5
      %v1835 = vsel %vm1085, %v1833, %v1834
      %v1836 = vld [vmem:[#allocation3] sm:$0xff]
      %v1837 = vld [vmem:[#allocation3 + $0x8] sm:$0xff]
      %v1838 = vld [vmem:[#allocation3 + $0x10] sm:$0xff]
      %v1839 = vld [vmem:[#allocation3 + $0x18] sm:$0xff]
      %v1840 = vld [vmem:[#allocation3 + $0x20] sm:$0xff]
      %v1841 = vld [vmem:[#allocation3 + $0x28] sm:$0xff]
      %v1842 = vld [vmem:[#allocation3 + $0x30] sm:$0xff]
      %v1843 = vld [vmem:[#allocation3 + $0x38] sm:$0xff]
      %s1844 = scalar_lea.vmem %s265, 320
      %v1845 = vld [vmem:[%s1844] sm:$0xf]
      %v1846 = vld [vmem:[%s1844 + $0x4] sm:$0xf]
      %v1847 = vld [vmem:[%s1844 + $0x8] sm:$0xf]
      %v1848 = vld [vmem:[%s1844 + $0xc] sm:$0xf]
      %v1849 = vld [vmem:[%s1844 + $0x10] sm:$0xf]
      %v1850 = vld [vmem:[%s1844 + $0x14] sm:$0xf]
      %v1851 = vld [vmem:[%s1844 + $0x18] sm:$0xf]
      %v1852 = vld [vmem:[%s1844 + $0x1c] sm:$0xf]
      %v1853 = vld [vmem:[%s1844 + $0x20] sm:$0xf]
      %v1854 = vld [vmem:[%s1844 + $0x24] sm:$0xf]
      %v1855 = vld [vmem:[%s1844 + $0x28] sm:$0xf]
      %v1856 = vld [vmem:[%s1844 + $0x2c] sm:$0xf]
      %v1857 = vld [vmem:[%s1844 + $0x30] sm:$0xf]
      %v1858 = vld [vmem:[%s1844 + $0x34] sm:$0xf]
      %v1859 = vld [vmem:[%s1844 + $0x38] sm:$0xf]
      %v1860 = vld [vmem:[%s1844 + $0x3c] sm:$0xf]
      %v1861 = vunpack.c.l.b16 %v1807
      %v1862 = vunpack.c.l.b16 %v1811
      %v1863 = vunpack.c.l.b16 %v1815
      %v1864 = vunpack.c.l.b16 %v1819
      %v1865 = vunpack.c.l.b16 %v1823
      %v1866 = vunpack.c.l.b16 %v1827
      %v1867 = vunpack.c.l.b16 %v1831
      %v1868 = vunpack.c.l.b16 %v1835
      %v1869 = vpack.c.b16 %v1862, %v1861
      %v1870 = vpack.c.b16 %v1864, %v1863
      %v1871 = vpack.c.b16 %v1866, %v1865
      %v1872 = vpack.c.b16 %v1868, %v1867
      %v1893 = vunpack.c.l.b16 %v1845
      %v1894 = vunpack.c.l.b16 %v1846
      %v1895 = vunpack.c.l.b16 %v1847
      %v1896 = vunpack.c.l.b16 %v1848
      %v1897 = vunpack.c.l.b16 %v1849
      %v1898 = vunpack.c.l.b16 %v1850
      %v1899 = vunpack.c.l.b16 %v1851
      %v1900 = vunpack.c.l.b16 %v1852
      %v1901 = vunpack.c.l.b16 %v1853
      %v1902 = vunpack.c.l.b16 %v1854
      %v1903 = vunpack.c.l.b16 %v1855
      %v1904 = vunpack.c.l.b16 %v1856
      %v1905 = vunpack.c.l.b16 %v1857
      %v1906 = vunpack.c.l.b16 %v1858
      %v1907 = vunpack.c.l.b16 %v1859
      %v1908 = vunpack.c.l.b16 %v1860
      %v1909 = vpack.c.b16 %v1894, %v1893
      %v1910 = vpack.c.b16 %v1896, %v1895
      %v1911 = vpack.c.b16 %v1898, %v1897
      %v1912 = vpack.c.b16 %v1900, %v1899
      %v1913 = vpack.c.b16 %v1902, %v1901
      %v1914 = vpack.c.b16 %v1904, %v1903
      %v1915 = vpack.c.b16 %v1906, %v1905
      %v1916 = vpack.c.b16 %v1908, %v1907
      %1925 = vmatprep.subr.bf16.mxu0 0
      %1926 = vmatpush1.bf16.msra.mxu0 %v1916
      %1927 = vmatprep.subr.bf16.mxu0 0
      %1928 = vmatpush1.bf16.msra.mxu0 %v1915
      %1929 = vmatprep.subr.bf16.mxu0 0
      %1930 = vmatpush1.bf16.msra.mxu0 %v1914
      %1931 = vmatprep.subr.bf16.mxu0 0
      %1932 = vmatpush1.bf16.msra.mxu0 %v1913
      %1933 = vmatprep.subr.bf16.mxu0 0
      %1934 = vmatpush1.bf16.msra.mxu0 %v1912
      %1935 = vmatprep.subr.bf16.mxu0 0
      %1936 = vmatpush1.bf16.msra.mxu0 %v1911
      %1937 = vmatprep.subr.bf16.mxu0 0
      %1938 = vmatpush1.bf16.msra.mxu0 %v1910
      %1939 = vmatprep.subr.bf16.mxu0 0
      %1940 = vmatpush1.bf16.msra.mxu0 %v1909
      %1941 = vmatprep.subr.bf16.mxu0 0
      %1942 = vmatpush2.bf16.msra.mxu0 0
      %1943 = vmatprep.subr.bf16.mxu0 0
      %1944 = vmatpush2.bf16.msra.mxu0 0
      %1945 = vmatprep.subr.bf16.mxu0 0
      %1946 = vmatpush2.bf16.msra.mxu0 0
      %1947 = vmatprep.subr.bf16.mxu0 0
      %1948 = vmatpush2.bf16.msra.mxu0 0
      %1949 = vmatprep.subr.bf16.mxu0 0
      %1950 = vmatpush2.bf16.msra.mxu0 0
      %1951 = vmatprep.subr.bf16.mxu0 0
      %1952 = vmatpush2.bf16.msra.mxu0 0
      %1953 = vmatprep.subr.bf16.mxu0 0
      %1954 = vmatpush2.bf16.msra.mxu0 0
      %1955 = vmatprep.subr.bf16.mxu0 0
      %1956 = vmatpush2.bf16.msra.mxu0 0
      %1957 = vmatprep.mubr.bf16.mxu0 0
      %1958 = vmatmul.mubr.bf16.gmra.mxu0 %v1869
      %v1959 = vpop.f32.mrf.mxu0
      %v1960 = vadd.f32 0.0, %v1959
      %v1961 = vpop.f32.mrf.mxu0
      %v1962 = vpop.f32.mrf.mxu0
      %v1963 = vadd.f32 0.0, %v1962
      %v1964 = vpop.f32.mrf.mxu0
      %1965 = vmatprep.mubr.bf16.mxu0 0
      %1966 = vmatmul.mubr.bf16.gmra.mxu0 %v1870
      %v1967 = vpop.f32.mrf.mxu0
      %v1968 = vadd.f32 0.0, %v1967
      %v1969 = vpop.f32.mrf.mxu0
      %v1970 = vpop.f32.mrf.mxu0
      %v1971 = vadd.f32 0.0, %v1970
      %v1972 = vpop.f32.mrf.mxu0
      %1973 = vmatprep.mubr.bf16.mxu0 0
      %1974 = vmatmul.mubr.bf16.gmra.mxu0 %v1871
      %v1975 = vpop.f32.mrf.mxu0
      %v1976 = vadd.f32 0.0, %v1975
      %v1977 = vpop.f32.mrf.mxu0
      %v1978 = vpop.f32.mrf.mxu0
      %v1979 = vadd.f32 0.0, %v1978
      %v1980 = vpop.f32.mrf.mxu0
      %1981 = vmatprep.mubr.bf16.mxu0 0
      %1982 = vmatmul.mubr.bf16.gmra.mxu0 %v1872
      %v1983 = vpop.f32.mrf.mxu0
      %v1984 = vadd.f32 0.0, %v1983
      %v1985 = vpop.f32.mrf.mxu0
      %v1986 = vpop.f32.mrf.mxu0
      %v1987 = vadd.f32 0.0, %v1986
      %v1988 = vpop.f32.mrf.mxu0
      %1989 = vdwg.mxu0
      %v1990 = vadd.f32 %v1836, %v1960
      %v1991 = vadd.f32 %v1837, %v1963
      %v1992 = vadd.f32 %v1838, %v1968
      %v1993 = vadd.f32 %v1839, %v1971
      %v1994 = vadd.f32 %v1840, %v1976
      %v1995 = vadd.f32 %v1841, %v1979
      %v1996 = vadd.f32 %v1842, %v1984
      %v1997 = vadd.f32 %v1843, %v1987
      %1998 = vst [vmem:[#allocation3] sm:$0xff] %v1990
      %1999 = vst [vmem:[#allocation3 + $0x8] sm:$0xff] %v1991
      %2000 = vst [vmem:[#allocation3 + $0x10] sm:$0xff] %v1992
      %2001 = vst [vmem:[#allocation3 + $0x18] sm:$0xff] %v1993
      %2002 = vst [vmem:[#allocation3 + $0x20] sm:$0xff] %v1994
      %2003 = vst [vmem:[#allocation3 + $0x28] sm:$0xff] %v1995
      %2004 = vst [vmem:[#allocation3 + $0x30] sm:$0xff] %v1996
      %2005 = vst [vmem:[#allocation3 + $0x38] sm:$0xff] %v1997
      %s2006 = scalar_lea.vmem [#allocation2], 16
      %v2007 = vld [vmem:[%s2006] sm:$0xf]
      %v2008 = vld [vmem:[%s2006 + $0x8] sm:$0xf]
      %v2009 = vld [vmem:[%s2006 + $0x10] sm:$0xf]
      %v2010 = vld [vmem:[%s2006 + $0x18] sm:$0xf]
      %v2011 = vld [vmem:[%s2006 + $0x20] sm:$0xf]
      %v2012 = vld [vmem:[%s2006 + $0x28] sm:$0xf]
      %v2013 = vld [vmem:[%s2006 + $0x30] sm:$0xf]
      %v2014 = vld [vmem:[%s2006 + $0x38] sm:$0xf]
      %v2015 = vld [vmem:[#allocation3] sm:$0xff]
      %v2016 = vld [vmem:[#allocation3 + $0x8] sm:$0xff]
      %v2017 = vld [vmem:[#allocation3 + $0x10] sm:$0xff]
      %v2018 = vld [vmem:[#allocation3 + $0x18] sm:$0xff]
      %v2019 = vld [vmem:[#allocation3 + $0x20] sm:$0xff]
      %v2020 = vld [vmem:[#allocation3 + $0x28] sm:$0xff]
      %v2021 = vld [vmem:[#allocation3 + $0x30] sm:$0xff]
      %v2022 = vld [vmem:[#allocation3 + $0x38] sm:$0xff]
      %s2023 = scalar_lea.vmem %s265, 384
      %v2024 = vld [vmem:[%s2023] sm:$0xf]
      %v2025 = vld [vmem:[%s2023 + $0x4] sm:$0xf]
      %v2026 = vld [vmem:[%s2023 + $0x8] sm:$0xf]
      %v2027 = vld [vmem:[%s2023 + $0xc] sm:$0xf]
      %v2028 = vld [vmem:[%s2023 + $0x10] sm:$0xf]
      %v2029 = vld [vmem:[%s2023 + $0x14] sm:$0xf]
      %v2030 = vld [vmem:[%s2023 + $0x18] sm:$0xf]
      %v2031 = vld [vmem:[%s2023 + $0x1c] sm:$0xf]
      %v2032 = vld [vmem:[%s2023 + $0x20] sm:$0xf]
      %v2033 = vld [vmem:[%s2023 + $0x24] sm:$0xf]
      %v2034 = vld [vmem:[%s2023 + $0x28] sm:$0xf]
      %v2035 = vld [vmem:[%s2023 + $0x2c] sm:$0xf]
      %v2036 = vld [vmem:[%s2023 + $0x30] sm:$0xf]
      %v2037 = vld [vmem:[%s2023 + $0x34] sm:$0xf]
      %v2038 = vld [vmem:[%s2023 + $0x38] sm:$0xf]
      %v2039 = vld [vmem:[%s2023 + $0x3c] sm:$0xf]
      %v2048 = vunpack.c.l.b16 %v2007
      %v2049 = vunpack.c.l.b16 %v2008
      %v2050 = vunpack.c.l.b16 %v2009
      %v2051 = vunpack.c.l.b16 %v2010
      %v2052 = vunpack.c.l.b16 %v2011
      %v2053 = vunpack.c.l.b16 %v2012
      %v2054 = vunpack.c.l.b16 %v2013
      %v2055 = vunpack.c.l.b16 %v2014
      %v2056 = vpack.c.b16 %v2049, %v2048
      %v2057 = vpack.c.b16 %v2051, %v2050
      %v2058 = vpack.c.b16 %v2053, %v2052
      %v2059 = vpack.c.b16 %v2055, %v2054
      %v2080 = vunpack.c.l.b16 %v2024
      %v2081 = vunpack.c.l.b16 %v2025
      %v2082 = vunpack.c.l.b16 %v2026
      %v2083 = vunpack.c.l.b16 %v2027
      %v2084 = vunpack.c.l.b16 %v2028
      %v2085 = vunpack.c.l.b16 %v2029
      %v2086 = vunpack.c.l.b16 %v2030
      %v2087 = vunpack.c.l.b16 %v2031
      %v2088 = vunpack.c.l.b16 %v2032
      %v2089 = vunpack.c.l.b16 %v2033
      %v2090 = vunpack.c.l.b16 %v2034
      %v2091 = vunpack.c.l.b16 %v2035
      %v2092 = vunpack.c.l.b16 %v2036
      %v2093 = vunpack.c.l.b16 %v2037
      %v2094 = vunpack.c.l.b16 %v2038
      %v2095 = vunpack.c.l.b16 %v2039
      %v2096 = vpack.c.b16 %v2081, %v2080
      %v2097 = vpack.c.b16 %v2083, %v2082
      %v2098 = vpack.c.b16 %v2085, %v2084
      %v2099 = vpack.c.b16 %v2087, %v2086
      %v2100 = vpack.c.b16 %v2089, %v2088
      %v2101 = vpack.c.b16 %v2091, %v2090
      %v2102 = vpack.c.b16 %v2093, %v2092
      %v2103 = vpack.c.b16 %v2095, %v2094
      %2112 = vmatprep.subr.bf16.mxu0 0
      %2113 = vmatpush1.bf16.msra.mxu0 %v2103
      %2114 = vmatprep.subr.bf16.mxu0 0
      %2115 = vmatpush1.bf16.msra.mxu0 %v2102
      %2116 = vmatprep.subr.bf16.mxu0 0
      %2117 = vmatpush1.bf16.msra.mxu0 %v2101
      %2118 = vmatprep.subr.bf16.mxu0 0
      %2119 = vmatpush1.bf16.msra.mxu0 %v2100
      %2120 = vmatprep.subr.bf16.mxu0 0
      %2121 = vmatpush1.bf16.msra.mxu0 %v2099
      %2122 = vmatprep.subr.bf16.mxu0 0
      %2123 = vmatpush1.bf16.msra.mxu0 %v2098
      %2124 = vmatprep.subr.bf16.mxu0 0
      %2125 = vmatpush1.bf16.msra.mxu0 %v2097
      %2126 = vmatprep.subr.bf16.mxu0 0
      %2127 = vmatpush1.bf16.msra.mxu0 %v2096
      %2128 = vmatprep.subr.bf16.mxu0 0
      %2129 = vmatpush2.bf16.msra.mxu0 0
      %2130 = vmatprep.subr.bf16.mxu0 0
      %2131 = vmatpush2.bf16.msra.mxu0 0
      %2132 = vmatprep.subr.bf16.mxu0 0
      %2133 = vmatpush2.bf16.msra.mxu0 0
      %2134 = vmatprep.subr.bf16.mxu0 0
      %2135 = vmatpush2.bf16.msra.mxu0 0
      %2136 = vmatprep.subr.bf16.mxu0 0
      %2137 = vmatpush2.bf16.msra.mxu0 0
      %2138 = vmatprep.subr.bf16.mxu0 0
      %2139 = vmatpush2.bf16.msra.mxu0 0
      %2140 = vmatprep.subr.bf16.mxu0 0
      %2141 = vmatpush2.bf16.msra.mxu0 0
      %2142 = vmatprep.subr.bf16.mxu0 0
      %2143 = vmatpush2.bf16.msra.mxu0 0
      %2144 = vmatprep.mubr.bf16.mxu0 0
      %2145 = vmatmul.mubr.bf16.gmra.mxu0 %v2056
      %v2146 = vpop.f32.mrf.mxu0
      %v2147 = vadd.f32 0.0, %v2146
      %v2148 = vpop.f32.mrf.mxu0
      %v2149 = vpop.f32.mrf.mxu0
      %v2150 = vadd.f32 0.0, %v2149
      %v2151 = vpop.f32.mrf.mxu0
      %2152 = vmatprep.mubr.bf16.mxu0 0
      %2153 = vmatmul.mubr.bf16.gmra.mxu0 %v2057
      %v2154 = vpop.f32.mrf.mxu0
      %v2155 = vadd.f32 0.0, %v2154
      %v2156 = vpop.f32.mrf.mxu0
      %v2157 = vpop.f32.mrf.mxu0
      %v2158 = vadd.f32 0.0, %v2157
      %v2159 = vpop.f32.mrf.mxu0
      %2160 = vmatprep.mubr.bf16.mxu0 0
      %2161 = vmatmul.mubr.bf16.gmra.mxu0 %v2058
      %v2162 = vpop.f32.mrf.mxu0
      %v2163 = vadd.f32 0.0, %v2162
      %v2164 = vpop.f32.mrf.mxu0
      %v2165 = vpop.f32.mrf.mxu0
      %v2166 = vadd.f32 0.0, %v2165
      %v2167 = vpop.f32.mrf.mxu0
      %2168 = vmatprep.mubr.bf16.mxu0 0
      %2169 = vmatmul.mubr.bf16.gmra.mxu0 %v2059
      %v2170 = vpop.f32.mrf.mxu0
      %v2171 = vadd.f32 0.0, %v2170
      %v2172 = vpop.f32.mrf.mxu0
      %v2173 = vpop.f32.mrf.mxu0
      %v2174 = vadd.f32 0.0, %v2173
      %v2175 = vpop.f32.mrf.mxu0
      %2176 = vdwg.mxu0
      %v2177 = vadd.f32 %v2015, %v2147
      %v2178 = vadd.f32 %v2016, %v2150
      %v2179 = vadd.f32 %v2017, %v2155
      %v2180 = vadd.f32 %v2018, %v2158
      %v2181 = vadd.f32 %v2019, %v2163
      %v2182 = vadd.f32 %v2020, %v2166
      %v2183 = vadd.f32 %v2021, %v2171
      %v2184 = vadd.f32 %v2022, %v2174
      %2185 = vst [vmem:[#allocation3] sm:$0xff] %v2177
      %2186 = vst [vmem:[#allocation3 + $0x8] sm:$0xff] %v2178
      %2187 = vst [vmem:[#allocation3 + $0x10] sm:$0xff] %v2179
      %2188 = vst [vmem:[#allocation3 + $0x18] sm:$0xff] %v2180
      %2189 = vst [vmem:[#allocation3 + $0x20] sm:$0xff] %v2181
      %2190 = vst [vmem:[#allocation3 + $0x28] sm:$0xff] %v2182
      %2191 = vst [vmem:[#allocation3 + $0x30] sm:$0xff] %v2183
      %2192 = vst [vmem:[#allocation3 + $0x38] sm:$0xff] %v2184
      %v2193 = vld [vmem:[%s2006] sm:$0xf]
      %v2194 = vld [vmem:[%s2006 + $0x4] sm:$0x1]
      %v2195 = vld [vmem:[%s2006 + $0x8] sm:$0xf]
      %v2196 = vld [vmem:[%s2006 + $0xc] sm:$0x1]
      %v2197 = vld [vmem:[%s2006 + $0x10] sm:$0xf]
      %v2198 = vld [vmem:[%s2006 + $0x14] sm:$0x1]
      %v2199 = vld [vmem:[%s2006 + $0x18] sm:$0xf]
      %v2200 = vld [vmem:[%s2006 + $0x1c] sm:$0x1]
      %v2201 = vld [vmem:[%s2006 + $0x20] sm:$0xf]
      %v2202 = vld [vmem:[%s2006 + $0x24] sm:$0x1]
      %v2203 = vld [vmem:[%s2006 + $0x28] sm:$0xf]
      %v2204 = vld [vmem:[%s2006 + $0x2c] sm:$0x1]
      %v2205 = vld [vmem:[%s2006 + $0x30] sm:$0xf]
      %v2206 = vld [vmem:[%s2006 + $0x34] sm:$0x1]
      %v2207 = vld [vmem:[%s2006 + $0x38] sm:$0xf]
      %v2208 = vld [vmem:[%s2006 + $0x3c] sm:$0x1]
      %v2210 = vshrl.u32 %v2193, 16
      %v2212 = vrot.slane %v2210, 4
      %v2213 = vshll.u32 %v2193, 16
      %v2215 = vrot.slane %v2213, 5
      %v2216 = vor.u32 %v2212, %v2215
      %v2217 = vrot.slane %v2216, 4
      %v2219 = vshll.u32 %v2194, 16
      %v2221 = vrot.slane %v2219, 5
      %v2222 = vsel %vm768, %v2217, %v2221
      %v2224 = vshrl.u32 %v2195, 16
      %v2226 = vrot.slane %v2224, 4
      %v2227 = vshll.u32 %v2195, 16
      %v2229 = vrot.slane %v2227, 5
      %v2230 = vor.u32 %v2226, %v2229
      %v2231 = vrot.slane %v2230, 4
      %v2233 = vshll.u32 %v2196, 16
      %v2235 = vrot.slane %v2233, 5
      %v2236 = vsel %vm768, %v2231, %v2235
      %v2238 = vshrl.u32 %v2197, 16
      %v2240 = vrot.slane %v2238, 4
      %v2241 = vshll.u32 %v2197, 16
      %v2243 = vrot.slane %v2241, 5
      %v2244 = vor.u32 %v2240, %v2243
      %v2245 = vrot.slane %v2244, 4
      %v2247 = vshll.u32 %v2198, 16
      %v2249 = vrot.slane %v2247, 5
      %v2250 = vsel %vm768, %v2245, %v2249
      %v2252 = vshrl.u32 %v2199, 16
      %v2254 = vrot.slane %v2252, 4
      %v2255 = vshll.u32 %v2199, 16
      %v2257 = vrot.slane %v2255, 5
      %v2258 = vor.u32 %v2254, %v2257
      %v2259 = vrot.slane %v2258, 4
      %v2261 = vshll.u32 %v2200, 16
      %v2263 = vrot.slane %v2261, 5
      %v2264 = vsel %vm768, %v2259, %v2263
      %v2266 = vshrl.u32 %v2201, 16
      %v2268 = vrot.slane %v2266, 4
      %v2269 = vshll.u32 %v2201, 16
      %v2271 = vrot.slane %v2269, 5
      %v2272 = vor.u32 %v2268, %v2271
      %v2273 = vrot.slane %v2272, 4
      %v2275 = vshll.u32 %v2202, 16
      %v2277 = vrot.slane %v2275, 5
      %v2278 = vsel %vm768, %v2273, %v2277
      %v2280 = vshrl.u32 %v2203, 16
      %v2282 = vrot.slane %v2280, 4
      %v2283 = vshll.u32 %v2203, 16
      %v2285 = vrot.slane %v2283, 5
      %v2286 = vor.u32 %v2282, %v2285
      %v2287 = vrot.slane %v2286, 4
      %v2289 = vshll.u32 %v2204, 16
      %v2291 = vrot.slane %v2289, 5
      %v2292 = vsel %vm768, %v2287, %v2291
      %v2294 = vshrl.u32 %v2205, 16
      %v2296 = vrot.slane %v2294, 4
      %v2297 = vshll.u32 %v2205, 16
      %v2299 = vrot.slane %v2297, 5
      %v2300 = vor.u32 %v2296, %v2299
      %v2301 = vrot.slane %v2300, 4
      %v2303 = vshll.u32 %v2206, 16
      %v2305 = vrot.slane %v2303, 5
      %v2306 = vsel %vm768, %v2301, %v2305
      %v2308 = vshrl.u32 %v2207, 16
      %v2310 = vrot.slane %v2308, 4
      %v2311 = vshll.u32 %v2207, 16
      %v2313 = vrot.slane %v2311, 5
      %v2314 = vor.u32 %v2310, %v2313
      %v2315 = vrot.slane %v2314, 4
      %v2317 = vshll.u32 %v2208, 16
      %v2319 = vrot.slane %v2317, 5
      %v2320 = vsel %vm768, %v2315, %v2319
      %v2321 = vld [vmem:[#allocation3] sm:$0xff]
      %v2322 = vld [vmem:[#allocation3 + $0x8] sm:$0xff]
      %v2323 = vld [vmem:[#allocation3 + $0x10] sm:$0xff]
      %v2324 = vld [vmem:[#allocation3 + $0x18] sm:$0xff]
      %v2325 = vld [vmem:[#allocation3 + $0x20] sm:$0xff]
      %v2326 = vld [vmem:[#allocation3 + $0x28] sm:$0xff]
      %v2327 = vld [vmem:[#allocation3 + $0x30] sm:$0xff]
      %v2328 = vld [vmem:[#allocation3 + $0x38] sm:$0xff]
      %s2329 = scalar_lea.vmem %s265, 448
      %v2330 = vld [vmem:[%s2329] sm:$0xf]
      %v2331 = vld [vmem:[%s2329 + $0x4] sm:$0xf]
      %v2332 = vld [vmem:[%s2329 + $0x8] sm:$0xf]
      %v2333 = vld [vmem:[%s2329 + $0xc] sm:$0xf]
      %v2334 = vld [vmem:[%s2329 + $0x10] sm:$0xf]
      %v2335 = vld [vmem:[%s2329 + $0x14] sm:$0xf]
      %v2336 = vld [vmem:[%s2329 + $0x18] sm:$0xf]
      %v2337 = vld [vmem:[%s2329 + $0x1c] sm:$0xf]
      %v2338 = vld [vmem:[%s2329 + $0x20] sm:$0xf]
      %v2339 = vld [vmem:[%s2329 + $0x24] sm:$0xf]
      %v2340 = vld [vmem:[%s2329 + $0x28] sm:$0xf]
      %v2341 = vld [vmem:[%s2329 + $0x2c] sm:$0xf]
      %v2342 = vld [vmem:[%s2329 + $0x30] sm:$0xf]
      %v2343 = vld [vmem:[%s2329 + $0x34] sm:$0xf]
      %v2344 = vld [vmem:[%s2329 + $0x38] sm:$0xf]
      %v2345 = vld [vmem:[%s2329 + $0x3c] sm:$0xf]
      %v2346 = vunpack.c.l.b16 %v2222
      %v2347 = vunpack.c.l.b16 %v2236
      %v2348 = vunpack.c.l.b16 %v2250
      %v2349 = vunpack.c.l.b16 %v2264
      %v2350 = vunpack.c.l.b16 %v2278
      %v2351 = vunpack.c.l.b16 %v2292
      %v2352 = vunpack.c.l.b16 %v2306
      %v2353 = vunpack.c.l.b16 %v2320
      %v2354 = vpack.c.b16 %v2347, %v2346
      %v2355 = vpack.c.b16 %v2349, %v2348
      %v2356 = vpack.c.b16 %v2351, %v2350
      %v2357 = vpack.c.b16 %v2353, %v2352
      %v2378 = vunpack.c.l.b16 %v2330
      %v2379 = vunpack.c.l.b16 %v2331
      %v2380 = vunpack.c.l.b16 %v2332
      %v2381 = vunpack.c.l.b16 %v2333
      %v2382 = vunpack.c.l.b16 %v2334
      %v2383 = vunpack.c.l.b16 %v2335
      %v2384 = vunpack.c.l.b16 %v2336
      %v2385 = vunpack.c.l.b16 %v2337
      %v2386 = vunpack.c.l.b16 %v2338
      %v2387 = vunpack.c.l.b16 %v2339
      %v2388 = vunpack.c.l.b16 %v2340
      %v2389 = vunpack.c.l.b16 %v2341
      %v2390 = vunpack.c.l.b16 %v2342
      %v2391 = vunpack.c.l.b16 %v2343
      %v2392 = vunpack.c.l.b16 %v2344
      %v2393 = vunpack.c.l.b16 %v2345
      %v2394 = vpack.c.b16 %v2379, %v2378
      %v2395 = vpack.c.b16 %v2381, %v2380
      %v2396 = vpack.c.b16 %v2383, %v2382
      %v2397 = vpack.c.b16 %v2385, %v2384
      %v2398 = vpack.c.b16 %v2387, %v2386
      %v2399 = vpack.c.b16 %v2389, %v2388
      %v2400 = vpack.c.b16 %v2391, %v2390
      %v2401 = vpack.c.b16 %v2393, %v2392
      %2410 = vmatprep.subr.bf16.mxu0 0
      %2411 = vmatpush1.bf16.msra.mxu0 %v2401
      %2412 = vmatprep.subr.bf16.mxu0 0
      %2413 = vmatpush1.bf16.msra.mxu0 %v2400
      %2414 = vmatprep.subr.bf16.mxu0 0
      %2415 = vmatpush1.bf16.msra.mxu0 %v2399
      %2416 = vmatprep.subr.bf16.mxu0 0
      %2417 = vmatpush1.bf16.msra.mxu0 %v2398
      %2418 = vmatprep.subr.bf16.mxu0 0
      %2419 = vmatpush1.bf16.msra.mxu0 %v2397
      %2420 = vmatprep.subr.bf16.mxu0 0
      %2421 = vmatpush1.bf16.msra.mxu0 %v2396
      %2422 = vmatprep.subr.bf16.mxu0 0
      %2423 = vmatpush1.bf16.msra.mxu0 %v2395
      %2424 = vmatprep.subr.bf16.mxu0 0
      %2425 = vmatpush1.bf16.msra.mxu0 %v2394
      %2426 = vmatprep.subr.bf16.mxu0 0
      %2427 = vmatpush2.bf16.msra.mxu0 0
      %2428 = vmatprep.subr.bf16.mxu0 0
      %2429 = vmatpush2.bf16.msra.mxu0 0
      %2430 = vmatprep.subr.bf16.mxu0 0
      %2431 = vmatpush2.bf16.msra.mxu0 0
      %2432 = vmatprep.subr.bf16.mxu0 0
      %2433 = vmatpush2.bf16.msra.mxu0 0
      %2434 = vmatprep.subr.bf16.mxu0 0
      %2435 = vmatpush2.bf16.msra.mxu0 0
      %2436 = vmatprep.subr.bf16.mxu0 0
      %2437 = vmatpush2.bf16.msra.mxu0 0
      %2438 = vmatprep.subr.bf16.mxu0 0
      %2439 = vmatpush2.bf16.msra.mxu0 0
      %2440 = vmatprep.subr.bf16.mxu0 0
      %2441 = vmatpush2.bf16.msra.mxu0 0
      %2442 = vmatprep.mubr.bf16.mxu0 0
      %2443 = vmatmul.mubr.bf16.gmra.mxu0 %v2354
      %v2444 = vpop.f32.mrf.mxu0
      %v2445 = vadd.f32 0.0, %v2444
      %v2446 = vpop.f32.mrf.mxu0
      %v2447 = vpop.f32.mrf.mxu0
      %v2448 = vadd.f32 0.0, %v2447
      %v2449 = vpop.f32.mrf.mxu0
      %2450 = vmatprep.mubr.bf16.mxu0 0
      %2451 = vmatmul.mubr.bf16.gmra.mxu0 %v2355
      %v2452 = vpop.f32.mrf.mxu0
      %v2453 = vadd.f32 0.0, %v2452
      %v2454 = vpop.f32.mrf.mxu0
      %v2455 = vpop.f32.mrf.mxu0
      %v2456 = vadd.f32 0.0, %v2455
      %v2457 = vpop.f32.mrf.mxu0
      %2458 = vmatprep.mubr.bf16.mxu0 0
      %2459 = vmatmul.mubr.bf16.gmra.mxu0 %v2356
      %v2460 = vpop.f32.mrf.mxu0
      %v2461 = vadd.f32 0.0, %v2460
      %v2462 = vpop.f32.mrf.mxu0
      %v2463 = vpop.f32.mrf.mxu0
      %v2464 = vadd.f32 0.0, %v2463
      %v2465 = vpop.f32.mrf.mxu0
      %2466 = vmatprep.mubr.bf16.mxu0 0
      %2467 = vmatmul.mubr.bf16.gmra.mxu0 %v2357
      %v2468 = vpop.f32.mrf.mxu0
      %v2469 = vadd.f32 0.0, %v2468
      %v2470 = vpop.f32.mrf.mxu0
      %v2471 = vpop.f32.mrf.mxu0
      %v2472 = vadd.f32 0.0, %v2471
      %v2473 = vpop.f32.mrf.mxu0
      %2474 = vdwg.mxu0
      %v2475 = vadd.f32 %v2321, %v2445
      %v2476 = vadd.f32 %v2322, %v2448
      %v2477 = vadd.f32 %v2323, %v2453
      %v2478 = vadd.f32 %v2324, %v2456
      %v2479 = vadd.f32 %v2325, %v2461
      %v2480 = vadd.f32 %v2326, %v2464
      %v2481 = vadd.f32 %v2327, %v2469
      %v2482 = vadd.f32 %v2328, %v2472
      %2483 = vst [vmem:[#allocation3] sm:$0xff] %v2475
      %2484 = vst [vmem:[#allocation3 + $0x8] sm:$0xff] %v2476
      %2485 = vst [vmem:[#allocation3 + $0x10] sm:$0xff] %v2477
      %2486 = vst [vmem:[#allocation3 + $0x18] sm:$0xff] %v2478
      %2487 = vst [vmem:[#allocation3 + $0x20] sm:$0xff] %v2479
      %2488 = vst [vmem:[#allocation3 + $0x28] sm:$0xff] %v2480
      %2489 = vst [vmem:[#allocation3 + $0x30] sm:$0xff] %v2481
      %2490 = vst [vmem:[#allocation3 + $0x38] sm:$0xff] %v2482
      %v2491 = vld [vmem:[%s2006] sm:$0xe]
      %v2492 = vld [vmem:[%s2006 + $0x4] sm:$0x1]
      %v2493 = vld [vmem:[%s2006 + $0x8] sm:$0xe]
      %v2494 = vld [vmem:[%s2006 + $0xc] sm:$0x1]
      %v2495 = vld [vmem:[%s2006 + $0x10] sm:$0xe]
      %v2496 = vld [vmem:[%s2006 + $0x14] sm:$0x1]
      %v2497 = vld [vmem:[%s2006 + $0x18] sm:$0xe]
      %v2498 = vld [vmem:[%s2006 + $0x1c] sm:$0x1]
      %v2499 = vld [vmem:[%s2006 + $0x20] sm:$0xe]
      %v2500 = vld [vmem:[%s2006 + $0x24] sm:$0x1]
      %v2501 = vld [vmem:[%s2006 + $0x28] sm:$0xe]
      %v2502 = vld [vmem:[%s2006 + $0x2c] sm:$0x1]
      %v2503 = vld [vmem:[%s2006 + $0x30] sm:$0xe]
      %v2504 = vld [vmem:[%s2006 + $0x34] sm:$0x1]
      %v2505 = vld [vmem:[%s2006 + $0x38] sm:$0xe]
      %v2506 = vld [vmem:[%s2006 + $0x3c] sm:$0x1]
      %v2523 = vrot.slane %v2491, 5
      %v2524 = vrot.slane %v2523, 4
      %v2525 = vrot.slane %v2492, 5
      %v2526 = vsel %vm1085, %v2524, %v2525
      %v2527 = vrot.slane %v2493, 5
      %v2528 = vrot.slane %v2527, 4
      %v2529 = vrot.slane %v2494, 5
      %v2530 = vsel %vm1085, %v2528, %v2529
      %v2531 = vrot.slane %v2495, 5
      %v2532 = vrot.slane %v2531, 4
      %v2533 = vrot.slane %v2496, 5
      %v2534 = vsel %vm1085, %v2532, %v2533
      %v2535 = vrot.slane %v2497, 5
      %v2536 = vrot.slane %v2535, 4
      %v2537 = vrot.slane %v2498, 5
      %v2538 = vsel %vm1085, %v2536, %v2537
      %v2539 = vrot.slane %v2499, 5
      %v2540 = vrot.slane %v2539, 4
      %v2541 = vrot.slane %v2500, 5
      %v2542 = vsel %vm1085, %v2540, %v2541
      %v2543 = vrot.slane %v2501, 5
      %v2544 = vrot.slane %v2543, 4
      %v2545 = vrot.slane %v2502, 5
      %v2546 = vsel %vm1085, %v2544, %v2545
      %v2547 = vrot.slane %v2503, 5
      %v2548 = vrot.slane %v2547, 4
      %v2549 = vrot.slane %v2504, 5
      %v2550 = vsel %vm1085, %v2548, %v2549
      %v2551 = vrot.slane %v2505, 5
      %v2552 = vrot.slane %v2551, 4
      %v2553 = vrot.slane %v2506, 5
      %v2554 = vsel %vm1085, %v2552, %v2553
      %v2555 = vld [vmem:[#allocation3] sm:$0xff]
      %v2556 = vld [vmem:[#allocation3 + $0x8] sm:$0xff]
      %v2557 = vld [vmem:[#allocation3 + $0x10] sm:$0xff]
      %v2558 = vld [vmem:[#allocation3 + $0x18] sm:$0xff]
      %v2559 = vld [vmem:[#allocation3 + $0x20] sm:$0xff]
      %v2560 = vld [vmem:[#allocation3 + $0x28] sm:$0xff]
      %v2561 = vld [vmem:[#allocation3 + $0x30] sm:$0xff]
      %v2562 = vld [vmem:[#allocation3 + $0x38] sm:$0xff]
      %s2563 = scalar_lea.vmem %s265, 512
      %v2564 = vld [vmem:[%s2563] sm:$0xf]
      %v2565 = vld [vmem:[%s2563 + $0x4] sm:$0xf]
      %v2566 = vld [vmem:[%s2563 + $0x8] sm:$0xf]
      %v2567 = vld [vmem:[%s2563 + $0xc] sm:$0xf]
      %v2568 = vld [vmem:[%s2563 + $0x10] sm:$0xf]
      %v2569 = vld [vmem:[%s2563 + $0x14] sm:$0xf]
      %v2570 = vld [vmem:[%s2563 + $0x18] sm:$0xf]
      %v2571 = vld [vmem:[%s2563 + $0x1c] sm:$0xf]
      %v2572 = vld [vmem:[%s2563 + $0x20] sm:$0xf]
      %v2573 = vld [vmem:[%s2563 + $0x24] sm:$0xf]
      %v2574 = vld [vmem:[%s2563 + $0x28] sm:$0xf]
      %v2575 = vld [vmem:[%s2563 + $0x2c] sm:$0xf]
      %v2576 = vld [vmem:[%s2563 + $0x30] sm:$0xf]
      %v2577 = vld [vmem:[%s2563 + $0x34] sm:$0xf]
      %v2578 = vld [vmem:[%s2563 + $0x38] sm:$0xf]
      %v2579 = vld [vmem:[%s2563 + $0x3c] sm:$0xf]
      %v2580 = vunpack.c.l.b16 %v2526
      %v2581 = vunpack.c.l.b16 %v2530
      %v2582 = vunpack.c.l.b16 %v2534
      %v2583 = vunpack.c.l.b16 %v2538
      %v2584 = vunpack.c.l.b16 %v2542
      %v2585 = vunpack.c.l.b16 %v2546
      %v2586 = vunpack.c.l.b16 %v2550
      %v2587 = vunpack.c.l.b16 %v2554
      %v2588 = vpack.c.b16 %v2581, %v2580
      %v2589 = vpack.c.b16 %v2583, %v2582
      %v2590 = vpack.c.b16 %v2585, %v2584
      %v2591 = vpack.c.b16 %v2587, %v2586
      %v2612 = vunpack.c.l.b16 %v2564
      %v2613 = vunpack.c.l.b16 %v2565
      %v2614 = vunpack.c.l.b16 %v2566
      %v2615 = vunpack.c.l.b16 %v2567
      %v2616 = vunpack.c.l.b16 %v2568
      %v2617 = vunpack.c.l.b16 %v2569
      %v2618 = vunpack.c.l.b16 %v2570
      %v2619 = vunpack.c.l.b16 %v2571
      %v2620 = vunpack.c.l.b16 %v2572
      %v2621 = vunpack.c.l.b16 %v2573
      %v2622 = vunpack.c.l.b16 %v2574
      %v2623 = vunpack.c.l.b16 %v2575
      %v2624 = vunpack.c.l.b16 %v2576
      %v2625 = vunpack.c.l.b16 %v2577
      %v2626 = vunpack.c.l.b16 %v2578
      %v2627 = vunpack.c.l.b16 %v2579
      %v2628 = vpack.c.b16 %v2613, %v2612
      %v2629 = vpack.c.b16 %v2615, %v2614
      %v2630 = vpack.c.b16 %v2617, %v2616
      %v2631 = vpack.c.b16 %v2619, %v2618
      %v2632 = vpack.c.b16 %v2621, %v2620
      %v2633 = vpack.c.b16 %v2623, %v2622
      %v2634 = vpack.c.b16 %v2625, %v2624
      %v2635 = vpack.c.b16 %v2627, %v2626
      %2644 = vmatprep.subr.bf16.mxu0 0
      %2645 = vmatpush1.bf16.msra.mxu0 %v2635
      %2646 = vmatprep.subr.bf16.mxu0 0
      %2647 = vmatpush1.bf16.msra.mxu0 %v2634
      %2648 = vmatprep.subr.bf16.mxu0 0
      %2649 = vmatpush1.bf16.msra.mxu0 %v2633
      %2650 = vmatprep.subr.bf16.mxu0 0
      %2651 = vmatpush1.bf16.msra.mxu0 %v2632
      %2652 = vmatprep.subr.bf16.mxu0 0
      %2653 = vmatpush1.bf16.msra.mxu0 %v2631
      %2654 = vmatprep.subr.bf16.mxu0 0
      %2655 = vmatpush1.bf16.msra.mxu0 %v2630
      %2656 = vmatprep.subr.bf16.mxu0 0
      %2657 = vmatpush1.bf16.msra.mxu0 %v2629
      %2658 = vmatprep.subr.bf16.mxu0 0
      %2659 = vmatpush1.bf16.msra.mxu0 %v2628
      %2660 = vmatprep.subr.bf16.mxu0 0
      %2661 = vmatpush2.bf16.msra.mxu0 0
      %2662 = vmatprep.subr.bf16.mxu0 0
      %2663 = vmatpush2.bf16.msra.mxu0 0
      %2664 = vmatprep.subr.bf16.mxu0 0
      %2665 = vmatpush2.bf16.msra.mxu0 0
      %2666 = vmatprep.subr.bf16.mxu0 0
      %2667 = vmatpush2.bf16.msra.mxu0 0
      %2668 = vmatprep.subr.bf16.mxu0 0
      %2669 = vmatpush2.bf16.msra.mxu0 0
      %2670 = vmatprep.subr.bf16.mxu0 0
      %2671 = vmatpush2.bf16.msra.mxu0 0
      %2672 = vmatprep.subr.bf16.mxu0 0
      %2673 = vmatpush2.bf16.msra.mxu0 0
      %2674 = vmatprep.subr.bf16.mxu0 0
      %2675 = vmatpush2.bf16.msra.mxu0 0
      %2676 = vmatprep.mubr.bf16.mxu0 0
      %2677 = vmatmul.mubr.bf16.gmra.mxu0 %v2588
      %v2678 = vpop.f32.mrf.mxu0
      %v2679 = vadd.f32 0.0, %v2678
      %v2680 = vpop.f32.mrf.mxu0
      %v2681 = vpop.f32.mrf.mxu0
      %v2682 = vadd.f32 0.0, %v2681
      %v2683 = vpop.f32.mrf.mxu0
      %2684 = vmatprep.mubr.bf16.mxu0 0
      %2685 = vmatmul.mubr.bf16.gmra.mxu0 %v2589
      %v2686 = vpop.f32.mrf.mxu0
      %v2687 = vadd.f32 0.0, %v2686
      %v2688 = vpop.f32.mrf.mxu0
      %v2689 = vpop.f32.mrf.mxu0
      %v2690 = vadd.f32 0.0, %v2689
      %v2691 = vpop.f32.mrf.mxu0
      %2692 = vmatprep.mubr.bf16.mxu0 0
      %2693 = vmatmul.mubr.bf16.gmra.mxu0 %v2590
      %v2694 = vpop.f32.mrf.mxu0
      %v2695 = vadd.f32 0.0, %v2694
      %v2696 = vpop.f32.mrf.mxu0
      %v2697 = vpop.f32.mrf.mxu0
      %v2698 = vadd.f32 0.0, %v2697
      %v2699 = vpop.f32.mrf.mxu0
      %2700 = vmatprep.mubr.bf16.mxu0 0
      %2701 = vmatmul.mubr.bf16.gmra.mxu0 %v2591
      %v2702 = vpop.f32.mrf.mxu0
      %v2703 = vadd.f32 0.0, %v2702
      %v2704 = vpop.f32.mrf.mxu0
      %v2705 = vpop.f32.mrf.mxu0
      %v2706 = vadd.f32 0.0, %v2705
      %v2707 = vpop.f32.mrf.mxu0
      %2708 = vdwg.mxu0
      %v2709 = vadd.f32 %v2555, %v2679
      %v2710 = vadd.f32 %v2556, %v2682
      %v2711 = vadd.f32 %v2557, %v2687
      %v2712 = vadd.f32 %v2558, %v2690
      %v2713 = vadd.f32 %v2559, %v2695
      %v2714 = vadd.f32 %v2560, %v2698
      %v2715 = vadd.f32 %v2561, %v2703
      %v2716 = vadd.f32 %v2562, %v2706
      %2717 = vst [vmem:[#allocation3] sm:$0xff] %v2709
      %2718 = vst [vmem:[#allocation3 + $0x8] sm:$0xff] %v2710
      %2719 = vst [vmem:[#allocation3 + $0x10] sm:$0xff] %v2711
      %2720 = vst [vmem:[#allocation3 + $0x18] sm:$0xff] %v2712
      %2721 = vst [vmem:[#allocation3 + $0x20] sm:$0xff] %v2713
      %2722 = vst [vmem:[#allocation3 + $0x28] sm:$0xff] %v2714
      %2723 = vst [vmem:[#allocation3 + $0x30] sm:$0xff] %v2715
      %2724 = vst [vmem:[#allocation3 + $0x38] sm:$0xff] %v2716
      %v2725 = vld [vmem:[#allocation3] sm:$0xff]
      %v2726 = vld [vmem:[#allocation3 + $0x8] sm:$0xff]
      %v2727 = vld [vmem:[#allocation3 + $0x10] sm:$0xff]
      %v2728 = vld [vmem:[#allocation3 + $0x18] sm:$0xff]
      %v2729 = vld [vmem:[#allocation3 + $0x20] sm:$0xff]
      %v2730 = vld [vmem:[#allocation3 + $0x28] sm:$0xff]
      %v2731 = vld [vmem:[#allocation3 + $0x30] sm:$0xff]
      %v2732 = vld [vmem:[#allocation3 + $0x38] sm:$0xff]
      %v2733 = vpack.c.bf16 %v2726, %v2725
      %v2734 = vpack.c.bf16 %v2728, %v2727
      %v2735 = vpack.c.bf16 %v2730, %v2729
      %v2736 = vpack.c.bf16 %v2732, %v2731
      %v2741 = vunpack.c.l.b16 %v2733
      %v2742 = vunpack.c.h.b16 %v2733
      %v2743 = vunpack.c.l.b16 %v2734
      %v2744 = vunpack.c.h.b16 %v2734
      %v2745 = vunpack.c.l.b16 %v2735
      %v2746 = vunpack.c.h.b16 %v2735
      %v2747 = vunpack.c.l.b16 %v2736
      %v2748 = vunpack.c.h.b16 %v2736
      %v2749 = vpack.c.b16 %v2741, %v2741
      %v2750 = vpack.c.b16 %v2742, %v2742
      %v2751 = vpack.c.b16 %v2743, %v2743
      %v2752 = vpack.c.b16 %v2744, %v2744
      %v2753 = vpack.c.b16 %v2745, %v2745
      %v2754 = vpack.c.b16 %v2746, %v2746
      %v2755 = vpack.c.b16 %v2747, %v2747
      %v2756 = vpack.c.b16 %v2748, %v2748
      %2765 = vst [vmem:[%s273] sm:$0xf] %v2749
      %2766 = vst [vmem:[%s273 + $0x4] sm:$0xf] %v2750
      %2767 = vst [vmem:[%s273 + $0x8] sm:$0xf] %v2751
      %2768 = vst [vmem:[%s273 + $0xc] sm:$0xf] %v2752
      %2769 = vst [vmem:[%s273 + $0x10] sm:$0xf] %v2753
      %2770 = vst [vmem:[%s273 + $0x14] sm:$0xf] %v2754
      %2771 = vst [vmem:[%s273 + $0x18] sm:$0xf] %v2755
      %2772 = vst [vmem:[%s273 + $0x1c] sm:$0xf] %v2756
      %v2773 = vadd.f32 %v2725, %v2726
      %v2774 = vadd.f32 %v2773, %v2727
      %v2775 = vadd.f32 %v2774, %v2728
      %v2776 = vadd.f32 %v2775, %v2729
      %v2777 = vadd.f32 %v2776, %v2730
      %v2778 = vadd.f32 %v2777, %v2731
      %v2779 = vadd.f32 %v2778, %v2732
      %v2780 = vrot.slane %v2779, 4
      %v2781 = vadd.f32 %v2779, %v2780
      %v2782 = vrot.slane %v2781, 2
      %v2783 = vadd.f32 %v2781, %v2782
      %v2784 = vrot.slane %v2783, 1
      %v2785 = vadd.f32 %v2783, %v2784
      %2786 = vst [vmem:[%s280] sm:$0x1] %v2785
      %v2787 = vmul.f32 %v2725, %v2725
      %v2788 = vmul.f32 %v2726, %v2726
      %v2789 = vmul.f32 %v2727, %v2727
      %v2790 = vmul.f32 %v2728, %v2728
      %v2791 = vmul.f32 %v2729, %v2729
      %v2792 = vmul.f32 %v2730, %v2730
      %v2793 = vmul.f32 %v2731, %v2731
      %v2794 = vmul.f32 %v2732, %v2732
      %v2795 = vadd.f32 %v2787, %v2788
      %v2796 = vadd.f32 %v2795, %v2789
      %v2797 = vadd.f32 %v2796, %v2790
      %v2798 = vadd.f32 %v2797, %v2791
      %v2799 = vadd.f32 %v2798, %v2792
      %v2800 = vadd.f32 %v2799, %v2793
      %v2801 = vadd.f32 %v2800, %v2794
      %v2802 = vrot.slane %v2801, 4
      %v2803 = vadd.f32 %v2801, %v2802
      %v2804 = vrot.slane %v2803, 2
      %v2805 = vadd.f32 %v2803, %v2804
      %v2806 = vrot.slane %v2805, 1
      %v2807 = vadd.f32 %v2805, %v2806
      %2808 = vst [vmem:[%s280 + $0x1] sm:$0x1] %v2807
      %p2809 = scmp.lt.s32.totalorder %s21, 1
      %s2810 = scalar_select %p2809, %s21, 1
      %p2811 = scmp.lt.s32.totalorder %s22, 0
      %s2812 = scalar_select %p2811, %s22, 0
      %s2813 = smul.addr %s2810, 8
      %s2814 = sadd.s32 %s2812, %s2813
      %s2815 = smul.addr %s2814, 4
      %s2816 = scalar_lea.vmem %s4, %s2815
      %p2817 = scmp.lt.s32.totalorder %s21, 1
      %s2818 = scalar_select %p2817, %s21, 1
      %p2819 = scmp.lt.s32.totalorder %s22, 0
      %s2820 = scalar_select %p2819, %s22, 0
      %s2821 = sadd.s32 %s2820, %s2818
      %s2822 = smul.addr %s2821, 2
      %s2823 = scalar_lea.vmem %s5, %s2822
      // Predicated region
      $region37: #{basic_block_forward.4} parent=35 // pred_check
        %p2824 = pneg %p143
      $region38: #{basic_block_forward.4} parent=35 // pred_check_branch
        %2826 = sbr.rel (%p2824) target = $region40
      $region39: #{basic_block_forward.4} parent=35 // pred_region
        _
      $region40: #{basic_block_forward.4} parent=35 // pred_fallthru
        _
      // Predicated region
      $region41: #{basic_block_forward.4} parent=35 // pred_check
        %p2827 = pneg %p171
      $region42: #{basic_block_forward.4} parent=35 // pred_check_branch
        %2829 = sbr.rel (%p2827) target = $region44
      $region43: #{basic_block_forward.4} parent=35 // pred_region
        _
      $region44: #{basic_block_forward.4} parent=35 // pred_fallthru
        _
    $region36: #{basic_block_forward.4} parent=5 // pred_fallthru
      _
    %p2830 = scmp.le.s32.totalorder 2, %s12
    // Predicated region
    $region45: #{basic_block_forward.4} parent=5 // pred_check
      %p2831 = pneg %p2830
    $region46: #{basic_block_forward.4} parent=5 // pred_check_branch
      %2833 = sbr.rel (%p2831) target = $region48
    $region47: #{basic_block_forward.4} parent=5 // pred_region
      %s2834 = ssub.s32 %s12, 2
      // Predicated region
      $region49: #{basic_block_forward.4} parent=47 // pred_check
        %p2835 = pneg %p149
      $region50: #{basic_block_forward.4} parent=47 // pred_check_branch
        %2837 = sbr.rel (%p2835) target = $region52
      $region51: #{basic_block_forward.4} parent=47 // pred_region
        %p2838 = scmp.lt.s32.totalorder %s23, 1
        %s2839 = scalar_select %p2838, %s23, 1
        %p2840 = scmp.lt.s32.totalorder %s24, 0
        %s2841 = scalar_select %p2840, %s24, 0
        %s2842 = smul.addr %s2839, 8
        %s2843 = sadd.s32 %s2841, %s2842
        %s2844 = smul.addr %s2843, 4
        %s2845 = scalar_lea.vmem %s4, %s2844
      $region52: #{basic_block_forward.4} parent=47 // pred_fallthru
        _
      // Predicated region
      $region53: #{basic_block_forward.4} parent=47 // pred_check
        %p2846 = pneg %p177
      $region54: #{basic_block_forward.4} parent=47 // pred_check_branch
        %2848 = sbr.rel (%p2846) target = $region56
      $region55: #{basic_block_forward.4} parent=47 // pred_region
        %p2849 = scmp.lt.s32.totalorder %s23, 1
        %s2850 = scalar_select %p2849, %s23, 1
        %p2851 = scmp.lt.s32.totalorder %s24, 0
        %s2852 = scalar_select %p2851, %s24, 0
        %s2853 = sadd.s32 %s2852, %s2850
        %s2854 = smul.addr %s2853, 2
        %s2855 = scalar_lea.vmem %s5, %s2854
      $region56: #{basic_block_forward.4} parent=47 // pred_fallthru
        _
    $region48: #{basic_block_forward.4} parent=5 // pred_fallthru
      _
  $region6: #{basic_block_forward.4} parent=0 // loop_footer
    %s16 = sadd.s32 1, %s12
  $region7: #{basic_block_forward.4} parent=0 // loop_footer_branch
    %11 = sbr.rel target = $region3
  $region8: #{basic_block_forward.4} parent=0 // loop_exit
    _

</llo_original>
